<compile_context>
chip_gen: v7x
topology: tpu7x:2x2x1
jax: 0.10.0
libtpu: 0.0.40
codegen_flags: <defaults>
</compile_context>

<pallas_src>
import functools

import jax
import jax.numpy as jnp
from jax.experimental import pallas as pl
from jax.experimental.pallas import tpu as pltpu

NEG_SLOPE = 0.01      # PyTorch nn.LeakyReLU default
BN_EPS = 1e-5


def _leaky(x):
    return jnp.where(x >= 0, x, NEG_SLOPE * x)


def _cdiv(a, b):
    return -(-a // b)


def _round_up(a, m):
    return _cdiv(a, m) * m


# ---------------------------------------------------------------------------
# Kernel: conv stack + running max pool + fused MLP head
# ---------------------------------------------------------------------------
def backbone_kernel(x_ref,                 # (bt, nt, 8)      f32 (channels padded)
                    w1, b1,                # (8, 64)   f32,   (1, 64)  f32
                    w2, b2,                # (64, 128) bf16,  (1, 128) f32
                    w3, b3,                # (128,256) bf16,  (1, 256) f32
                    w4, b4,                # (256,512) bf16,  (1, 512) f32
                    w5, b5,                # (512,256) bf16,  (1, 256) f32
                    w6, b6,                # (256, 64) bf16,  (1, 64)  f32
                    w7, b7,                # (64, 1)   f32,   (1, 1)   f32
                    score_ref,             # (bt, 1)   f32 output
                    acc_ref,               # (bt, 512) f32 VMEM scratch (running max)
                    *, bt, nt):
    n = pl.program_id(1)

    x = x_ref[...].reshape(bt * nt, 8)                         # (M, 8) f32

    # conv1 (1x1, 3->64; channels zero-padded to 8): full-M MXU dot, f32.
    h = jnp.dot(x, w1[...], preferred_element_type=jnp.float32) + b1[...]
    h = _leaky(h).astype(jnp.bfloat16)                         # (M, 64) bf16

    def conv(hin, w_ref, b_ref):
        y = jnp.dot(hin, w_ref[...],                           # bf16 MXU, f32 accum
                    preferred_element_type=jnp.float32)
        return _leaky(y + b_ref[...]).astype(jnp.bfloat16)     # f32 epilogue, bf16 out

    h = conv(h, w2, b2)                                        # (M, 128) bf16
    h = conv(h, w3, b3)                                        # (M, 256) bf16
    h = conv(h, w4, b4)                                        # (M, 512) bf16

    # Per-tile max over points (duplicated edge-padded points are harmless).
    tile_max = jnp.max(h.reshape(bt, nt, 512), axis=1).astype(jnp.float32)

    # MaxPool1d(num_point) == running max over point tiles in a resident scratch.
    @pl.when(n == 0)
    def _():
        acc_ref[...] = tile_max

    @pl.when(n != 0)
    def _():
        acc_ref[...] = jnp.maximum(acc_ref[...], tile_max)

    # Fused MLP head on the pooled features, once per batch tile.
    @pl.when(n == pl.num_programs(1) - 1)
    def _():
        g = acc_ref[...]                                       # (bt, 512) f32
        m = _leaky(jnp.dot(g.astype(w5.dtype), w5[...],
                           preferred_element_type=jnp.float32) + b5[...])
        m = _leaky(jnp.dot(m.astype(w6.dtype), w6[...],
                           preferred_element_type=jnp.float32) + b6[...])
        score_ref[...] = jnp.dot(m, w7[...],
                                 preferred_element_type=jnp.float32) + b7[...]


# ---------------------------------------------------------------------------
# Host wrapper
# ---------------------------------------------------------------------------
def _const_spec(shape):
    zeros = (0,) * len(shape)
    return pl.BlockSpec(shape, lambda *_: zeros)


def _choose_tiles(B, N, target_m=2048):
    """Pick (batch_tile, point_tile, padded_B, padded_N).  nt is a multiple of
    16 (clean bf16 sublane packing); the fused M = bt*nt targets ~2048 rows."""
    n8 = _round_up(N, 8)
    n_tiles = max(1, _cdiv(n8, target_m))
    nt = _round_up(_cdiv(n8, n_tiles), 16)
    n_pad = _round_up(N, nt)
    bt = max(1, min(B, target_m // nt))
    if B >= 2 and _cdiv(B, bt) < 2:            # keep >=2 parallel grid steps
        bt = _cdiv(B, 2)                       # (megacore / v7x dual TC)
    b_pad = _round_up(B, bt)
    return bt, nt, b_pad, n_pad


@functools.lru_cache(maxsize=None)
def _vmem_limit_bytes():
    """Raise the scoped-VMEM cap above v5e's 16 MiB default, clamped to 3/4 of
    physical VMEM so v7x (64 MiB per TC) never over-commits."""
    try:
        cap = int(pltpu.get_tpu_info().vmem_capacity_bytes)
        return int(min(96 * 1024 * 1024, (cap * 3) // 4))
    except Exception:
        return None                            # fall back to compiler default


@jax.jit
def point_discriminator_2(x_ncw, params):
    """x_ncw: (B, 3, num_point) f32 (PyTorch NCW layout) -> (B, 1) f32."""
    (w1, b1, w2, b2, w3, b3, w4, b4, w5, b5, w6, b6, w7, b7) = params
    B, C, N = x_ncw.shape
    assert C == 3
    bt, nt, b_pad, n_pad = _choose_tiles(B, N)
    g_b, g_n = b_pad // bt, n_pad // nt

    # (B,3,N) -> (B,N,3); edge-replicate batch/point padding (duplicates never
    # change a max-pool); pad channels 3->8 (the matching rows appended to w1
    # are zero, so the replicated channel values are multiplied away).
    x = jnp.transpose(x_ncw, (0, 2, 1)).astype(jnp.float32)
    x = jnp.pad(x, ((0, b_pad - B), (0, n_pad - N), (0, 8 - C)), mode="edge")
    x = x.reshape(g_b, bt, n_pad, 8)

    w1p = jnp.pad(w1.astype(jnp.float32), ((0, 8 - C), (0, 0)))   # (8, 64)

    weights = (w1p, b1, w2, b2, w3, b3, w4, b4, w5, b5, w6, b6, w7, b7)

    in_specs = [pl.BlockSpec((None, bt, nt, 8), lambda g, n: (g, 0, n, 0))]
    in_specs += [_const_spec(p.shape) for p in weights]

    flops = (2 * b_pad * n_pad * (8 * 64 + 64 * 128 + 128 * 256 + 256 * 512)
             + 2 * b_pad * (512 * 256 + 256 * 64 + 64))
    bytes_accessed = (int(x.size) * 4
                      + sum(int(p.size) * p.dtype.itemsize for p in weights)
                      + b_pad * 4)

    scores = pl.pallas_call(
        functools.partial(backbone_kernel, bt=bt, nt=nt),
        out_shape=jax.ShapeDtypeStruct((g_b, bt, 1), jnp.float32),
        grid_spec=pltpu.PrefetchScalarGridSpec(
            num_scalar_prefetch=0,
            grid=(g_b, g_n),
            in_specs=in_specs,
            out_specs=pl.BlockSpec((None, bt, 1), lambda g, n: (g, 0, 0)),
            scratch_shapes=[pltpu.VMEM((bt, 512), jnp.float32)],
        ),
        compiler_params=pltpu.CompilerParams(
            dimension_semantics=("parallel", "arbitrary"),
            vmem_limit_bytes=_vmem_limit_bytes()),
        cost_estimate=pl.CostEstimate(
            flops=int(flops), transcendentals=0,
            bytes_accessed=int(bytes_accessed)),
    )(x, *weights)

    return scores.reshape(b_pad, 1)[:B]


# ---------------------------------------------------------------------------
# Parameters (BN folded) + references
# ---------------------------------------------------------------------------
def make_params(key):
    """Synthetic f32 params matching the PyTorch module, BN folded into conv."""
    conv_dims = [(3, 64), (64, 128), (128, 256), (256, 512)]
    mlp_dims = [(512, 256), (256, 64), (64, 1)]
    params = []
    keys = jax.random.split(key, 40)
    ki = 0
    for cin, cout in conv_dims:
        w = 0.1 * jax.random.normal(keys[ki], (cin, cout), jnp.float32); ki += 1
        conv_b = 0.05 * jax.random.normal(keys[ki], (cout,), jnp.float32); ki += 1
        gamma = 1.0 + 0.1 * jax.random.normal(keys[ki], (cout,), jnp.float32); ki += 1
        beta = 0.05 * jax.random.normal(keys[ki], (cout,), jnp.float32); ki += 1
        r_mean = 0.05 * jax.random.normal(keys[ki], (cout,), jnp.float32); ki += 1
        r_var = 1.0 + 0.1 * jax.random.uniform(keys[ki], (cout,), jnp.float32); ki += 1
        scale = gamma / jnp.sqrt(r_var + BN_EPS)
        # BN(conv(x)) = x @ (w*scale) + (beta + scale*(conv_b - r_mean))
        params += [w * scale[None, :],
                   (beta + scale * (conv_b - r_mean)).reshape(1, cout)]
    for cin, cout in mlp_dims:
        w = 0.1 * jax.random.normal(keys[ki], (cin, cout), jnp.float32); ki += 1
        b = 0.05 * jax.random.normal(keys[ki], (cout,), jnp.float32); ki += 1
        params += [w, b.reshape(1, cout)]
    return tuple(params)


def cast_params_for_tpu(params):
    """bf16 for the large matmul weights; conv1, final linear, biases stay f32."""
    (w1, b1, w2, b2, w3, b3, w4, b4, w5, b5, w6, b6, w7, b7) = params
    bf = lambda a: a.astype(jnp.bfloat16)
    return (w1, b1, bf(w2), b2, bf(w3), b3, bf(w4), b4,
            bf(w5), b5, bf(w6), b6, w7, b7)


def reference_forward(x_ncw, params):
    """Pure-JAX reference with identical layer semantics (activations cast to
    each layer's weight dtype before the dot, f32 accumulation)."""
    (w1, b1, w2, b2, w3, b3, w4, b4, w5, b5, w6, b6, w7, b7) = params
    h = jnp.transpose(x_ncw, (0, 2, 1)).astype(jnp.float32)          # (B, N, 3)
    h = (h[..., 0:1] * w1[0:1, :] + h[..., 1:2] * w1[1:2, :]
         + h[..., 2:3] * w1[2:3, :]) + b1
    h = _leaky(h)
    for w, b in ((w2, b2), (w3, b3), (w4, b4)):
        h = _leaky(jnp.einsum("bnc,cd->bnd", h.astype(w.dtype), w,
                              preferred_element_type=jnp.float32) + b)
    g = jnp.max(h, axis=1)                                           # (B, 512)
    m = _leaky(jnp.dot(g.astype(w5.dtype), w5,
                       preferred_element_type=jnp.float32) + b5)
    m = _leaky(jnp.dot(m.astype(w6.dtype), w6,
                       preferred_element_type=jnp.float32) + b6)
    return jnp.dot(m, w7, preferred_element_type=jnp.float32) + b7   # (B, 1)


if __name__ == "__main__":
    key = jax.random.PRNGKey(0)
    k_x, k_p = jax.random.split(key)

    B = 2
    NUM_POINT = 128          # small version of the module's default 512
    x = jax.random.normal(k_x, (B, 3, NUM_POINT), jnp.float32)       # NCW layout

    params_f32 = make_params(k_p)
    params_dev = cast_params_for_tpu(params_f32)

    out = point_discriminator_2(x, params_dev)
    out = jax.block_until_ready(out)
    assert out.shape == (B, 1)

    # Matched-precision check (same bf16/f32 mix as the kernel).
    ref_matched = reference_forward(x, params_dev)
    assert jnp.allclose(out, ref_matched, atol=5e-3, rtol=5e-3), (out, ref_matched)

    # Full-f32 semantic check (bf16 weight + activation rounding -> loose tol).
    ref_f32 = reference_forward(x, params_f32)
    assert jnp.allclose(out, ref_f32, atol=8e-2, rtol=8e-2), (out, ref_f32)

    print("KERNEL_OK")
</pallas_src>

<mosaic_0001>
module attributes {stable_mosaic.version = 11 : i64} {
  func.func @backbone_kernel(%arg0: i32, %arg1: i32, %arg2: memref<1x1x128x8xf32, #tpu.memory_space<vmem>>, %arg3: memref<8x64xf32, #tpu.memory_space<vmem>>, %arg4: memref<1x64xf32, #tpu.memory_space<vmem>>, %arg5: memref<64x128xbf16, #tpu.memory_space<vmem>>, %arg6: memref<1x128xf32, #tpu.memory_space<vmem>>, %arg7: memref<128x256xbf16, #tpu.memory_space<vmem>>, %arg8: memref<1x256xf32, #tpu.memory_space<vmem>>, %arg9: memref<256x512xbf16, #tpu.memory_space<vmem>>, %arg10: memref<1x512xf32, #tpu.memory_space<vmem>>, %arg11: memref<512x256xbf16, #tpu.memory_space<vmem>>, %arg12: memref<1x256xf32, #tpu.memory_space<vmem>>, %arg13: memref<256x64xbf16, #tpu.memory_space<vmem>>, %arg14: memref<1x64xf32, #tpu.memory_space<vmem>>, %arg15: memref<64x1xf32, #tpu.memory_space<vmem>>, %arg16: memref<1x1xf32, #tpu.memory_space<vmem>>, %arg17: memref<1x1x1xf32, #tpu.memory_space<vmem>>, %arg18: memref<1x512xf32, #tpu.memory_space<vmem>>) attributes {dimension_semantics = [#tpu.dimension_semantics<parallel>, #tpu.dimension_semantics<arbitrary>], iteration_bounds = array<i64: 2, 1>, scalar_prefetch = 0 : i64, scratch_operands = 1 : i64, tpu.core_type = #tpu.core_type<tc>, window_params = [{transform_indices = @transform_0, window_bounds = array<i64: 1, 1, 128, 8>}, {pipeline_mode = #tpu.pipeline_mode<synchronous>, transform_indices = @transform_1, window_bounds = array<i64: 8, 64>}, {pipeline_mode = #tpu.pipeline_mode<synchronous>, transform_indices = @transform_2, window_bounds = array<i64: 1, 64>}, {pipeline_mode = #tpu.pipeline_mode<synchronous>, transform_indices = @transform_3, window_bounds = array<i64: 64, 128>}, {pipeline_mode = #tpu.pipeline_mode<synchronous>, transform_indices = @transform_4, window_bounds = array<i64: 1, 128>}, {pipeline_mode = #tpu.pipeline_mode<synchronous>, transform_indices = @transform_5, window_bounds = array<i64: 128, 256>}, {pipeline_mode = #tpu.pipeline_mode<synchronous>, transform_indices = @transform_6, window_bounds = array<i64: 1, 256>}, {pipeline_mode = #tpu.pipeline_mode<synchronous>, transform_indices = @transform_7, window_bounds = array<i64: 256, 512>}, {pipeline_mode = #tpu.pipeline_mode<synchronous>, transform_indices = @transform_8, window_bounds = array<i64: 1, 512>}, {pipeline_mode = #tpu.pipeline_mode<synchronous>, transform_indices = @transform_9, window_bounds = array<i64: 512, 256>}, {pipeline_mode = #tpu.pipeline_mode<synchronous>, transform_indices = @transform_10, window_bounds = array<i64: 1, 256>}, {pipeline_mode = #tpu.pipeline_mode<synchronous>, transform_indices = @transform_11, window_bounds = array<i64: 256, 64>}, {pipeline_mode = #tpu.pipeline_mode<synchronous>, transform_indices = @transform_12, window_bounds = array<i64: 1, 64>}, {pipeline_mode = #tpu.pipeline_mode<synchronous>, transform_indices = @transform_13, window_bounds = array<i64: 64, 1>}, {pipeline_mode = #tpu.pipeline_mode<synchronous>, transform_indices = @transform_14, window_bounds = array<i64: 1, 1>}, {transform_indices = @transform_15, window_bounds = array<i64: 1, 1, 1>}]} {
    %c0 = arith.constant 0 : index
    %c0_0 = arith.constant 0 : index
    %c0_1 = arith.constant 0 : index
    %c0_2 = arith.constant 0 : index
    %0 = vector.load %arg2[%c0, %c0_0, %c0_1, %c0_2] : memref<1x1x128x8xf32, #tpu.memory_space<vmem>>, vector<1x1x128x8xf32>
    %1 = vector.shape_cast %0 : vector<1x1x128x8xf32> to vector<1x128x8xf32>
    %2 = vector.shape_cast %1 : vector<1x128x8xf32> to vector<128x8xf32>
    %c0_3 = arith.constant 0 : index
    %c0_4 = arith.constant 0 : index
    %3 = vector.load %arg3[%c0_3, %c0_4] : memref<8x64xf32, #tpu.memory_space<vmem>>, vector<8x64xf32>
    %cst = arith.constant dense<0.000000e+00> : vector<128x64xf32>
    %4 = tpu.matmul %2, %3, %cst {dimension_numbers = #tpu.dot_dimension_numbers<[1], [0], [0], [1], [0, 0, 1, 1], [], []>} : vector<128x8xf32>, vector<8x64xf32>, vector<128x64xf32> -> vector<128x64xf32>
    %c0_5 = arith.constant 0 : index
    %c0_6 = arith.constant 0 : index
    %5 = vector.load %arg4[%c0_5, %c0_6] : memref<1x64xf32, #tpu.memory_space<vmem>>, vector<1x64xf32>
    %6 = vector.broadcast %5 : vector<1x64xf32> to vector<128x64xf32>
    %7 = arith.addf %4, %6 : vector<128x64xf32>
    %cst_7 = arith.constant 0.000000e+00 : f32
    %8 = vector.broadcast %cst_7 : f32 to vector<128x64xf32>
    %9 = arith.cmpf oge, %7, %8 : vector<128x64xf32>
    %cst_8 = arith.constant 0.00999999977 : f32
    %10 = vector.broadcast %cst_8 : f32 to vector<128x64xf32>
    %11 = arith.mulf %10, %7 : vector<128x64xf32>
    %12 = arith.select %9, %7, %11 : vector<128x64xi1>, vector<128x64xf32>
    %13 = arith.truncf %12 : vector<128x64xf32> to vector<128x64xbf16>
    %c0_9 = arith.constant 0 : index
    %c0_10 = arith.constant 0 : index
    %14 = vector.load %arg5[%c0_9, %c0_10] : memref<64x128xbf16, #tpu.memory_space<vmem>>, vector<64x128xbf16>
    %cst_11 = arith.constant dense<0.000000e+00> : vector<128x128xf32>
    %15 = tpu.matmul %13, %14, %cst_11 {dimension_numbers = #tpu.dot_dimension_numbers<[1], [0], [0], [1], [0, 0, 1, 1], [], []>} : vector<128x64xbf16>, vector<64x128xbf16>, vector<128x128xf32> -> vector<128x128xf32>
    %c0_12 = arith.constant 0 : index
    %c0_13 = arith.constant 0 : index
    %16 = vector.load %arg6[%c0_12, %c0_13] : memref<1x128xf32, #tpu.memory_space<vmem>>, vector<1x128xf32>
    %17 = vector.broadcast %16 : vector<1x128xf32> to vector<128x128xf32>
    %18 = arith.addf %15, %17 : vector<128x128xf32>
    %cst_14 = arith.constant 0.000000e+00 : f32
    %19 = vector.broadcast %cst_14 : f32 to vector<128x128xf32>
    %20 = arith.cmpf oge, %18, %19 : vector<128x128xf32>
    %cst_15 = arith.constant 0.00999999977 : f32
    %21 = vector.broadcast %cst_15 : f32 to vector<128x128xf32>
    %22 = arith.mulf %21, %18 : vector<128x128xf32>
    %23 = arith.select %20, %18, %22 : vector<128x128xi1>, vector<128x128xf32>
    %24 = arith.truncf %23 : vector<128x128xf32> to vector<128x128xbf16>
    %c0_16 = arith.constant 0 : index
    %c0_17 = arith.constant 0 : index
    %25 = vector.load %arg7[%c0_16, %c0_17] : memref<128x256xbf16, #tpu.memory_space<vmem>>, vector<128x256xbf16>
    %cst_18 = arith.constant dense<0.000000e+00> : vector<128x256xf32>
    %26 = tpu.matmul %24, %25, %cst_18 {dimension_numbers = #tpu.dot_dimension_numbers<[1], [0], [0], [1], [0, 0, 1, 1], [], []>} : vector<128x128xbf16>, vector<128x256xbf16>, vector<128x256xf32> -> vector<128x256xf32>
    %c0_19 = arith.constant 0 : index
    %c0_20 = arith.constant 0 : index
    %27 = vector.load %arg8[%c0_19, %c0_20] : memref<1x256xf32, #tpu.memory_space<vmem>>, vector<1x256xf32>
    %28 = vector.broadcast %27 : vector<1x256xf32> to vector<128x256xf32>
    %29 = arith.addf %26, %28 : vector<128x256xf32>
    %cst_21 = arith.constant 0.000000e+00 : f32
    %30 = vector.broadcast %cst_21 : f32 to vector<128x256xf32>
    %31 = arith.cmpf oge, %29, %30 : vector<128x256xf32>
    %cst_22 = arith.constant 0.00999999977 : f32
    %32 = vector.broadcast %cst_22 : f32 to vector<128x256xf32>
    %33 = arith.mulf %32, %29 : vector<128x256xf32>
    %34 = arith.select %31, %29, %33 : vector<128x256xi1>, vector<128x256xf32>
    %35 = arith.truncf %34 : vector<128x256xf32> to vector<128x256xbf16>
    %c0_23 = arith.constant 0 : index
    %c0_24 = arith.constant 0 : index
    %36 = vector.load %arg9[%c0_23, %c0_24] : memref<256x512xbf16, #tpu.memory_space<vmem>>, vector<256x512xbf16>
    %cst_25 = arith.constant dense<0.000000e+00> : vector<128x512xf32>
    %37 = tpu.matmul %35, %36, %cst_25 {dimension_numbers = #tpu.dot_dimension_numbers<[1], [0], [0], [1], [0, 0, 1, 1], [], []>} : vector<128x256xbf16>, vector<256x512xbf16>, vector<128x512xf32> -> vector<128x512xf32>
    %c0_26 = arith.constant 0 : index
    %c0_27 = arith.constant 0 : index
    %38 = vector.load %arg10[%c0_26, %c0_27] : memref<1x512xf32, #tpu.memory_space<vmem>>, vector<1x512xf32>
    %39 = vector.broadcast %38 : vector<1x512xf32> to vector<128x512xf32>
    %40 = arith.addf %37, %39 : vector<128x512xf32>
    %cst_28 = arith.constant 0.000000e+00 : f32
    %41 = vector.broadcast %cst_28 : f32 to vector<128x512xf32>
    %42 = arith.cmpf oge, %40, %41 : vector<128x512xf32>
    %cst_29 = arith.constant 0.00999999977 : f32
    %43 = vector.broadcast %cst_29 : f32 to vector<128x512xf32>
    %44 = arith.mulf %43, %40 : vector<128x512xf32>
    %45 = arith.select %42, %40, %44 : vector<128x512xi1>, vector<128x512xf32>
    %46 = arith.truncf %45 : vector<128x512xf32> to vector<128x512xbf16>
    %47 = vector.shape_cast %46 : vector<128x512xbf16> to vector<1x128x512xbf16>
    %cst_30 = arith.constant dense<0xFF80> : vector<1x512xbf16>
    %48 = vector.multi_reduction <maximumf>, %47, %cst_30 [1] : vector<1x128x512xbf16> to vector<1x512xbf16>
    %49 = arith.extf %48 : vector<1x512xbf16> to vector<1x512xf32>
    %c0_i32 = arith.constant 0 : i32
    %50 = arith.cmpi eq, %arg1, %c0_i32 : i32
    %51 = arith.extui %50 : i1 to i32
    %c0_i32_31 = arith.constant 0 : i32
    %52 = arith.cmpi ne, %51, %c0_i32_31 : i32
    scf.if %52 {
      %c0_36 = arith.constant 0 : index
      %c0_37 = arith.constant 0 : index
      %59 = vector.load %arg18[%c0_36, %c0_37] : memref<1x512xf32, #tpu.memory_space<vmem>>, vector<1x512xf32>
      tpu.vector_store %arg18[%c0_36, %c0_37], %49 {strides = array<i32>} : memref<1x512xf32, #tpu.memory_space<vmem>>, vector<1x512xf32>,
    } else {
    }
    %c0_i32_32 = arith.constant 0 : i32
    %53 = arith.cmpi ne, %arg1, %c0_i32_32 : i32
    %54 = arith.extui %53 : i1 to i32
    %c0_i32_33 = arith.constant 0 : i32
    %55 = arith.cmpi ne, %54, %c0_i32_33 : i32
    scf.if %55 {
      %c0_36 = arith.constant 0 : index
      %c0_37 = arith.constant 0 : index
      %59 = vector.load %arg18[%c0_36, %c0_37] : memref<1x512xf32, #tpu.memory_space<vmem>>, vector<1x512xf32>
      %60 = arith.maximumf %59, %49 : vector<1x512xf32>
      %c0_38 = arith.constant 0 : index
      %c0_39 = arith.constant 0 : index
      %61 = vector.load %arg18[%c0_38, %c0_39] : memref<1x512xf32, #tpu.memory_space<vmem>>, vector<1x512xf32>
      tpu.vector_store %arg18[%c0_38, %c0_39], %60 {strides = array<i32>} : memref<1x512xf32, #tpu.memory_space<vmem>>, vector<1x512xf32>,
    } else {
    }
    %c0_i32_34 = arith.constant 0 : i32
    %56 = arith.cmpi eq, %arg1, %c0_i32_34 : i32
    %57 = arith.extui %56 : i1 to i32
    %c0_i32_35 = arith.constant 0 : i32
    %58 = arith.cmpi ne, %57, %c0_i32_35 : i32
    scf.if %58 {
      %c0_36 = arith.constant 0 : index
      %c0_37 = arith.constant 0 : index
      %59 = vector.load %arg18[%c0_36, %c0_37] : memref<1x512xf32, #tpu.memory_space<vmem>>, vector<1x512xf32>
      %60 = arith.truncf %59 : vector<1x512xf32> to vector<1x512xbf16>
      %c0_38 = arith.constant 0 : index
      %c0_39 = arith.constant 0 : index
      %61 = vector.load %arg11[%c0_38, %c0_39] : memref<512x256xbf16, #tpu.memory_space<vmem>>, vector<512x256xbf16>
      %cst_40 = arith.constant dense<0.000000e+00> : vector<1x256xf32>
      %62 = tpu.matmul %60, %61, %cst_40 {dimension_numbers = #tpu.dot_dimension_numbers<[1], [0], [0], [1], [0, 0, 1, 1], [], []>} : vector<1x512xbf16>, vector<512x256xbf16>, vector<1x256xf32> -> vector<1x256xf32>
      %c0_41 = arith.constant 0 : index
      %c0_42 = arith.constant 0 : index
      %63 = vector.load %arg12[%c0_41, %c0_42] : memref<1x256xf32, #tpu.memory_space<vmem>>, vector<1x256xf32>
      %64 = arith.addf %62, %63 : vector<1x256xf32>
      %cst_43 = arith.constant 0.000000e+00 : f32
      %65 = vector.broadcast %cst_43 : f32 to vector<1x256xf32>
      %66 = arith.cmpf oge, %64, %65 : vector<1x256xf32>
      %cst_44 = arith.constant 0.00999999977 : f32
      %67 = vector.broadcast %cst_44 : f32 to vector<1x256xf32>
      %68 = arith.mulf %67, %64 : vector<1x256xf32>
      %69 = arith.select %66, %64, %68 : vector<1x256xi1>, vector<1x256xf32>
      %70 = arith.truncf %69 : vector<1x256xf32> to vector<1x256xbf16>
      %c0_45 = arith.constant 0 : index
      %c0_46 = arith.constant 0 : index
      %71 = vector.load %arg13[%c0_45, %c0_46] : memref<256x64xbf16, #tpu.memory_space<vmem>>, vector<256x64xbf16>
      %cst_47 = arith.constant dense<0.000000e+00> : vector<1x64xf32>
      %72 = tpu.matmul %70, %71, %cst_47 {dimension_numbers = #tpu.dot_dimension_numbers<[1], [0], [0], [1], [0, 0, 1, 1], [], []>} : vector<1x256xbf16>, vector<256x64xbf16>, vector<1x64xf32> -> vector<1x64xf32>
      %c0_48 = arith.constant 0 : index
      %c0_49 = arith.constant 0 : index
      %73 = vector.load %arg14[%c0_48, %c0_49] : memref<1x64xf32, #tpu.memory_space<vmem>>, vector<1x64xf32>
      %74 = arith.addf %72, %73 : vector<1x64xf32>
      %cst_50 = arith.constant 0.000000e+00 : f32
      %75 = vector.broadcast %cst_50 : f32 to vector<1x64xf32>
      %76 = arith.cmpf oge, %74, %75 : vector<1x64xf32>
      %cst_51 = arith.constant 0.00999999977 : f32
      %77 = vector.broadcast %cst_51 : f32 to vector<1x64xf32>
      %78 = arith.mulf %77, %74 : vector<1x64xf32>
      %79 = arith.select %76, %74, %78 : vector<1x64xi1>, vector<1x64xf32>
      %c0_52 = arith.constant 0 : index
      %c0_53 = arith.constant 0 : index
      %80 = vector.load %arg15[%c0_52, %c0_53] : memref<64x1xf32, #tpu.memory_space<vmem>>, vector<64x1xf32>
      %cst_54 = arith.constant dense<0.000000e+00> : vector<1x1xf32>
      %81 = tpu.matmul %79, %80, %cst_54 {dimension_numbers = #tpu.dot_dimension_numbers<[1], [0], [0], [1], [0, 0, 1, 1], [], []>} : vector<1x64xf32>, vector<64x1xf32>, vector<1x1xf32> -> vector<1x1xf32>
      %c0_55 = arith.constant 0 : index
      %c0_56 = arith.constant 0 : index
      %82 = vector.load %arg16[%c0_55, %c0_56] : memref<1x1xf32, #tpu.memory_space<vmem>>, vector<1x1xf32>
      %83 = arith.addf %81, %82 : vector<1x1xf32>
      %c0_57 = arith.constant 0 : index
      %c0_58 = arith.constant 0 : index
      %c0_59 = arith.constant 0 : index
      %84 = vector.load %arg17[%c0_57, %c0_58, %c0_59] : memref<1x1x1xf32, #tpu.memory_space<vmem>>, vector<1x1x1xf32>
      %85 = vector.shape_cast %84 : vector<1x1x1xf32> to vector<1x1xf32>
      %86 = vector.shape_cast %83 : vector<1x1xf32> to vector<1x1x1xf32>
      tpu.vector_store %arg17[%c0_57, %c0_58, %c0_59], %86 {strides = array<i32>} : memref<1x1x1xf32, #tpu.memory_space<vmem>>, vector<1x1x1xf32>,
    } else {
    }
    return
  }
  func.func @transform_0(%arg0: i32, %arg1: i32) -> (i32, i32, i32, i32) {
    %c0_i32 = arith.constant 0 : i32
    %c0_i32_0 = arith.constant 0 : i32
    %c0_i32_1 = arith.constant 0 : i32
    return %arg0, %c0_i32, %arg1, %c0_i32_0 : i32, i32, i32, i32
  }
  func.func @transform_1(%arg0: i32, %arg1: i32) -> (i32, i32) {
    %c0_i32 = arith.constant 0 : i32
    %c0_i32_0 = arith.constant 0 : i32
    %c0_i32_1 = arith.constant 0 : i32
    return %c0_i32, %c0_i32_0 : i32, i32
  }
  func.func @transform_2(%arg0: i32, %arg1: i32) -> (i32, i32) {
    %c0_i32 = arith.constant 0 : i32
    %c0_i32_0 = arith.constant 0 : i32
    %c0_i32_1 = arith.constant 0 : i32
    return %c0_i32, %c0_i32_0 : i32, i32
  }
  func.func @transform_3(%arg0: i32, %arg1: i32) -> (i32, i32) {
    %c0_i32 = arith.constant 0 : i32
    %c0_i32_0 = arith.constant 0 : i32
    %c0_i32_1 = arith.constant 0 : i32
    return %c0_i32, %c0_i32_0 : i32, i32
  }
  func.func @transform_4(%arg0: i32, %arg1: i32) -> (i32, i32) {
    %c0_i32 = arith.constant 0 : i32
    %c0_i32_0 = arith.constant 0 : i32
    %c0_i32_1 = arith.constant 0 : i32
    return %c0_i32, %c0_i32_0 : i32, i32
  }
  func.func @transform_5(%arg0: i32, %arg1: i32) -> (i32, i32) {
    %c0_i32 = arith.constant 0 : i32
    %c0_i32_0 = arith.constant 0 : i32
    %c0_i32_1 = arith.constant 0 : i32
    return %c0_i32, %c0_i32_0 : i32, i32
  }
  func.func @transform_6(%arg0: i32, %arg1: i32) -> (i32, i32) {
    %c0_i32 = arith.constant 0 : i32
    %c0_i32_0 = arith.constant 0 : i32
    %c0_i32_1 = arith.constant 0 : i32
    return %c0_i32, %c0_i32_0 : i32, i32
  }
  func.func @transform_7(%arg0: i32, %arg1: i32) -> (i32, i32) {
    %c0_i32 = arith.constant 0 : i32
    %c0_i32_0 = arith.constant 0 : i32
    %c0_i32_1 = arith.constant 0 : i32
    return %c0_i32, %c0_i32_0 : i32, i32
  }
  func.func @transform_8(%arg0: i32, %arg1: i32) -> (i32, i32) {
    %c0_i32 = arith.constant 0 : i32
    %c0_i32_0 = arith.constant 0 : i32
    %c0_i32_1 = arith.constant 0 : i32
    return %c0_i32, %c0_i32_0 : i32, i32
  }
  func.func @transform_9(%arg0: i32, %arg1: i32) -> (i32, i32) {
    %c0_i32 = arith.constant 0 : i32
    %c0_i32_0 = arith.constant 0 : i32
    %c0_i32_1 = arith.constant 0 : i32
    return %c0_i32, %c0_i32_0 : i32, i32
  }
  func.func @transform_10(%arg0: i32, %arg1: i32) -> (i32, i32) {
    %c0_i32 = arith.constant 0 : i32
    %c0_i32_0 = arith.constant 0 : i32
    %c0_i32_1 = arith.constant 0 : i32
    return %c0_i32, %c0_i32_0 : i32, i32
  }
  func.func @transform_11(%arg0: i32, %arg1: i32) -> (i32, i32) {
    %c0_i32 = arith.constant 0 : i32
    %c0_i32_0 = arith.constant 0 : i32
    %c0_i32_1 = arith.constant 0 : i32
    return %c0_i32, %c0_i32_0 : i32, i32
  }
  func.func @transform_12(%arg0: i32, %arg1: i32) -> (i32, i32) {
    %c0_i32 = arith.constant 0 : i32
    %c0_i32_0 = arith.constant 0 : i32
    %c0_i32_1 = arith.constant 0 : i32
    return %c0_i32, %c0_i32_0 : i32, i32
  }
  func.func @transform_13(%arg0: i32, %arg1: i32) -> (i32, i32) {
    %c0_i32 = arith.constant 0 : i32
    %c0_i32_0 = arith.constant 0 : i32
    %c0_i32_1 = arith.constant 0 : i32
    return %c0_i32, %c0_i32_0 : i32, i32
  }
  func.func @transform_14(%arg0: i32, %arg1: i32) -> (i32, i32) {
    %c0_i32 = arith.constant 0 : i32
    %c0_i32_0 = arith.constant 0 : i32
    %c0_i32_1 = arith.constant 0 : i32
    return %c0_i32, %c0_i32_0 : i32, i32
  }
  func.func @transform_15(%arg0: i32, %arg1: i32) -> (i32, i32, i32) {
    %c0_i32 = arith.constant 0 : i32
    %c0_i32_0 = arith.constant 0 : i32
    %c0_i32_1 = arith.constant 0 : i32
    return %arg0, %c0_i32, %c0_i32_0 : i32, i32, i32
  }
}

</mosaic_0001>

<llo_original>
// kernel: point_discriminator_2.1
$region0: #{point_discriminator_2.1}
  #allocation0 [shape = 'u32[]', space=smem, size = 0x4, offset = 0x4, fixed_abs, tag = 'smem constant byte address 0x4 - core index']
  #allocation1 [shape = 'u32[144,128]{1,0:T(1,128)}', space=vmem, size = 0x12000, scoped, tag = 'internal scratch']
  #allocation2 [shape = 'f32[1,512]{1,0:T(1,128)}', space=vmem, size = 0x800, scoped, tag = 'scratch operand']
  #allocation3 [shape = 'f32[1,1]{1,0:T(1,128)S(1)}', space=vmem, size = 0x200, scoped, tag = 'scoped memory for point_discriminator_2.1']
  %s0 = inlined_call_operand.vmem [shape: f32[2,1,128,8], index: 0, kind: input, shape index: {}]
  %s1 = inlined_call_operand.vmem [shape: f32[8,64], index: 1, kind: input, shape index: {}]
  %s2 = inlined_call_operand.vmem [shape: f32[1,64], index: 2, kind: input, shape index: {}]
  %s3 = inlined_call_operand.hbm [shape: bf16[64,128], index: 3, kind: input, shape index: {}]
  %s4 = inlined_call_operand.hbm [shape: f32[1,128], index: 4, kind: input, shape index: {}]
  %s5 = inlined_call_operand.vmem [shape: bf16[128,256], index: 5, kind: input, shape index: {}]
  %s6 = inlined_call_operand.vmem [shape: f32[1,256], index: 6, kind: input, shape index: {}]
  %s7 = inlined_call_operand.vmem [shape: bf16[256,512], index: 7, kind: input, shape index: {}]
  %s8 = inlined_call_operand.hbm [shape: f32[1,512], index: 8, kind: input, shape index: {}]
  %s9 = inlined_call_operand.hbm [shape: bf16[512,256], index: 9, kind: input, shape index: {}]
  %s10 = inlined_call_operand.hbm [shape: f32[1,256], index: 10, kind: input, shape index: {}]
  %s11 = inlined_call_operand.vmem [shape: bf16[256,64], index: 11, kind: input, shape index: {}]
  %s12 = inlined_call_operand.vmem [shape: f32[1,64], index: 12, kind: input, shape index: {}]
  %s13 = inlined_call_operand.vmem [shape: f32[64,1], index: 13, kind: input, shape index: {}]
  %s14 = inlined_call_operand.<no memory space> [shape: f32[1,1], index: 14, kind: input, shape index: {}]
  %s15 = inlined_call_operand.vmem [shape: f32[2,1,1], index: 15, kind: output, shape index: {}]
  %s16 = sld [smem:[#allocation0]]
  $region125: #{point_discriminator_2.1} parent=0
    _
  %s18 = ssub.s32 1, %s16
  %s19 = scalar_select 0, %s18, %s16
  %v20 = vstv %s14
  %21 = vst [vmem:[#allocation3] sm:$0x1] %v20
  $region1: #{point_discriminator_2.1} parent=0
    #allocation4 [shape = 'u8[16384]{0}', space=vmem, size = 0x4000, scoped, tag = 'input window, operand 3, single buffered']
    #allocation5 [shape = 's32[2]{0}', space=sflag, size = 0x8, scoped, tag = 'scoped memory for point_discriminator_2.1']
    #allocation6 [shape = 'u8[512]{0}', space=vmem, size = 0x400, scoped, tag = 'input window, operand 4, single buffered']
    #allocation7 [shape = 's32[1]{0}', space=sflag, size = 0x4, scoped, tag = 'scoped memory for point_discriminator_2.1']
    #allocation8 [shape = 'u8[2048]{0}', space=vmem, size = 0x800, scoped, tag = 'input window, operand 8, single buffered']
    #allocation9 [shape = 'u8[262144]{0}', space=vmem, size = 0x40000, scoped, tag = 'input window, operand 9, single buffered']
    #allocation10 [shape = 's32[1]{0}', space=sflag, size = 0x4, scoped, tag = 'scoped memory for point_discriminator_2.1']
    #allocation11 [shape = 'u8[1024]{0}', space=vmem, size = 0x400, scoped, tag = 'input window, operand 10, single buffered']
    %22 = vsyncpa [#allocation5], 0
    %23 = vsyncpa [#allocation7], 0
    %24 = vsyncpa [#allocation10], 0
    loop: start=0, step=1, limit=4
    $region2: #{point_discriminator_2.1} parent=1 // loop_pre_header
      _
    $region3: #{point_discriminator_2.1} parent=1 // loop_header
      %s26 = sphi 0, %s30
      %p27 = scmp.ge.s32.totalorder %s26, 4
      %s33 = sphi 0, %s45
      %s34 = sphi 0, %s41
      %s35 = sphi 0, %s33
      %s36 = sphi 0, %s34
      %s37 = sphi 0, %s35
      %s38 = sphi 0, %s36
      %s50 = sphi 0, %s52
      %s53 = sphi 0, %s50
      %s54 = sphi 0, %s53
      %s70 = sphi 0, %s54
      %s74 = sphi 0, %s74
      %s76 = sphi 0, %s74
      %s77 = sphi 0, %s76
      %s91 = sphi 0, %s77
      %s95 = sphi 0, %s95
      %s97 = sphi 0, %s95
      %s98 = sphi 0, %s97
      %s112 = sphi 0, %s98
      %s116 = sphi 0, %s116
      %s118 = sphi 0, %s116
      %s119 = sphi 0, %s118
      %s133 = sphi 0, %s119
      %s137 = sphi 0, %s137
      %s139 = sphi 0, %s137
      %s140 = sphi 0, %s139
      %s154 = sphi 0, %s140
      %s158 = sphi 0, %s158
      %s160 = sphi 0, %s158
      %s161 = sphi 0, %s160
      %s175 = sphi 0, %s161
      %s179 = sphi 0, %s179
      %s181 = sphi 0, %s179
      %s182 = sphi 0, %s181
      %s196 = sphi 0, %s182
      %s200 = sphi 0, %s200
      %s202 = sphi 0, %s200
      %s203 = sphi 0, %s202
      %s217 = sphi 0, %s203
      %s221 = sphi 0, %s221
      %s223 = sphi 0, %s221
      %s224 = sphi 0, %s223
      %s238 = sphi 0, %s224
      %s242 = sphi 0, %s242
      %s244 = sphi 0, %s242
      %s245 = sphi 0, %s244
      %s259 = sphi 0, %s245
      %s263 = sphi 0, %s263
      %s265 = sphi 0, %s263
      %s266 = sphi 0, %s265
      %s280 = sphi 0, %s266
      %s284 = sphi 0, %s284
      %s286 = sphi 0, %s284
      %s287 = sphi 0, %s286
      %s301 = sphi 0, %s287
      %s305 = sphi 0, %s305
      %s307 = sphi 0, %s305
      %s308 = sphi 0, %s307
      %s322 = sphi 0, %s308
      %s326 = sphi 0, %s326
      %s328 = sphi 0, %s326
      %s329 = sphi 0, %s328
      %s343 = sphi 0, %s329
      %s347 = sphi 0, %s347
      %s349 = sphi 0, %s347
      %s350 = sphi 0, %s349
      %s364 = sphi 0, %s350
      %s370 = sphi 0, %s372
      %s373 = sphi 0, %s370
      %s374 = sphi 0, %s373
      %s390 = sphi 0, %s374
    $region4: #{point_discriminator_2.1} parent=1 // loop_header_branch
      %29 = sbr.rel (%p27) target = $region8
    $region5: #{point_discriminator_2.1} parent=1 // loop_body
      %s31 = ssub.s32 %s26, 1
      %s32 = ssub.s32 %s26, 2
      %s39 = sadd.s32 1, %s34
      %p40 = scmp.ge.s32.totalorder %s39, 1
      %s41 = scalar_select %p40, 0, %s39
      %s42 = sadd.s32 1, %s33
      %s43 = scalar_select %p40, %s42, %s33
      %p44 = scmp.ge.s32.totalorder %s43, 2
      %s45 = scalar_select %p44, 0, %s43
      %s46 = ssub.s32 %s33, %s45
      %s47 = ssub.s32 %s34, %s41
      %s48 = sor.u32 %s46, %s47
      %p49 = scmp.eq.s32.totalorder %s48, 0
      %s51 = sadd.s32 %s50, 1
      %s52 = scalar_select %p49, %s50, %s51
      %p55 = pneg %p49
      %p56 = scmp.eq.s32.totalorder %s26, 1
      %p57 = por %p55, %p56
      %p58 = scmp.ne.s32.totalorder %s50, %s53
      %p59 = scmp.eq.s32.totalorder %s26, 0
      %p60 = por %p58, %p59
      %p61 = scmp.ne.s32.totalorder %s50, %s53
      %p62 = scmp.eq.s32.totalorder %s31, 1
      %p63 = por %p61, %p62
      %p64 = scmp.ne.s32.totalorder %s53, %s54
      %p65 = scmp.eq.s32.totalorder %s31, 0
      %p66 = por %p64, %p65
      %p67 = scmp.ne.s32.totalorder %s53, %s54
      %p68 = scmp.eq.s32.totalorder %s32, 1
      %p69 = por %p67, %p68
      %p71 = scmp.ne.s32.totalorder %s54, %s70
      %p72 = scmp.eq.s32.totalorder %s32, 0
      %p73 = por %p71, %p72
      %s75 = sadd.s32 %s74, 1
      %p78 = scmp.eq.s32.totalorder %s26, 1
      %p79 = scmp.ne.s32.totalorder %s74, %s76
      %p80 = scmp.eq.s32.totalorder %s26, 0
      %p81 = por %p79, %p80
      %p82 = scmp.ne.s32.totalorder %s74, %s76
      %p83 = scmp.eq.s32.totalorder %s31, 1
      %p84 = por %p82, %p83
      %p85 = scmp.ne.s32.totalorder %s76, %s77
      %p86 = scmp.eq.s32.totalorder %s31, 0
      %p87 = por %p85, %p86
      %p88 = scmp.ne.s32.totalorder %s76, %s77
      %p89 = scmp.eq.s32.totalorder %s32, 1
      %p90 = por %p88, %p89
      %p92 = scmp.ne.s32.totalorder %s77, %s91
      %p93 = scmp.eq.s32.totalorder %s32, 0
      %p94 = por %p92, %p93
      %s96 = sadd.s32 %s95, 1
      %p99 = scmp.eq.s32.totalorder %s26, 1
      %p100 = scmp.ne.s32.totalorder %s95, %s97
      %p101 = scmp.eq.s32.totalorder %s26, 0
      %p102 = por %p100, %p101
      %p103 = scmp.ne.s32.totalorder %s95, %s97
      %p104 = scmp.eq.s32.totalorder %s31, 1
      %p105 = por %p103, %p104
      %p106 = scmp.ne.s32.totalorder %s97, %s98
      %p107 = scmp.eq.s32.totalorder %s31, 0
      %p108 = por %p106, %p107
      %p109 = scmp.ne.s32.totalorder %s97, %s98
      %p110 = scmp.eq.s32.totalorder %s32, 1
      %p111 = por %p109, %p110
      %p113 = scmp.ne.s32.totalorder %s98, %s112
      %p114 = scmp.eq.s32.totalorder %s32, 0
      %p115 = por %p113, %p114
      %s117 = sadd.s32 %s116, 1
      %p120 = scmp.eq.s32.totalorder %s26, 1
      %p121 = scmp.ne.s32.totalorder %s116, %s118
      %p122 = scmp.eq.s32.totalorder %s26, 0
      %p123 = por %p121, %p122
      %p124 = scmp.ne.s32.totalorder %s116, %s118
      %p125 = scmp.eq.s32.totalorder %s31, 1
      %p126 = por %p124, %p125
      %p127 = scmp.ne.s32.totalorder %s118, %s119
      %p128 = scmp.eq.s32.totalorder %s31, 0
      %p129 = por %p127, %p128
      %p130 = scmp.ne.s32.totalorder %s118, %s119
      %p131 = scmp.eq.s32.totalorder %s32, 1
      %p132 = por %p130, %p131
      %p134 = scmp.ne.s32.totalorder %s119, %s133
      %p135 = scmp.eq.s32.totalorder %s32, 0
      %p136 = por %p134, %p135
      %s138 = sadd.s32 %s137, 1
      %p141 = scmp.eq.s32.totalorder %s26, 1
      %p142 = scmp.ne.s32.totalorder %s137, %s139
      %p143 = scmp.eq.s32.totalorder %s26, 0
      %p144 = por %p142, %p143
      %p145 = scmp.ne.s32.totalorder %s137, %s139
      %p146 = scmp.eq.s32.totalorder %s31, 1
      %p147 = por %p145, %p146
      %p148 = scmp.ne.s32.totalorder %s139, %s140
      %p149 = scmp.eq.s32.totalorder %s31, 0
      %p150 = por %p148, %p149
      %p151 = scmp.ne.s32.totalorder %s139, %s140
      %p152 = scmp.eq.s32.totalorder %s32, 1
      %p153 = por %p151, %p152
      %p155 = scmp.ne.s32.totalorder %s140, %s154
      %p156 = scmp.eq.s32.totalorder %s32, 0
      %p157 = por %p155, %p156
      %s159 = sadd.s32 %s158, 1
      %p162 = scmp.eq.s32.totalorder %s26, 1
      %p163 = scmp.ne.s32.totalorder %s158, %s160
      %p164 = scmp.eq.s32.totalorder %s26, 0
      %p165 = por %p163, %p164
      %p166 = scmp.ne.s32.totalorder %s158, %s160
      %p167 = scmp.eq.s32.totalorder %s31, 1
      %p168 = por %p166, %p167
      %p169 = scmp.ne.s32.totalorder %s160, %s161
      %p170 = scmp.eq.s32.totalorder %s31, 0
      %p171 = por %p169, %p170
      %p172 = scmp.ne.s32.totalorder %s160, %s161
      %p173 = scmp.eq.s32.totalorder %s32, 1
      %p174 = por %p172, %p173
      %p176 = scmp.ne.s32.totalorder %s161, %s175
      %p177 = scmp.eq.s32.totalorder %s32, 0
      %p178 = por %p176, %p177
      %s180 = sadd.s32 %s179, 1
      %p183 = scmp.eq.s32.totalorder %s26, 1
      %p184 = scmp.ne.s32.totalorder %s179, %s181
      %p185 = scmp.eq.s32.totalorder %s26, 0
      %p186 = por %p184, %p185
      %p187 = scmp.ne.s32.totalorder %s179, %s181
      %p188 = scmp.eq.s32.totalorder %s31, 1
      %p189 = por %p187, %p188
      %p190 = scmp.ne.s32.totalorder %s181, %s182
      %p191 = scmp.eq.s32.totalorder %s31, 0
      %p192 = por %p190, %p191
      %p193 = scmp.ne.s32.totalorder %s181, %s182
      %p194 = scmp.eq.s32.totalorder %s32, 1
      %p195 = por %p193, %p194
      %p197 = scmp.ne.s32.totalorder %s182, %s196
      %p198 = scmp.eq.s32.totalorder %s32, 0
      %p199 = por %p197, %p198
      %s201 = sadd.s32 %s200, 1
      %p204 = scmp.eq.s32.totalorder %s26, 1
      %p205 = scmp.ne.s32.totalorder %s200, %s202
      %p206 = scmp.eq.s32.totalorder %s26, 0
      %p207 = por %p205, %p206
      %p208 = scmp.ne.s32.totalorder %s200, %s202
      %p209 = scmp.eq.s32.totalorder %s31, 1
      %p210 = por %p208, %p209
      %p211 = scmp.ne.s32.totalorder %s202, %s203
      %p212 = scmp.eq.s32.totalorder %s31, 0
      %p213 = por %p211, %p212
      %p214 = scmp.ne.s32.totalorder %s202, %s203
      %p215 = scmp.eq.s32.totalorder %s32, 1
      %p216 = por %p214, %p215
      %p218 = scmp.ne.s32.totalorder %s203, %s217
      %p219 = scmp.eq.s32.totalorder %s32, 0
      %p220 = por %p218, %p219
      %s222 = sadd.s32 %s221, 1
      %p225 = scmp.eq.s32.totalorder %s26, 1
      %p226 = scmp.ne.s32.totalorder %s221, %s223
      %p227 = scmp.eq.s32.totalorder %s26, 0
      %p228 = por %p226, %p227
      %p229 = scmp.ne.s32.totalorder %s221, %s223
      %p230 = scmp.eq.s32.totalorder %s31, 1
      %p231 = por %p229, %p230
      %p232 = scmp.ne.s32.totalorder %s223, %s224
      %p233 = scmp.eq.s32.totalorder %s31, 0
      %p234 = por %p232, %p233
      %p235 = scmp.ne.s32.totalorder %s223, %s224
      %p236 = scmp.eq.s32.totalorder %s32, 1
      %p237 = por %p235, %p236
      %p239 = scmp.ne.s32.totalorder %s224, %s238
      %p240 = scmp.eq.s32.totalorder %s32, 0
      %p241 = por %p239, %p240
      %s243 = sadd.s32 %s242, 1
      %p246 = scmp.eq.s32.totalorder %s26, 1
      %p247 = scmp.ne.s32.totalorder %s242, %s244
      %p248 = scmp.eq.s32.totalorder %s26, 0
      %p249 = por %p247, %p248
      %p250 = scmp.ne.s32.totalorder %s242, %s244
      %p251 = scmp.eq.s32.totalorder %s31, 1
      %p252 = por %p250, %p251
      %p253 = scmp.ne.s32.totalorder %s244, %s245
      %p254 = scmp.eq.s32.totalorder %s31, 0
      %p255 = por %p253, %p254
      %p256 = scmp.ne.s32.totalorder %s244, %s245
      %p257 = scmp.eq.s32.totalorder %s32, 1
      %p258 = por %p256, %p257
      %p260 = scmp.ne.s32.totalorder %s245, %s259
      %p261 = scmp.eq.s32.totalorder %s32, 0
      %p262 = por %p260, %p261
      %s264 = sadd.s32 %s263, 1
      %p267 = scmp.eq.s32.totalorder %s26, 1
      %p268 = scmp.ne.s32.totalorder %s263, %s265
      %p269 = scmp.eq.s32.totalorder %s26, 0
      %p270 = por %p268, %p269
      %p271 = scmp.ne.s32.totalorder %s263, %s265
      %p272 = scmp.eq.s32.totalorder %s31, 1
      %p273 = por %p271, %p272
      %p274 = scmp.ne.s32.totalorder %s265, %s266
      %p275 = scmp.eq.s32.totalorder %s31, 0
      %p276 = por %p274, %p275
      %p277 = scmp.ne.s32.totalorder %s265, %s266
      %p278 = scmp.eq.s32.totalorder %s32, 1
      %p279 = por %p277, %p278
      %p281 = scmp.ne.s32.totalorder %s266, %s280
      %p282 = scmp.eq.s32.totalorder %s32, 0
      %p283 = por %p281, %p282
      %s285 = sadd.s32 %s284, 1
      %p288 = scmp.eq.s32.totalorder %s26, 1
      %p289 = scmp.ne.s32.totalorder %s284, %s286
      %p290 = scmp.eq.s32.totalorder %s26, 0
      %p291 = por %p289, %p290
      %p292 = scmp.ne.s32.totalorder %s284, %s286
      %p293 = scmp.eq.s32.totalorder %s31, 1
      %p294 = por %p292, %p293
      %p295 = scmp.ne.s32.totalorder %s286, %s287
      %p296 = scmp.eq.s32.totalorder %s31, 0
      %p297 = por %p295, %p296
      %p298 = scmp.ne.s32.totalorder %s286, %s287
      %p299 = scmp.eq.s32.totalorder %s32, 1
      %p300 = por %p298, %p299
      %p302 = scmp.ne.s32.totalorder %s287, %s301
      %p303 = scmp.eq.s32.totalorder %s32, 0
      %p304 = por %p302, %p303
      %s306 = sadd.s32 %s305, 1
      %p309 = scmp.eq.s32.totalorder %s26, 1
      %p310 = scmp.ne.s32.totalorder %s305, %s307
      %p311 = scmp.eq.s32.totalorder %s26, 0
      %p312 = por %p310, %p311
      %p313 = scmp.ne.s32.totalorder %s305, %s307
      %p314 = scmp.eq.s32.totalorder %s31, 1
      %p315 = por %p313, %p314
      %p316 = scmp.ne.s32.totalorder %s307, %s308
      %p317 = scmp.eq.s32.totalorder %s31, 0
      %p318 = por %p316, %p317
      %p319 = scmp.ne.s32.totalorder %s307, %s308
      %p320 = scmp.eq.s32.totalorder %s32, 1
      %p321 = por %p319, %p320
      %p323 = scmp.ne.s32.totalorder %s308, %s322
      %p324 = scmp.eq.s32.totalorder %s32, 0
      %p325 = por %p323, %p324
      %s327 = sadd.s32 %s326, 1
      %p330 = scmp.eq.s32.totalorder %s26, 1
      %p331 = scmp.ne.s32.totalorder %s326, %s328
      %p332 = scmp.eq.s32.totalorder %s26, 0
      %p333 = por %p331, %p332
      %p334 = scmp.ne.s32.totalorder %s326, %s328
      %p335 = scmp.eq.s32.totalorder %s31, 1
      %p336 = por %p334, %p335
      %p337 = scmp.ne.s32.totalorder %s328, %s329
      %p338 = scmp.eq.s32.totalorder %s31, 0
      %p339 = por %p337, %p338
      %p340 = scmp.ne.s32.totalorder %s328, %s329
      %p341 = scmp.eq.s32.totalorder %s32, 1
      %p342 = por %p340, %p341
      %p344 = scmp.ne.s32.totalorder %s329, %s343
      %p345 = scmp.eq.s32.totalorder %s32, 0
      %p346 = por %p344, %p345
      %s348 = sadd.s32 %s347, 1
      %p351 = scmp.eq.s32.totalorder %s26, 1
      %p352 = scmp.ne.s32.totalorder %s347, %s349
      %p353 = scmp.eq.s32.totalorder %s26, 0
      %p354 = por %p352, %p353
      %p355 = scmp.ne.s32.totalorder %s347, %s349
      %p356 = scmp.eq.s32.totalorder %s31, 1
      %p357 = por %p355, %p356
      %p358 = scmp.ne.s32.totalorder %s349, %s350
      %p359 = scmp.eq.s32.totalorder %s31, 0
      %p360 = por %p358, %p359
      %p361 = scmp.ne.s32.totalorder %s349, %s350
      %p362 = scmp.eq.s32.totalorder %s32, 1
      %p363 = por %p361, %p362
      %p365 = scmp.ne.s32.totalorder %s350, %s364
      %p366 = scmp.eq.s32.totalorder %s32, 0
      %p367 = por %p365, %p366
      %s368 = ssub.s32 %s33, %s45
      %p369 = scmp.eq.s32.totalorder %s368, 0
      %s371 = sadd.s32 %s370, 1
      %s372 = scalar_select %p369, %s370, %s371
      %p375 = pneg %p369
      %p376 = scmp.eq.s32.totalorder %s26, 1
      %p377 = por %p375, %p376
      %p378 = scmp.ne.s32.totalorder %s370, %s373
      %p379 = scmp.eq.s32.totalorder %s26, 0
      %p380 = por %p378, %p379
      %p381 = scmp.ne.s32.totalorder %s370, %s373
      %p382 = scmp.eq.s32.totalorder %s31, 1
      %p383 = por %p381, %p382
      %p384 = scmp.ne.s32.totalorder %s373, %s374
      %p385 = scmp.eq.s32.totalorder %s31, 0
      %p386 = por %p384, %p385
      %p387 = scmp.ne.s32.totalorder %s373, %s374
      %p388 = scmp.eq.s32.totalorder %s32, 1
      %p389 = por %p387, %p388
      %p391 = scmp.ne.s32.totalorder %s374, %s390
      %p392 = scmp.eq.s32.totalorder %s32, 0
      %p393 = por %p391, %p392
      %p394 = scmp.le.s32.totalorder 1, %s26
      %p395 = scmp.lt.s32.totalorder %s26, 3
      %p396 = pnand %p394, %p395
      %p397 = pneg %p396
      // Predicated region
      $region9: #{point_discriminator_2.1} parent=5 // pred_check
        _
      $region10: #{point_discriminator_2.1} parent=5 // pred_check_branch
        %399 = sbr.rel (%p396) target = $region12
      $region11: #{point_discriminator_2.1} parent=5 // pred_region
        %s400 = ssub.s32 %s26, 1
        // Predicated region
        $region13: #{point_discriminator_2.1} parent=11 // pred_check
          %p401 = pneg %p87
        $region14: #{point_discriminator_2.1} parent=11 // pred_check_branch
          %403 = sbr.rel (%p401) target = $region16
        $region15: #{point_discriminator_2.1} parent=11 // pred_region
          _
        $region16: #{point_discriminator_2.1} parent=11 // pred_fallthru
          _
        // Predicated region
        $region17: #{point_discriminator_2.1} parent=11 // pred_check
          %p404 = pneg %p108
        $region18: #{point_discriminator_2.1} parent=11 // pred_check_branch
          %406 = sbr.rel (%p404) target = $region20
        $region19: #{point_discriminator_2.1} parent=11 // pred_region
          _
        $region20: #{point_discriminator_2.1} parent=11 // pred_fallthru
          _
        // Predicated region
        $region21: #{point_discriminator_2.1} parent=11 // pred_check
          %p407 = pneg %p129
        $region22: #{point_discriminator_2.1} parent=11 // pred_check_branch
          %409 = sbr.rel (%p407) target = $region24
        $region23: #{point_discriminator_2.1} parent=11 // pred_region
          %s411 = ssub.s32 512, 512
          %412 = vsyncadd [#allocation5], %s411
          %s413 = sshll.u32 [#allocation4], 4
          %s414 = int_to_ptr.vmem [resolvable:$true] %s413
          %419 = dma.hbm_to_vmem [thread:$0]  %s3, 512, %s414, [#allocation5], 64, 64, 4
        $region24: #{point_discriminator_2.1} parent=11 // pred_fallthru
          _
        // Predicated region
        $region25: #{point_discriminator_2.1} parent=11 // pred_check
          %p420 = pneg %p150
        $region26: #{point_discriminator_2.1} parent=11 // pred_check_branch
          %422 = sbr.rel (%p420) target = $region28
        $region27: #{point_discriminator_2.1} parent=11 // pred_region
          %s424 = ssub.s32 16, 16
          %425 = vsyncadd [#allocation7], %s424
          %s427 = sshll.u32 [#allocation6], 4
          %s428 = int_to_ptr.vmem [resolvable:$true] %s427
          %430 = dma.hbm_to_vmem [thread:$0]  %s4, 16, %s428, [#allocation7]
        $region28: #{point_discriminator_2.1} parent=11 // pred_fallthru
          _
        // Predicated region
        $region29: #{point_discriminator_2.1} parent=11 // pred_check
          %p431 = pneg %p171
        $region30: #{point_discriminator_2.1} parent=11 // pred_check_branch
          %433 = sbr.rel (%p431) target = $region32
        $region31: #{point_discriminator_2.1} parent=11 // pred_region
          _
        $region32: #{point_discriminator_2.1} parent=11 // pred_fallthru
          _
        // Predicated region
        $region33: #{point_discriminator_2.1} parent=11 // pred_check
          %p434 = pneg %p192
        $region34: #{point_discriminator_2.1} parent=11 // pred_check_branch
          %436 = sbr.rel (%p434) target = $region36
        $region35: #{point_discriminator_2.1} parent=11 // pred_region
          _
        $region36: #{point_discriminator_2.1} parent=11 // pred_fallthru
          _
        // Predicated region
        $region37: #{point_discriminator_2.1} parent=11 // pred_check
          %p437 = pneg %p213
        $region38: #{point_discriminator_2.1} parent=11 // pred_check_branch
          %439 = sbr.rel (%p437) target = $region40
        $region39: #{point_discriminator_2.1} parent=11 // pred_region
          _
        $region40: #{point_discriminator_2.1} parent=11 // pred_fallthru
          _
        // Predicated region
        $region41: #{point_discriminator_2.1} parent=11 // pred_check
          %p440 = pneg %p234
        $region42: #{point_discriminator_2.1} parent=11 // pred_check_branch
          %442 = sbr.rel (%p440) target = $region44
        $region43: #{point_discriminator_2.1} parent=11 // pred_region
          %s444 = ssub.s32 64, 64
          %445 = vsyncadd [#allocation7], %s444
          %s447 = sshll.u32 [#allocation8], 4
          %s448 = int_to_ptr.vmem [resolvable:$true] %s447
          %450 = dma.hbm_to_vmem [thread:$0]  %s8, 64, %s448, [#allocation7]
        $region44: #{point_discriminator_2.1} parent=11 // pred_fallthru
          _
        // Predicated region
        $region45: #{point_discriminator_2.1} parent=11 // pred_check
          %p451 = pneg %p255
        $region46: #{point_discriminator_2.1} parent=11 // pred_check_branch
          %453 = sbr.rel (%p451) target = $region48
        $region47: #{point_discriminator_2.1} parent=11 // pred_region
          %s455 = ssub.s32 8192, 8192
          %456 = vsyncadd [#allocation10], %s455
          %s457 = sshll.u32 [#allocation9], 4
          %s458 = int_to_ptr.vmem [resolvable:$true] %s457
          %463 = dma.hbm_to_vmem [thread:$0]  %s9, 8192, %s458, [#allocation10], 128, 128, 8
        $region48: #{point_discriminator_2.1} parent=11 // pred_fallthru
          _
        // Predicated region
        $region49: #{point_discriminator_2.1} parent=11 // pred_check
          %p464 = pneg %p276
        $region50: #{point_discriminator_2.1} parent=11 // pred_check_branch
          %466 = sbr.rel (%p464) target = $region52
        $region51: #{point_discriminator_2.1} parent=11 // pred_region
          %s468 = ssub.s32 32, 32
          %469 = vsyncadd [#allocation10], %s468
          %s471 = sshll.u32 [#allocation11], 4
          %s472 = int_to_ptr.vmem [resolvable:$true] %s471
          %474 = dma.hbm_to_vmem [thread:$0]  %s10, 32, %s472, [#allocation10]
        $region52: #{point_discriminator_2.1} parent=11 // pred_fallthru
          _
        // Predicated region
        $region53: #{point_discriminator_2.1} parent=11 // pred_check
          %p475 = pneg %p297
        $region54: #{point_discriminator_2.1} parent=11 // pred_check_branch
          %477 = sbr.rel (%p475) target = $region56
        $region55: #{point_discriminator_2.1} parent=11 // pred_region
          _
        $region56: #{point_discriminator_2.1} parent=11 // pred_fallthru
          _
        // Predicated region
        $region57: #{point_discriminator_2.1} parent=11 // pred_check
          %p478 = pneg %p318
        $region58: #{point_discriminator_2.1} parent=11 // pred_check_branch
          %480 = sbr.rel (%p478) target = $region60
        $region59: #{point_discriminator_2.1} parent=11 // pred_region
          _
        $region60: #{point_discriminator_2.1} parent=11 // pred_fallthru
          _
        // Predicated region
        $region61: #{point_discriminator_2.1} parent=11 // pred_check
          %p481 = pneg %p339
        $region62: #{point_discriminator_2.1} parent=11 // pred_check_branch
          %483 = sbr.rel (%p481) target = $region64
        $region63: #{point_discriminator_2.1} parent=11 // pred_region
          _
        $region64: #{point_discriminator_2.1} parent=11 // pred_fallthru
          _
        // Predicated region
        $region65: #{point_discriminator_2.1} parent=11 // pred_check
          %p484 = pneg %p360
        $region66: #{point_discriminator_2.1} parent=11 // pred_check_branch
          %486 = sbr.rel (%p484) target = $region68
        $region67: #{point_discriminator_2.1} parent=11 // pred_region
          _
        $region68: #{point_discriminator_2.1} parent=11 // pred_fallthru
          _
      $region12: #{point_discriminator_2.1} parent=5 // pred_fallthru
        _
      %p487 = scmp.lt.s32.totalorder %s26, 2
      // Predicated region
      $region69: #{point_discriminator_2.1} parent=5 // pred_check
        %p488 = pneg %p487
      $region70: #{point_discriminator_2.1} parent=5 // pred_check_branch
        %490 = sbr.rel (%p488) target = $region72
      $region71: #{point_discriminator_2.1} parent=5 // pred_region
        // Predicated region
        $region73: #{point_discriminator_2.1} parent=71 // pred_check
          %p491 = pneg %p60
        $region74: #{point_discriminator_2.1} parent=71 // pred_check_branch
          %493 = sbr.rel (%p491) target = $region76
        $region75: #{point_discriminator_2.1} parent=71 // pred_region
          %s494 = smul.u32 16, %s34
          %p495 = scmp.lt.s32.totalorder %s33, 1
          %s496 = scalar_select %p495, %s33, 1
          %p497 = scmp.lt.s32.totalorder %s494, 15
          %s498 = scalar_select %p497, %s494, 15
          %s499 = smul.addr %s496, 16
          %s500 = sadd.s32 %s498, %s499
          %s501 = smul.addr %s500, 8
          %s502 = scalar_lea.vmem %s0, %s501
          %s503 = smul.u32 16, %s34
        $region76: #{point_discriminator_2.1} parent=71 // pred_fallthru
          _
      $region72: #{point_discriminator_2.1} parent=5 // pred_fallthru
        _
      %p504 = scmp.le.s32.totalorder 1, %s26
      %p505 = scmp.lt.s32.totalorder %s26, 3
      %p506 = pnand %p504, %p505
      %p507 = pneg %p506
      // Predicated region
      $region77: #{point_discriminator_2.1} parent=5 // pred_check
        _
      $region78: #{point_discriminator_2.1} parent=5 // pred_check_branch
        %509 = sbr.rel (%p506) target = $region80
      $region79: #{point_discriminator_2.1} parent=5 // pred_region
        %s510 = ssub.s32 %s26, 1
        // Predicated region
        $region81: #{point_discriminator_2.1} parent=79 // pred_check
          %p511 = pneg %p129
        $region82: #{point_discriminator_2.1} parent=79 // pred_check_branch
          %513 = sbr.rel (%p511) target = $region84
        $region83: #{point_discriminator_2.1} parent=79 // pred_region
          %514 = dma.done [#allocation5], 512
        $region84: #{point_discriminator_2.1} parent=79 // pred_fallthru
          _
        // Predicated region
        $region85: #{point_discriminator_2.1} parent=79 // pred_check
          %p515 = pneg %p150
        $region86: #{point_discriminator_2.1} parent=79 // pred_check_branch
          %517 = sbr.rel (%p515) target = $region88
        $region87: #{point_discriminator_2.1} parent=79 // pred_region
          %518 = dma.done [#allocation7], 16
        $region88: #{point_discriminator_2.1} parent=79 // pred_fallthru
          _
        // Predicated region
        $region89: #{point_discriminator_2.1} parent=79 // pred_check
          %p519 = pneg %p234
        $region90: #{point_discriminator_2.1} parent=79 // pred_check_branch
          %521 = sbr.rel (%p519) target = $region92
        $region91: #{point_discriminator_2.1} parent=79 // pred_region
          %522 = dma.done [#allocation7], 64
        $region92: #{point_discriminator_2.1} parent=79 // pred_fallthru
          _
        // Predicated region
        $region93: #{point_discriminator_2.1} parent=79 // pred_check
          %p523 = pneg %p255
        $region94: #{point_discriminator_2.1} parent=79 // pred_check_branch
          %525 = sbr.rel (%p523) target = $region96
        $region95: #{point_discriminator_2.1} parent=79 // pred_region
          %526 = dma.done [#allocation10], 8192
        $region96: #{point_discriminator_2.1} parent=79 // pred_fallthru
          _
        // Predicated region
        $region97: #{point_discriminator_2.1} parent=79 // pred_check
          %p527 = pneg %p276
        $region98: #{point_discriminator_2.1} parent=79 // pred_check_branch
          %529 = sbr.rel (%p527) target = $region100
        $region99: #{point_discriminator_2.1} parent=79 // pred_region
          %530 = dma.done [#allocation10], 32
        $region100: #{point_discriminator_2.1} parent=79 // pred_fallthru
          _
        %s531 = smul.u32 16, %s36
        %p532 = scmp.lt.s32.totalorder %s35, 1
        %s533 = scalar_select %p532, %s35, 1
        %p534 = scmp.lt.s32.totalorder %s531, 15
        %s535 = scalar_select %p534, %s531, 15
        %s536 = smul.addr %s533, 16
        %s537 = sadd.s32 %s535, %s536
        %s538 = smul.addr %s537, 8
        %s539 = scalar_lea.vmem %s0, %s538
        %p540 = pneg %p66
        %p541 = pneg %p63
        %p542 = pneg %p87
        %p543 = pneg %p84
        %p544 = pneg %p108
        %p545 = pneg %p105
        %p546 = pneg %p129
        %p547 = pneg %p126
        %p548 = pneg %p150
        %p549 = pneg %p147
        %p550 = pneg %p171
        %p551 = pneg %p168
        %p552 = pneg %p192
        %p553 = pneg %p189
        %p554 = pneg %p213
        %p555 = pneg %p210
        %p556 = pneg %p234
        %p557 = pneg %p231
        %p558 = pneg %p255
        %p559 = pneg %p252
        %p560 = pneg %p276
        %p561 = pneg %p273
        %p562 = pneg %p297
        %p563 = pneg %p294
        %p564 = pneg %p318
        %p565 = pneg %p315
        %p566 = pneg %p339
        %p567 = pneg %p336
        %p568 = pneg %p360
        %p569 = pneg %p357
        %p570 = pneg %p386
        %p571 = pneg %p383
        %p572 = scmp.lt.s32.totalorder %s35, 1
        %s573 = scalar_select %p572, %s35, 1
        %s574 = scalar_lea.vmem %s15, %s573
        %s575 = smul.u32 16, %s36
        %p576 = scmp.lt.s32.totalorder %s35, 1
        %s577 = scalar_select %p576, %s35, 1
        %p578 = scmp.lt.s32.totalorder %s575, 15
        %s579 = scalar_select %p578, %s575, 15
        %s580 = smul.addr %s577, 16
        %s581 = sadd.s32 %s579, %s580
        %s582 = smul.addr %s581, 8
        %s583 = scalar_lea.vmem %s0, %s582
        %s584 = smul.u32 16, %s36
        %p585 = scmp.lt.s32.totalorder %s35, 1
        %s586 = scalar_select %p585, %s35, 1
        %s587 = scalar_lea.vmem %s15, %s586
        %v589 = vld [vmem:[%s583] sm:$0xff]
        %v590 = vld [vmem:[%s583 + $0x8] sm:$0xff]
        %v591 = vld [vmem:[%s583 + $0x10] sm:$0xff]
        %v592 = vld [vmem:[%s583 + $0x18] sm:$0xff]
        %v593 = vld [vmem:[%s583 + $0x20] sm:$0xff]
        %v594 = vld [vmem:[%s583 + $0x28] sm:$0xff]
        %v595 = vld [vmem:[%s583 + $0x30] sm:$0xff]
        %v596 = vld [vmem:[%s583 + $0x38] sm:$0xff]
        %v597 = vld [vmem:[%s583 + $0x40] sm:$0xff]
        %v598 = vld [vmem:[%s583 + $0x48] sm:$0xff]
        %v599 = vld [vmem:[%s583 + $0x50] sm:$0xff]
        %v600 = vld [vmem:[%s583 + $0x58] sm:$0xff]
        %v601 = vld [vmem:[%s583 + $0x60] sm:$0xff]
        %v602 = vld [vmem:[%s583 + $0x68] sm:$0xff]
        %v603 = vld [vmem:[%s583 + $0x70] sm:$0xff]
        %v604 = vld [vmem:[%s583 + $0x78] sm:$0xff]
        %v605 = vld [vmem:[%s1] sm:$0xff]
        %v606 = vld [vmem:[%s2] sm:$0x1]
        %v608 = vlaneseq
        %v609 = vshrl.u32 %v608, 7
        %v610 = vsub.s32 0, %v609
        %v611 = vrot.slane %v606, %v610
        %vm613 = vcmask 64512
        %v615 = vsel %vm613, %v589, 0
        %v618 = vsel %vm613, %v590, 0
        %v621 = vsel %vm613, %v591, 0
        %v624 = vsel %vm613, %v592, 0
        %v627 = vsel %vm613, %v593, 0
        %v630 = vsel %vm613, %v594, 0
        %v633 = vsel %vm613, %v595, 0
        %v636 = vsel %vm613, %v596, 0
        %v639 = vsel %vm613, %v597, 0
        %v642 = vsel %vm613, %v598, 0
        %v645 = vsel %vm613, %v599, 0
        %v648 = vsel %vm613, %v600, 0
        %v651 = vsel %vm613, %v601, 0
        %v654 = vsel %vm613, %v602, 0
        %v657 = vsel %vm613, %v603, 0
        %v660 = vsel %vm613, %v604, 0
        %662 = vmatprep.subr.mxu0 0.0
        %663 = vmatpush1.msra.mxu0 %v605
        %664 = vmatprep.subr.mxu0 0.0
        %665 = vmatpush1.msra.mxu0 0.0
        %666 = vmatprep.subr.mxu0 0.0
        %667 = vmatpush1.msra.mxu0 0.0
        %668 = vmatprep.subr.mxu0 0.0
        %669 = vmatpush1.msra.mxu0 0.0
        %670 = vmatprep.subr.mxu0 0.0
        %671 = vmatpush1.msra.mxu0 0.0
        %672 = vmatprep.subr.mxu0 0.0
        %673 = vmatpush1.msra.mxu0 0.0
        %674 = vmatprep.subr.mxu0 0.0
        %675 = vmatpush1.msra.mxu0 0.0
        %676 = vmatprep.subr.mxu0 0.0
        %677 = vmatpush1.msra.mxu0 0.0
        %678 = vmatprep.subr.mxu0 0.0
        %679 = vmatpush1.msra.mxu0 0.0
        %680 = vmatprep.subr.mxu0 0.0
        %681 = vmatpush1.msra.mxu0 0.0
        %682 = vmatprep.subr.mxu0 0.0
        %683 = vmatpush1.msra.mxu0 0.0
        %684 = vmatprep.subr.mxu0 0.0
        %685 = vmatpush1.msra.mxu0 0.0
        %686 = vmatprep.subr.mxu0 0.0
        %687 = vmatpush1.msra.mxu0 0.0
        %688 = vmatprep.subr.mxu0 0.0
        %689 = vmatpush1.msra.mxu0 0.0
        %690 = vmatprep.subr.mxu0 0.0
        %691 = vmatpush1.msra.mxu0 0.0
        %692 = vmatprep.subr.mxu0 0.0
        %693 = vmatpush1.msra.mxu0 0.0
        %694 = vmatprep.subr.mxu0 0.0
        %695 = vmatpush1.msra.mxu0 0.0
        %696 = vmatprep.subr.mxu0 0.0
        %697 = vmatpush1.msra.mxu0 0.0
        %698 = vmatprep.subr.mxu0 0.0
        %699 = vmatpush1.msra.mxu0 0.0
        %700 = vmatprep.subr.mxu0 0.0
        %701 = vmatpush1.msra.mxu0 0.0
        %702 = vmatprep.subr.mxu0 0.0
        %703 = vmatpush1.msra.mxu0 0.0
        %704 = vmatprep.subr.mxu0 0.0
        %705 = vmatpush1.msra.mxu0 0.0
        %706 = vmatprep.subr.mxu0 0.0
        %707 = vmatpush1.msra.mxu0 0.0
        %708 = vmatprep.subr.mxu0 0.0
        %709 = vmatpush1.msra.mxu0 0.0
        %710 = vmatprep.subr.mxu0 0.0
        %711 = vmatpush1.msra.mxu0 0.0
        %712 = vmatprep.subr.mxu0 0.0
        %713 = vmatpush1.msra.mxu0 0.0
        %714 = vmatprep.subr.mxu0 0.0
        %715 = vmatpush1.msra.mxu0 0.0
        %716 = vmatprep.subr.mxu0 0.0
        %717 = vmatpush1.msra.mxu0 0.0
        %718 = vmatprep.subr.mxu0 0.0
        %719 = vmatpush1.msra.mxu0 0.0
        %720 = vmatprep.subr.mxu0 0.0
        %721 = vmatpush1.msra.mxu0 0.0
        %722 = vmatprep.subr.mxu0 0.0
        %723 = vmatpush1.msra.mxu0 0.0
        %724 = vmatprep.subr.mxu0 0.0
        %725 = vmatpush1.msra.mxu0 0.0
        %726 = vmatprep.mubr.f32.mxu0 0.0
        %727 = vmatmul.mubr.f32.gmra.mrb[0].mxu0 %v615
        %v728 = vpop.f32.mrb[0].mxu0
        %v729 = vadd.f32 %v611, %v728
        %v730 = vpop.f32.mrb[0].mxu0
        %731 = vmatprep.mubr.f32.mxu0 0.0
        %732 = vmatmul.mubr.f32.gmra.mrb[0].mxu0 %v618
        %v733 = vpop.f32.mrb[0].mxu0
        %v734 = vadd.f32 %v611, %v733
        %v735 = vpop.f32.mrb[0].mxu0
        %736 = vmatprep.mubr.f32.mxu0 0.0
        %737 = vmatmul.mubr.f32.gmra.mrb[0].mxu0 %v621
        %v738 = vpop.f32.mrb[0].mxu0
        %v739 = vadd.f32 %v611, %v738
        %v740 = vpop.f32.mrb[0].mxu0
        %741 = vmatprep.mubr.f32.mxu0 0.0
        %742 = vmatmul.mubr.f32.gmra.mrb[0].mxu0 %v624
        %v743 = vpop.f32.mrb[0].mxu0
        %v744 = vadd.f32 %v611, %v743
        %v745 = vpop.f32.mrb[0].mxu0
        %746 = vmatprep.mubr.f32.mxu0 0.0
        %747 = vmatmul.mubr.f32.gmra.mrb[0].mxu0 %v627
        %v748 = vpop.f32.mrb[0].mxu0
        %v749 = vadd.f32 %v611, %v748
        %v750 = vpop.f32.mrb[0].mxu0
        %751 = vmatprep.mubr.f32.mxu0 0.0
        %752 = vmatmul.mubr.f32.gmra.mrb[0].mxu0 %v630
        %v753 = vpop.f32.mrb[0].mxu0
        %v754 = vadd.f32 %v611, %v753
        %v755 = vpop.f32.mrb[0].mxu0
        %756 = vmatprep.mubr.f32.mxu0 0.0
        %757 = vmatmul.mubr.f32.gmra.mrb[0].mxu0 %v633
        %v758 = vpop.f32.mrb[0].mxu0
        %v759 = vadd.f32 %v611, %v758
        %v760 = vpop.f32.mrb[0].mxu0
        %761 = vmatprep.mubr.f32.mxu0 0.0
        %762 = vmatmul.mubr.f32.gmra.mrb[0].mxu0 %v636
        %v763 = vpop.f32.mrb[0].mxu0
        %v764 = vadd.f32 %v611, %v763
        %v765 = vpop.f32.mrb[0].mxu0
        %766 = vmatprep.mubr.f32.mxu0 0.0
        %767 = vmatmul.mubr.f32.gmra.mrb[0].mxu0 %v639
        %v768 = vpop.f32.mrb[0].mxu0
        %v769 = vadd.f32 %v611, %v768
        %v770 = vpop.f32.mrb[0].mxu0
        %771 = vmatprep.mubr.f32.mxu0 0.0
        %772 = vmatmul.mubr.f32.gmra.mrb[0].mxu0 %v642
        %v773 = vpop.f32.mrb[0].mxu0
        %v774 = vadd.f32 %v611, %v773
        %v775 = vpop.f32.mrb[0].mxu0
        %776 = vmatprep.mubr.f32.mxu0 0.0
        %777 = vmatmul.mubr.f32.gmra.mrb[0].mxu0 %v645
        %v778 = vpop.f32.mrb[0].mxu0
        %v779 = vadd.f32 %v611, %v778
        %v780 = vpop.f32.mrb[0].mxu0
        %781 = vmatprep.mubr.f32.mxu0 0.0
        %782 = vmatmul.mubr.f32.gmra.mrb[0].mxu0 %v648
        %v783 = vpop.f32.mrb[0].mxu0
        %v784 = vadd.f32 %v611, %v783
        %v785 = vpop.f32.mrb[0].mxu0
        %786 = vmatprep.mubr.f32.mxu0 0.0
        %787 = vmatmul.mubr.f32.gmra.mrb[0].mxu0 %v651
        %v788 = vpop.f32.mrb[0].mxu0
        %v789 = vadd.f32 %v611, %v788
        %v790 = vpop.f32.mrb[0].mxu0
        %791 = vmatprep.mubr.f32.mxu0 0.0
        %792 = vmatmul.mubr.f32.gmra.mrb[0].mxu0 %v654
        %v793 = vpop.f32.mrb[0].mxu0
        %v794 = vadd.f32 %v611, %v793
        %v795 = vpop.f32.mrb[0].mxu0
        %796 = vmatprep.mubr.f32.mxu0 0.0
        %797 = vmatmul.mubr.f32.gmra.mrb[0].mxu0 %v657
        %v798 = vpop.f32.mrb[0].mxu0
        %v799 = vadd.f32 %v611, %v798
        %v800 = vpop.f32.mrb[0].mxu0
        %801 = vmatprep.mubr.f32.mxu0 0.0
        %802 = vmatmul.mubr.f32.gmra.mrb[0].mxu0 %v660
        %v803 = vpop.f32.mrb[0].mxu0
        %v804 = vadd.f32 %v611, %v803
        %v805 = vpop.f32.mrb[0].mxu0
        %806 = vdwg.mxu0
        %vm807 = vcmp.ge.f32.partialorder %v729, 0.0
        %vm808 = vcmp.ge.f32.partialorder %v734, 0.0
        %vm809 = vcmp.ge.f32.partialorder %v739, 0.0
        %vm810 = vcmp.ge.f32.partialorder %v744, 0.0
        %vm811 = vcmp.ge.f32.partialorder %v749, 0.0
        %vm812 = vcmp.ge.f32.partialorder %v754, 0.0
        %vm813 = vcmp.ge.f32.partialorder %v759, 0.0
        %vm814 = vcmp.ge.f32.partialorder %v764, 0.0
        %vm815 = vcmp.ge.f32.partialorder %v769, 0.0
        %vm816 = vcmp.ge.f32.partialorder %v774, 0.0
        %vm817 = vcmp.ge.f32.partialorder %v779, 0.0
        %vm818 = vcmp.ge.f32.partialorder %v784, 0.0
        %vm819 = vcmp.ge.f32.partialorder %v789, 0.0
        %vm820 = vcmp.ge.f32.partialorder %v794, 0.0
        %vm821 = vcmp.ge.f32.partialorder %v799, 0.0
        %vm822 = vcmp.ge.f32.partialorder %v804, 0.0
        %v823 = vmul.f32 %v729, 0.01
        %v824 = vmul.f32 %v734, 0.01
        %v825 = vmul.f32 %v739, 0.01
        %v826 = vmul.f32 %v744, 0.01
        %v827 = vmul.f32 %v749, 0.01
        %v828 = vmul.f32 %v754, 0.01
        %v829 = vmul.f32 %v759, 0.01
        %v830 = vmul.f32 %v764, 0.01
        %v831 = vmul.f32 %v769, 0.01
        %v832 = vmul.f32 %v774, 0.01
        %v833 = vmul.f32 %v779, 0.01
        %v834 = vmul.f32 %v784, 0.01
        %v835 = vmul.f32 %v789, 0.01
        %v836 = vmul.f32 %v794, 0.01
        %v837 = vmul.f32 %v799, 0.01
        %v838 = vmul.f32 %v804, 0.01
        %v839 = vsel %vm807, %v729, %v823
        %v840 = vsel %vm808, %v734, %v824
        %v841 = vsel %vm809, %v739, %v825
        %v842 = vsel %vm810, %v744, %v826
        %v843 = vsel %vm811, %v749, %v827
        %v844 = vsel %vm812, %v754, %v828
        %v845 = vsel %vm813, %v759, %v829
        %v846 = vsel %vm814, %v764, %v830
        %v847 = vsel %vm815, %v769, %v831
        %v848 = vsel %vm816, %v774, %v832
        %v849 = vsel %vm817, %v779, %v833
        %v850 = vsel %vm818, %v784, %v834
        %v851 = vsel %vm819, %v789, %v835
        %v852 = vsel %vm820, %v794, %v836
        %v853 = vsel %vm821, %v799, %v837
        %v854 = vsel %vm822, %v804, %v838
        %v855 = vpack.c.bf16 %v840, %v839
        %v856 = vpack.c.bf16 %v842, %v841
        %v857 = vpack.c.bf16 %v844, %v843
        %v858 = vpack.c.bf16 %v846, %v845
        %v859 = vpack.c.bf16 %v848, %v847
        %v860 = vpack.c.bf16 %v850, %v849
        %v861 = vpack.c.bf16 %v852, %v851
        %v862 = vpack.c.bf16 %v854, %v853
        %v863 = vld [vmem:[#allocation4] sm:$0xf]
        %v864 = vld [vmem:[#allocation4 + $0x4] sm:$0xf]
        %v865 = vld [vmem:[#allocation4 + $0x8] sm:$0xf]
        %v866 = vld [vmem:[#allocation4 + $0xc] sm:$0xf]
        %v867 = vld [vmem:[#allocation4 + $0x10] sm:$0xf]
        %v868 = vld [vmem:[#allocation4 + $0x14] sm:$0xf]
        %v869 = vld [vmem:[#allocation4 + $0x18] sm:$0xf]
        %v870 = vld [vmem:[#allocation4 + $0x1c] sm:$0xf]
        %v871 = vld [vmem:[#allocation6] sm:$0x1]
        %v873 = vlaneseq
        %v874 = vshrl.u32 %v873, 7
        %v875 = vsub.s32 0, %v874
        %v876 = vrot.slane %v871, %v875
        %v886 = vunpack.c.l.b16 %v863
        %v887 = vunpack.c.l.b16 %v864
        %v888 = vunpack.c.l.b16 %v865
        %v889 = vunpack.c.l.b16 %v866
        %v890 = vunpack.c.l.b16 %v867
        %v891 = vunpack.c.l.b16 %v868
        %v892 = vunpack.c.l.b16 %v869
        %v893 = vunpack.c.l.b16 %v870
        %v894 = vpack.c.b16 %v887, %v886
        %v895 = vpack.c.b16 %v889, %v888
        %v896 = vpack.c.b16 %v891, %v890
        %v897 = vpack.c.b16 %v893, %v892
        %vm902 = vcmask 523264
        %v904 = vsel %vm902, %v855, 0
        %v907 = vsel %vm902, %v856, 0
        %v910 = vsel %vm902, %v857, 0
        %v913 = vsel %vm902, %v858, 0
        %v916 = vsel %vm902, %v859, 0
        %v919 = vsel %vm902, %v860, 0
        %v922 = vsel %vm902, %v861, 0
        %v925 = vsel %vm902, %v862, 0
        %927 = vmatprep.subr.bf16.mxu0 0
        %928 = vmatpush1.bf16.msra.mxu0 %v894
        %929 = vmatprep.subr.bf16.mxu0 0
        %930 = vmatpush1.bf16.msra.mxu0 %v895
        %931 = vmatprep.subr.bf16.mxu0 0
        %932 = vmatpush1.bf16.msra.mxu0 %v896
        %933 = vmatprep.subr.bf16.mxu0 0
        %934 = vmatpush1.bf16.msra.mxu0 %v897
        %935 = vmatprep.subr.bf16.mxu0 0
        %936 = vmatpush1.bf16.msra.mxu0 0
        %937 = vmatprep.subr.bf16.mxu0 0
        %938 = vmatpush1.bf16.msra.mxu0 0
        %939 = vmatprep.subr.bf16.mxu0 0
        %940 = vmatpush1.bf16.msra.mxu0 0
        %941 = vmatprep.subr.bf16.mxu0 0
        %942 = vmatpush1.bf16.msra.mxu0 0
        %943 = vmatprep.subr.bf16.mxu0 0
        %944 = vmatpush1.bf16.msra.mxu0 0
        %945 = vmatprep.subr.bf16.mxu0 0
        %946 = vmatpush1.bf16.msra.mxu0 0
        %947 = vmatprep.subr.bf16.mxu0 0
        %948 = vmatpush1.bf16.msra.mxu0 0
        %949 = vmatprep.subr.bf16.mxu0 0
        %950 = vmatpush1.bf16.msra.mxu0 0
        %951 = vmatprep.subr.bf16.mxu0 0
        %952 = vmatpush1.bf16.msra.mxu0 0
        %953 = vmatprep.subr.bf16.mxu0 0
        %954 = vmatpush1.bf16.msra.mxu0 0
        %955 = vmatprep.subr.bf16.mxu0 0
        %956 = vmatpush1.bf16.msra.mxu0 0
        %957 = vmatprep.subr.bf16.mxu0 0
        %958 = vmatpush1.bf16.msra.mxu0 0
        %959 = vmatprep.mubr.bf16.mxu0 0
        %960 = vmatmul.mubr.bf16.gmra.mrb[0].mxu0 %v904
        %v961 = vpop.f32.mrb[0].mxu0
        %v962 = vadd.f32 %v876, %v961
        %v963 = vpop.f32.mrb[0].mxu0
        %v964 = vpop.f32.mrb[0].mxu0
        %v965 = vadd.f32 %v876, %v964
        %v966 = vpop.f32.mrb[0].mxu0
        %967 = vmatprep.mubr.bf16.mxu0 0
        %968 = vmatmul.mubr.bf16.gmra.mrb[0].mxu0 %v907
        %v969 = vpop.f32.mrb[0].mxu0
        %v970 = vadd.f32 %v876, %v969
        %v971 = vpop.f32.mrb[0].mxu0
        %v972 = vpop.f32.mrb[0].mxu0
        %v973 = vadd.f32 %v876, %v972
        %v974 = vpop.f32.mrb[0].mxu0
        %975 = vmatprep.mubr.bf16.mxu0 0
        %976 = vmatmul.mubr.bf16.gmra.mrb[0].mxu0 %v910
        %v977 = vpop.f32.mrb[0].mxu0
        %v978 = vadd.f32 %v876, %v977
        %v979 = vpop.f32.mrb[0].mxu0
        %v980 = vpop.f32.mrb[0].mxu0
        %v981 = vadd.f32 %v876, %v980
        %v982 = vpop.f32.mrb[0].mxu0
        %983 = vmatprep.mubr.bf16.mxu0 0
        %984 = vmatmul.mubr.bf16.gmra.mrb[0].mxu0 %v913
        %v985 = vpop.f32.mrb[0].mxu0
        %v986 = vadd.f32 %v876, %v985
        %v987 = vpop.f32.mrb[0].mxu0
        %v988 = vpop.f32.mrb[0].mxu0
        %v989 = vadd.f32 %v876, %v988
        %v990 = vpop.f32.mrb[0].mxu0
        %991 = vmatprep.mubr.bf16.mxu0 0
        %992 = vmatmul.mubr.bf16.gmra.mrb[0].mxu0 %v916
        %v993 = vpop.f32.mrb[0].mxu0
        %v994 = vadd.f32 %v876, %v993
        %v995 = vpop.f32.mrb[0].mxu0
        %v996 = vpop.f32.mrb[0].mxu0
        %v997 = vadd.f32 %v876, %v996
        %v998 = vpop.f32.mrb[0].mxu0
        %999 = vmatprep.mubr.bf16.mxu0 0
        %1000 = vmatmul.mubr.bf16.gmra.mrb[0].mxu0 %v919
        %v1001 = vpop.f32.mrb[0].mxu0
        %v1002 = vadd.f32 %v876, %v1001
        %v1003 = vpop.f32.mrb[0].mxu0
        %v1004 = vpop.f32.mrb[0].mxu0
        %v1005 = vadd.f32 %v876, %v1004
        %v1006 = vpop.f32.mrb[0].mxu0
        %1007 = vmatprep.mubr.bf16.mxu0 0
        %1008 = vmatmul.mubr.bf16.gmra.mrb[0].mxu0 %v922
        %v1009 = vpop.f32.mrb[0].mxu0
        %v1010 = vadd.f32 %v876, %v1009
        %v1011 = vpop.f32.mrb[0].mxu0
        %v1012 = vpop.f32.mrb[0].mxu0
        %v1013 = vadd.f32 %v876, %v1012
        %v1014 = vpop.f32.mrb[0].mxu0
        %1015 = vmatprep.mubr.bf16.mxu0 0
        %1016 = vmatmul.mubr.bf16.gmra.mrb[0].mxu0 %v925
        %v1017 = vpop.f32.mrb[0].mxu0
        %v1018 = vadd.f32 %v876, %v1017
        %v1019 = vpop.f32.mrb[0].mxu0
        %v1020 = vpop.f32.mrb[0].mxu0
        %v1021 = vadd.f32 %v876, %v1020
        %v1022 = vpop.f32.mrb[0].mxu0
        %1023 = vdwg.mxu0
        %vm1024 = vcmp.ge.f32.partialorder %v962, 0.0
        %vm1025 = vcmp.ge.f32.partialorder %v965, 0.0
        %vm1026 = vcmp.ge.f32.partialorder %v970, 0.0
        %vm1027 = vcmp.ge.f32.partialorder %v973, 0.0
        %vm1028 = vcmp.ge.f32.partialorder %v978, 0.0
        %vm1029 = vcmp.ge.f32.partialorder %v981, 0.0
        %vm1030 = vcmp.ge.f32.partialorder %v986, 0.0
        %vm1031 = vcmp.ge.f32.partialorder %v989, 0.0
        %vm1032 = vcmp.ge.f32.partialorder %v994, 0.0
        %vm1033 = vcmp.ge.f32.partialorder %v997, 0.0
        %vm1034 = vcmp.ge.f32.partialorder %v1002, 0.0
        %vm1035 = vcmp.ge.f32.partialorder %v1005, 0.0
        %vm1036 = vcmp.ge.f32.partialorder %v1010, 0.0
        %vm1037 = vcmp.ge.f32.partialorder %v1013, 0.0
        %vm1038 = vcmp.ge.f32.partialorder %v1018, 0.0
        %vm1039 = vcmp.ge.f32.partialorder %v1021, 0.0
        %v1040 = vmul.f32 %v962, 0.01
        %v1041 = vmul.f32 %v965, 0.01
        %v1042 = vmul.f32 %v970, 0.01
        %v1043 = vmul.f32 %v973, 0.01
        %v1044 = vmul.f32 %v978, 0.01
        %v1045 = vmul.f32 %v981, 0.01
        %v1046 = vmul.f32 %v986, 0.01
        %v1047 = vmul.f32 %v989, 0.01
        %v1048 = vmul.f32 %v994, 0.01
        %v1049 = vmul.f32 %v997, 0.01
        %v1050 = vmul.f32 %v1002, 0.01
        %v1051 = vmul.f32 %v1005, 0.01
        %v1052 = vmul.f32 %v1010, 0.01
        %v1053 = vmul.f32 %v1013, 0.01
        %v1054 = vmul.f32 %v1018, 0.01
        %v1055 = vmul.f32 %v1021, 0.01
        %v1056 = vsel %vm1024, %v962, %v1040
        %v1057 = vsel %vm1025, %v965, %v1041
        %v1058 = vsel %vm1026, %v970, %v1042
        %v1059 = vsel %vm1027, %v973, %v1043
        %v1060 = vsel %vm1028, %v978, %v1044
        %v1061 = vsel %vm1029, %v981, %v1045
        %v1062 = vsel %vm1030, %v986, %v1046
        %v1063 = vsel %vm1031, %v989, %v1047
        %v1064 = vsel %vm1032, %v994, %v1048
        %v1065 = vsel %vm1033, %v997, %v1049
        %v1066 = vsel %vm1034, %v1002, %v1050
        %v1067 = vsel %vm1035, %v1005, %v1051
        %v1068 = vsel %vm1036, %v1010, %v1052
        %v1069 = vsel %vm1037, %v1013, %v1053
        %v1070 = vsel %vm1038, %v1018, %v1054
        %v1071 = vsel %vm1039, %v1021, %v1055
        %v1072 = vpack.c.bf16 %v1057, %v1056
        %v1073 = vpack.c.bf16 %v1059, %v1058
        %v1074 = vpack.c.bf16 %v1061, %v1060
        %v1075 = vpack.c.bf16 %v1063, %v1062
        %v1076 = vpack.c.bf16 %v1065, %v1064
        %v1077 = vpack.c.bf16 %v1067, %v1066
        %v1078 = vpack.c.bf16 %v1069, %v1068
        %v1079 = vpack.c.bf16 %v1071, %v1070
        %v1080 = vld [vmem:[%s5] sm:$0xff]
        %v1081 = vld [vmem:[%s5 + $0x8] sm:$0xff]
        %v1082 = vld [vmem:[%s5 + $0x10] sm:$0xff]
        %v1083 = vld [vmem:[%s5 + $0x18] sm:$0xff]
        %v1084 = vld [vmem:[%s5 + $0x20] sm:$0xff]
        %v1085 = vld [vmem:[%s5 + $0x28] sm:$0xff]
        %v1086 = vld [vmem:[%s5 + $0x30] sm:$0xff]
        %v1087 = vld [vmem:[%s5 + $0x38] sm:$0xff]
        %v1088 = vld [vmem:[%s5 + $0x40] sm:$0xff]
        %v1089 = vld [vmem:[%s5 + $0x48] sm:$0xff]
        %v1090 = vld [vmem:[%s5 + $0x50] sm:$0xff]
        %v1091 = vld [vmem:[%s5 + $0x58] sm:$0xff]
        %v1092 = vld [vmem:[%s5 + $0x60] sm:$0xff]
        %v1093 = vld [vmem:[%s5 + $0x68] sm:$0xff]
        %v1094 = vld [vmem:[%s5 + $0x70] sm:$0xff]
        %v1095 = vld [vmem:[%s5 + $0x78] sm:$0xff]
        %v1096 = vld [vmem:[%s6] sm:$0x3]
        %v1098 = vlaneseq
        %v1099 = vshrl.u32 %v1098, 7
        %v1100 = vsub.s32 0, %v1099
        %v1101 = vrot.slane %v1096, %v1100
        %v1102 = vlaneseq
        %v1103 = vshrl.u32 %v1102, 7
        %v1104 = vsub.s32 1, %v1103
        %v1105 = vrot.slane %v1096, %v1104
        %v1124 = vunpack.c.l.b16 %v1080
        %v1125 = vunpack.c.h.b16 %v1080
        %v1126 = vunpack.c.l.b16 %v1081
        %v1127 = vunpack.c.h.b16 %v1081
        %v1128 = vunpack.c.l.b16 %v1082
        %v1129 = vunpack.c.h.b16 %v1082
        %v1130 = vunpack.c.l.b16 %v1083
        %v1131 = vunpack.c.h.b16 %v1083
        %v1132 = vunpack.c.l.b16 %v1084
        %v1133 = vunpack.c.h.b16 %v1084
        %v1134 = vunpack.c.l.b16 %v1085
        %v1135 = vunpack.c.h.b16 %v1085
        %v1136 = vunpack.c.l.b16 %v1086
        %v1137 = vunpack.c.h.b16 %v1086
        %v1138 = vunpack.c.l.b16 %v1087
        %v1139 = vunpack.c.h.b16 %v1087
        %v1140 = vunpack.c.l.b16 %v1088
        %v1141 = vunpack.c.h.b16 %v1088
        %v1142 = vunpack.c.l.b16 %v1089
        %v1143 = vunpack.c.h.b16 %v1089
        %v1144 = vunpack.c.l.b16 %v1090
        %v1145 = vunpack.c.h.b16 %v1090
        %v1146 = vunpack.c.l.b16 %v1091
        %v1147 = vunpack.c.h.b16 %v1091
        %v1148 = vunpack.c.l.b16 %v1092
        %v1149 = vunpack.c.h.b16 %v1092
        %v1150 = vunpack.c.l.b16 %v1093
        %v1151 = vunpack.c.h.b16 %v1093
        %v1152 = vunpack.c.l.b16 %v1094
        %v1153 = vunpack.c.h.b16 %v1094
        %v1154 = vunpack.c.l.b16 %v1095
        %v1155 = vunpack.c.h.b16 %v1095
        %v1156 = vpack.c.b16 %v1126, %v1124
        %v1157 = vpack.c.b16 %v1127, %v1125
        %v1158 = vpack.c.b16 %v1130, %v1128
        %v1159 = vpack.c.b16 %v1131, %v1129
        %v1160 = vpack.c.b16 %v1134, %v1132
        %v1161 = vpack.c.b16 %v1135, %v1133
        %v1162 = vpack.c.b16 %v1138, %v1136
        %v1163 = vpack.c.b16 %v1139, %v1137
        %v1164 = vpack.c.b16 %v1142, %v1140
        %v1165 = vpack.c.b16 %v1143, %v1141
        %v1166 = vpack.c.b16 %v1146, %v1144
        %v1167 = vpack.c.b16 %v1147, %v1145
        %v1168 = vpack.c.b16 %v1150, %v1148
        %v1169 = vpack.c.b16 %v1151, %v1149
        %v1170 = vpack.c.b16 %v1154, %v1152
        %v1171 = vpack.c.b16 %v1155, %v1153
        %1188 = vmatprep.subr.bf16.mxu0 %v1157
        %1189 = vmatpush1.bf16.msra.mxu0 %v1156
        %1190 = vmatprep.subr.bf16.mxu0 %v1159
        %1191 = vmatpush1.bf16.msra.mxu0 %v1158
        %1192 = vmatprep.subr.bf16.mxu0 %v1161
        %1193 = vmatpush1.bf16.msra.mxu0 %v1160
        %1194 = vmatprep.subr.bf16.mxu0 %v1163
        %1195 = vmatpush1.bf16.msra.mxu0 %v1162
        %1196 = vmatprep.subr.bf16.mxu0 %v1165
        %1197 = vmatpush1.bf16.msra.mxu0 %v1164
        %1198 = vmatprep.subr.bf16.mxu0 %v1167
        %1199 = vmatpush1.bf16.msra.mxu0 %v1166
        %1200 = vmatprep.subr.bf16.mxu0 %v1169
        %1201 = vmatpush1.bf16.msra.mxu0 %v1168
        %1202 = vmatprep.subr.bf16.mxu0 %v1171
        %1203 = vmatpush1.bf16.msra.mxu0 %v1170
        %1204 = vmatprep.subr.bf16.mxu0 0
        %1205 = vmatpush1.bf16.msra.mxu0 0
        %1206 = vmatprep.subr.bf16.mxu0 0
        %1207 = vmatpush1.bf16.msra.mxu0 0
        %1208 = vmatprep.subr.bf16.mxu0 0
        %1209 = vmatpush1.bf16.msra.mxu0 0
        %1210 = vmatprep.subr.bf16.mxu0 0
        %1211 = vmatpush1.bf16.msra.mxu0 0
        %1212 = vmatprep.subr.bf16.mxu0 0
        %1213 = vmatpush1.bf16.msra.mxu0 0
        %1214 = vmatprep.subr.bf16.mxu0 0
        %1215 = vmatpush1.bf16.msra.mxu0 0
        %1216 = vmatprep.subr.bf16.mxu0 0
        %1217 = vmatpush1.bf16.msra.mxu0 0
        %1218 = vmatprep.subr.bf16.mxu0 0
        %1219 = vmatpush1.bf16.msra.mxu0 0
        %1220 = vmatprep.mubr.bf16.mxu0 0
        %1221 = vmatmul.mubr.bf16.gmra.mrb[0].mxu0 %v1072
        %v1222 = vpop.f32.mrb[0].mxu0
        %v1223 = vadd.f32 %v1101, %v1222
        %v1224 = vpop.f32.mrb[0].mxu0
        %v1225 = vadd.f32 %v1105, %v1224
        %v1226 = vpop.f32.mrb[0].mxu0
        %v1227 = vadd.f32 %v1101, %v1226
        %v1228 = vpop.f32.mrb[0].mxu0
        %v1229 = vadd.f32 %v1105, %v1228
        %1230 = vmatprep.mubr.bf16.mxu0 0
        %1231 = vmatmul.mubr.bf16.gmra.mrb[0].mxu0 %v1073
        %v1232 = vpop.f32.mrb[0].mxu0
        %v1233 = vadd.f32 %v1101, %v1232
        %v1234 = vpop.f32.mrb[0].mxu0
        %v1235 = vadd.f32 %v1105, %v1234
        %v1236 = vpop.f32.mrb[0].mxu0
        %v1237 = vadd.f32 %v1101, %v1236
        %v1238 = vpop.f32.mrb[0].mxu0
        %v1239 = vadd.f32 %v1105, %v1238
        %1240 = vmatprep.mubr.bf16.mxu0 0
        %1241 = vmatmul.mubr.bf16.gmra.mrb[0].mxu0 %v1074
        %v1242 = vpop.f32.mrb[0].mxu0
        %v1243 = vadd.f32 %v1101, %v1242
        %v1244 = vpop.f32.mrb[0].mxu0
        %v1245 = vadd.f32 %v1105, %v1244
        %v1246 = vpop.f32.mrb[0].mxu0
        %v1247 = vadd.f32 %v1101, %v1246
        %v1248 = vpop.f32.mrb[0].mxu0
        %v1249 = vadd.f32 %v1105, %v1248
        %1250 = vmatprep.mubr.bf16.mxu0 0
        %1251 = vmatmul.mubr.bf16.gmra.mrb[0].mxu0 %v1075
        %v1252 = vpop.f32.mrb[0].mxu0
        %v1253 = vadd.f32 %v1101, %v1252
        %v1254 = vpop.f32.mrb[0].mxu0
        %v1255 = vadd.f32 %v1105, %v1254
        %v1256 = vpop.f32.mrb[0].mxu0
        %v1257 = vadd.f32 %v1101, %v1256
        %v1258 = vpop.f32.mrb[0].mxu0
        %v1259 = vadd.f32 %v1105, %v1258
        %1260 = vmatprep.mubr.bf16.mxu0 0
        %1261 = vmatmul.mubr.bf16.gmra.mrb[0].mxu0 %v1076
        %v1262 = vpop.f32.mrb[0].mxu0
        %v1263 = vadd.f32 %v1101, %v1262
        %v1264 = vpop.f32.mrb[0].mxu0
        %v1265 = vadd.f32 %v1105, %v1264
        %v1266 = vpop.f32.mrb[0].mxu0
        %v1267 = vadd.f32 %v1101, %v1266
        %v1268 = vpop.f32.mrb[0].mxu0
        %v1269 = vadd.f32 %v1105, %v1268
        %1270 = vmatprep.mubr.bf16.mxu0 0
        %1271 = vmatmul.mubr.bf16.gmra.mrb[0].mxu0 %v1077
        %v1272 = vpop.f32.mrb[0].mxu0
        %v1273 = vadd.f32 %v1101, %v1272
        %v1274 = vpop.f32.mrb[0].mxu0
        %v1275 = vadd.f32 %v1105, %v1274
        %v1276 = vpop.f32.mrb[0].mxu0
        %v1277 = vadd.f32 %v1101, %v1276
        %v1278 = vpop.f32.mrb[0].mxu0
        %v1279 = vadd.f32 %v1105, %v1278
        %1280 = vmatprep.mubr.bf16.mxu0 0
        %1281 = vmatmul.mubr.bf16.gmra.mrb[0].mxu0 %v1078
        %v1282 = vpop.f32.mrb[0].mxu0
        %v1283 = vadd.f32 %v1101, %v1282
        %v1284 = vpop.f32.mrb[0].mxu0
        %v1285 = vadd.f32 %v1105, %v1284
        %v1286 = vpop.f32.mrb[0].mxu0
        %v1287 = vadd.f32 %v1101, %v1286
        %v1288 = vpop.f32.mrb[0].mxu0
        %v1289 = vadd.f32 %v1105, %v1288
        %1290 = vmatprep.mubr.bf16.mxu0 0
        %1291 = vmatmul.mubr.bf16.gmra.mrb[0].mxu0 %v1079
        %v1292 = vpop.f32.mrb[0].mxu0
        %v1293 = vadd.f32 %v1101, %v1292
        %v1294 = vpop.f32.mrb[0].mxu0
        %v1295 = vadd.f32 %v1105, %v1294
        %v1296 = vpop.f32.mrb[0].mxu0
        %v1297 = vadd.f32 %v1101, %v1296
        %v1298 = vpop.f32.mrb[0].mxu0
        %v1299 = vadd.f32 %v1105, %v1298
        %1300 = vdwg.mxu0
        %vm1301 = vcmp.ge.f32.partialorder %v1223, 0.0
        %vm1302 = vcmp.ge.f32.partialorder %v1225, 0.0
        %vm1303 = vcmp.ge.f32.partialorder %v1227, 0.0
        %vm1304 = vcmp.ge.f32.partialorder %v1229, 0.0
        %vm1305 = vcmp.ge.f32.partialorder %v1233, 0.0
        %vm1306 = vcmp.ge.f32.partialorder %v1235, 0.0
        %vm1307 = vcmp.ge.f32.partialorder %v1237, 0.0
        %vm1308 = vcmp.ge.f32.partialorder %v1239, 0.0
        %vm1309 = vcmp.ge.f32.partialorder %v1243, 0.0
        %vm1310 = vcmp.ge.f32.partialorder %v1245, 0.0
        %vm1311 = vcmp.ge.f32.partialorder %v1247, 0.0
        %vm1312 = vcmp.ge.f32.partialorder %v1249, 0.0
        %vm1313 = vcmp.ge.f32.partialorder %v1253, 0.0
        %vm1314 = vcmp.ge.f32.partialorder %v1255, 0.0
        %vm1315 = vcmp.ge.f32.partialorder %v1257, 0.0
        %vm1316 = vcmp.ge.f32.partialorder %v1259, 0.0
        %vm1317 = vcmp.ge.f32.partialorder %v1263, 0.0
        %vm1318 = vcmp.ge.f32.partialorder %v1265, 0.0
        %vm1319 = vcmp.ge.f32.partialorder %v1267, 0.0
        %vm1320 = vcmp.ge.f32.partialorder %v1269, 0.0
        %vm1321 = vcmp.ge.f32.partialorder %v1273, 0.0
        %vm1322 = vcmp.ge.f32.partialorder %v1275, 0.0
        %vm1323 = vcmp.ge.f32.partialorder %v1277, 0.0
        %vm1324 = vcmp.ge.f32.partialorder %v1279, 0.0
        %vm1325 = vcmp.ge.f32.partialorder %v1283, 0.0
        %vm1326 = vcmp.ge.f32.partialorder %v1285, 0.0
        %vm1327 = vcmp.ge.f32.partialorder %v1287, 0.0
        %vm1328 = vcmp.ge.f32.partialorder %v1289, 0.0
        %vm1329 = vcmp.ge.f32.partialorder %v1293, 0.0
        %vm1330 = vcmp.ge.f32.partialorder %v1295, 0.0
        %vm1331 = vcmp.ge.f32.partialorder %v1297, 0.0
        %vm1332 = vcmp.ge.f32.partialorder %v1299, 0.0
        %v1333 = vmul.f32 %v1223, 0.01
        %v1334 = vmul.f32 %v1225, 0.01
        %v1335 = vmul.f32 %v1227, 0.01
        %v1336 = vmul.f32 %v1229, 0.01
        %v1337 = vmul.f32 %v1233, 0.01
        %v1338 = vmul.f32 %v1235, 0.01
        %v1339 = vmul.f32 %v1237, 0.01
        %v1340 = vmul.f32 %v1239, 0.01
        %v1341 = vmul.f32 %v1243, 0.01
        %v1342 = vmul.f32 %v1245, 0.01
        %v1343 = vmul.f32 %v1247, 0.01
        %v1344 = vmul.f32 %v1249, 0.01
        %v1345 = vmul.f32 %v1253, 0.01
        %v1346 = vmul.f32 %v1255, 0.01
        %v1347 = vmul.f32 %v1257, 0.01
        %v1348 = vmul.f32 %v1259, 0.01
        %v1349 = vmul.f32 %v1263, 0.01
        %v1350 = vmul.f32 %v1265, 0.01
        %v1351 = vmul.f32 %v1267, 0.01
        %v1352 = vmul.f32 %v1269, 0.01
        %v1353 = vmul.f32 %v1273, 0.01
        %v1354 = vmul.f32 %v1275, 0.01
        %v1355 = vmul.f32 %v1277, 0.01
        %v1356 = vmul.f32 %v1279, 0.01
        %v1357 = vmul.f32 %v1283, 0.01
        %v1358 = vmul.f32 %v1285, 0.01
        %v1359 = vmul.f32 %v1287, 0.01
        %v1360 = vmul.f32 %v1289, 0.01
        %v1361 = vmul.f32 %v1293, 0.01
        %v1362 = vmul.f32 %v1295, 0.01
        %v1363 = vmul.f32 %v1297, 0.01
        %v1364 = vmul.f32 %v1299, 0.01
        %v1365 = vsel %vm1301, %v1223, %v1333
        %v1366 = vsel %vm1302, %v1225, %v1334
        %v1367 = vsel %vm1303, %v1227, %v1335
        %v1368 = vsel %vm1304, %v1229, %v1336
        %v1369 = vsel %vm1305, %v1233, %v1337
        %v1370 = vsel %vm1306, %v1235, %v1338
        %v1371 = vsel %vm1307, %v1237, %v1339
        %v1372 = vsel %vm1308, %v1239, %v1340
        %v1373 = vsel %vm1309, %v1243, %v1341
        %v1374 = vsel %vm1310, %v1245, %v1342
        %v1375 = vsel %vm1311, %v1247, %v1343
        %v1376 = vsel %vm1312, %v1249, %v1344
        %v1377 = vsel %vm1313, %v1253, %v1345
        %v1378 = vsel %vm1314, %v1255, %v1346
        %v1379 = vsel %vm1315, %v1257, %v1347
        %v1380 = vsel %vm1316, %v1259, %v1348
        %v1381 = vsel %vm1317, %v1263, %v1349
        %v1382 = vsel %vm1318, %v1265, %v1350
        %v1383 = vsel %vm1319, %v1267, %v1351
        %v1384 = vsel %vm1320, %v1269, %v1352
        %v1385 = vsel %vm1321, %v1273, %v1353
        %v1386 = vsel %vm1322, %v1275, %v1354
        %v1387 = vsel %vm1323, %v1277, %v1355
        %v1388 = vsel %vm1324, %v1279, %v1356
        %v1389 = vsel %vm1325, %v1283, %v1357
        %v1390 = vsel %vm1326, %v1285, %v1358
        %v1391 = vsel %vm1327, %v1287, %v1359
        %v1392 = vsel %vm1328, %v1289, %v1360
        %v1393 = vsel %vm1329, %v1293, %v1361
        %v1394 = vsel %vm1330, %v1295, %v1362
        %v1395 = vsel %vm1331, %v1297, %v1363
        %v1396 = vsel %vm1332, %v1299, %v1364
        %v1397 = vpack.c.bf16 %v1367, %v1365
        %v1398 = vpack.c.bf16 %v1368, %v1366
        %v1399 = vpack.c.bf16 %v1371, %v1369
        %v1400 = vpack.c.bf16 %v1372, %v1370
        %v1401 = vpack.c.bf16 %v1375, %v1373
        %v1402 = vpack.c.bf16 %v1376, %v1374
        %v1403 = vpack.c.bf16 %v1379, %v1377
        %v1404 = vpack.c.bf16 %v1380, %v1378
        %v1405 = vpack.c.bf16 %v1383, %v1381
        %v1406 = vpack.c.bf16 %v1384, %v1382
        %v1407 = vpack.c.bf16 %v1387, %v1385
        %v1408 = vpack.c.bf16 %v1388, %v1386
        %v1409 = vpack.c.bf16 %v1391, %v1389
        %v1410 = vpack.c.bf16 %v1392, %v1390
        %v1411 = vpack.c.bf16 %v1395, %v1393
        %v1412 = vpack.c.bf16 %v1396, %v1394
        %v1413 = vld [vmem:[%s7] sm:$0xff]
        %v1414 = vld [vmem:[%s7 + $0x8] sm:$0xff]
        %v1415 = vld [vmem:[%s7 + $0x10] sm:$0xff]
        %v1416 = vld [vmem:[%s7 + $0x18] sm:$0xff]
        %v1417 = vld [vmem:[%s7 + $0x20] sm:$0xff]
        %v1418 = vld [vmem:[%s7 + $0x28] sm:$0xff]
        %v1419 = vld [vmem:[%s7 + $0x30] sm:$0xff]
        %v1420 = vld [vmem:[%s7 + $0x38] sm:$0xff]
        %v1421 = vld [vmem:[%s7 + $0x40] sm:$0xff]
        %v1422 = vld [vmem:[%s7 + $0x48] sm:$0xff]
        %v1423 = vld [vmem:[%s7 + $0x50] sm:$0xff]
        %v1424 = vld [vmem:[%s7 + $0x58] sm:$0xff]
        %v1425 = vld [vmem:[%s7 + $0x60] sm:$0xff]
        %v1426 = vld [vmem:[%s7 + $0x68] sm:$0xff]
        %v1427 = vld [vmem:[%s7 + $0x70] sm:$0xff]
        %v1428 = vld [vmem:[%s7 + $0x78] sm:$0xff]
        %v1429 = vld [vmem:[%s7 + $0x80] sm:$0xff]
        %v1430 = vld [vmem:[%s7 + $0x88] sm:$0xff]
        %v1431 = vld [vmem:[%s7 + $0x90] sm:$0xff]
        %v1432 = vld [vmem:[%s7 + $0x98] sm:$0xff]
        %v1433 = vld [vmem:[%s7 + $0xa0] sm:$0xff]
        %v1434 = vld [vmem:[%s7 + $0xa8] sm:$0xff]
        %v1435 = vld [vmem:[%s7 + $0xb0] sm:$0xff]
        %v1436 = vld [vmem:[%s7 + $0xb8] sm:$0xff]
        %v1437 = vld [vmem:[%s7 + $0xc0] sm:$0xff]
        %v1438 = vld [vmem:[%s7 + $0xc8] sm:$0xff]
        %v1439 = vld [vmem:[%s7 + $0xd0] sm:$0xff]
        %v1440 = vld [vmem:[%s7 + $0xd8] sm:$0xff]
        %v1441 = vld [vmem:[%s7 + $0xe0] sm:$0xff]
        %v1442 = vld [vmem:[%s7 + $0xe8] sm:$0xff]
        %v1443 = vld [vmem:[%s7 + $0xf0] sm:$0xff]
        %v1444 = vld [vmem:[%s7 + $0xf8] sm:$0xff]
        %v1445 = vld [vmem:[%s7 + $0x100] sm:$0xff]
        %v1446 = vld [vmem:[%s7 + $0x108] sm:$0xff]
        %v1447 = vld [vmem:[%s7 + $0x110] sm:$0xff]
        %v1448 = vld [vmem:[%s7 + $0x118] sm:$0xff]
        %v1449 = vld [vmem:[%s7 + $0x120] sm:$0xff]
        %v1450 = vld [vmem:[%s7 + $0x128] sm:$0xff]
        %v1451 = vld [vmem:[%s7 + $0x130] sm:$0xff]
        %v1452 = vld [vmem:[%s7 + $0x138] sm:$0xff]
        %v1453 = vld [vmem:[%s7 + $0x140] sm:$0xff]
        %v1454 = vld [vmem:[%s7 + $0x148] sm:$0xff]
        %v1455 = vld [vmem:[%s7 + $0x150] sm:$0xff]
        %v1456 = vld [vmem:[%s7 + $0x158] sm:$0xff]
        %v1457 = vld [vmem:[%s7 + $0x160] sm:$0xff]
        %v1458 = vld [vmem:[%s7 + $0x168] sm:$0xff]
        %v1459 = vld [vmem:[%s7 + $0x170] sm:$0xff]
        %v1460 = vld [vmem:[%s7 + $0x178] sm:$0xff]
        %v1461 = vld [vmem:[%s7 + $0x180] sm:$0xff]
        %v1462 = vld [vmem:[%s7 + $0x188] sm:$0xff]
        %v1463 = vld [vmem:[%s7 + $0x190] sm:$0xff]
        %v1464 = vld [vmem:[%s7 + $0x198] sm:$0xff]
        %v1465 = vld [vmem:[%s7 + $0x1a0] sm:$0xff]
        %v1466 = vld [vmem:[%s7 + $0x1a8] sm:$0xff]
        %v1467 = vld [vmem:[%s7 + $0x1b0] sm:$0xff]
        %v1468 = vld [vmem:[%s7 + $0x1b8] sm:$0xff]
        %v1469 = vld [vmem:[%s7 + $0x1c0] sm:$0xff]
        %v1470 = vld [vmem:[%s7 + $0x1c8] sm:$0xff]
        %v1471 = vld [vmem:[%s7 + $0x1d0] sm:$0xff]
        %v1472 = vld [vmem:[%s7 + $0x1d8] sm:$0xff]
        %v1473 = vld [vmem:[%s7 + $0x1e0] sm:$0xff]
        %v1474 = vld [vmem:[%s7 + $0x1e8] sm:$0xff]
        %v1475 = vld [vmem:[%s7 + $0x1f0] sm:$0xff]
        %v1476 = vld [vmem:[%s7 + $0x1f8] sm:$0xff]
        %v1477 = vld [vmem:[#allocation8] sm:$0xf]
        %v1479 = vlaneseq
        %v1480 = vshrl.u32 %v1479, 7
        %v1481 = vsub.s32 0, %v1480
        %v1482 = vrot.slane %v1477, %v1481
        %v1483 = vlaneseq
        %v1484 = vshrl.u32 %v1483, 7
        %v1485 = vsub.s32 1, %v1484
        %v1486 = vrot.slane %v1477, %v1485
        %v1487 = vlaneseq
        %v1488 = vshrl.u32 %v1487, 7
        %v1489 = vsub.s32 2, %v1488
        %v1490 = vrot.slane %v1477, %v1489
        %v1491 = vlaneseq
        %v1492 = vshrl.u32 %v1491, 7
        %v1493 = vsub.s32 3, %v1492
        %v1494 = vrot.slane %v1477, %v1493
        %v1563 = vunpack.c.l.b16 %v1413
        %v1564 = vunpack.c.h.b16 %v1413
        %v1565 = vunpack.c.l.b16 %v1414
        %v1566 = vunpack.c.h.b16 %v1414
        %v1567 = vunpack.c.l.b16 %v1415
        %v1568 = vunpack.c.h.b16 %v1415
        %v1569 = vunpack.c.l.b16 %v1416
        %v1570 = vunpack.c.h.b16 %v1416
        %v1571 = vunpack.c.l.b16 %v1417
        %v1572 = vunpack.c.h.b16 %v1417
        %v1573 = vunpack.c.l.b16 %v1418
        %v1574 = vunpack.c.h.b16 %v1418
        %v1575 = vunpack.c.l.b16 %v1419
        %v1576 = vunpack.c.h.b16 %v1419
        %v1577 = vunpack.c.l.b16 %v1420
        %v1578 = vunpack.c.h.b16 %v1420
        %v1579 = vunpack.c.l.b16 %v1421
        %v1580 = vunpack.c.h.b16 %v1421
        %v1581 = vunpack.c.l.b16 %v1422
        %v1582 = vunpack.c.h.b16 %v1422
        %v1583 = vunpack.c.l.b16 %v1423
        %v1584 = vunpack.c.h.b16 %v1423
        %v1585 = vunpack.c.l.b16 %v1424
        %v1586 = vunpack.c.h.b16 %v1424
        %v1587 = vunpack.c.l.b16 %v1425
        %v1588 = vunpack.c.h.b16 %v1425
        %v1589 = vunpack.c.l.b16 %v1426
        %v1590 = vunpack.c.h.b16 %v1426
        %v1591 = vunpack.c.l.b16 %v1427
        %v1592 = vunpack.c.h.b16 %v1427
        %v1593 = vunpack.c.l.b16 %v1428
        %v1594 = vunpack.c.h.b16 %v1428
        %v1595 = vunpack.c.l.b16 %v1429
        %v1596 = vunpack.c.h.b16 %v1429
        %v1597 = vunpack.c.l.b16 %v1430
        %v1598 = vunpack.c.h.b16 %v1430
        %v1599 = vunpack.c.l.b16 %v1431
        %v1600 = vunpack.c.h.b16 %v1431
        %v1601 = vunpack.c.l.b16 %v1432
        %v1602 = vunpack.c.h.b16 %v1432
        %v1603 = vunpack.c.l.b16 %v1433
        %v1604 = vunpack.c.h.b16 %v1433
        %v1605 = vunpack.c.l.b16 %v1434
        %v1606 = vunpack.c.h.b16 %v1434
        %v1607 = vunpack.c.l.b16 %v1435
        %v1608 = vunpack.c.h.b16 %v1435
        %v1609 = vunpack.c.l.b16 %v1436
        %v1610 = vunpack.c.h.b16 %v1436
        %v1611 = vunpack.c.l.b16 %v1437
        %v1612 = vunpack.c.h.b16 %v1437
        %v1613 = vunpack.c.l.b16 %v1438
        %v1614 = vunpack.c.h.b16 %v1438
        %v1615 = vunpack.c.l.b16 %v1439
        %v1616 = vunpack.c.h.b16 %v1439
        %v1617 = vunpack.c.l.b16 %v1440
        %v1618 = vunpack.c.h.b16 %v1440
        %v1619 = vunpack.c.l.b16 %v1441
        %v1620 = vunpack.c.h.b16 %v1441
        %v1621 = vunpack.c.l.b16 %v1442
        %v1622 = vunpack.c.h.b16 %v1442
        %v1623 = vunpack.c.l.b16 %v1443
        %v1624 = vunpack.c.h.b16 %v1443
        %v1625 = vunpack.c.l.b16 %v1444
        %v1626 = vunpack.c.h.b16 %v1444
        %v1627 = vunpack.c.l.b16 %v1445
        %v1628 = vunpack.c.h.b16 %v1445
        %v1629 = vunpack.c.l.b16 %v1446
        %v1630 = vunpack.c.h.b16 %v1446
        %v1631 = vunpack.c.l.b16 %v1447
        %v1632 = vunpack.c.h.b16 %v1447
        %v1633 = vunpack.c.l.b16 %v1448
        %v1634 = vunpack.c.h.b16 %v1448
        %v1635 = vunpack.c.l.b16 %v1449
        %v1636 = vunpack.c.h.b16 %v1449
        %v1637 = vunpack.c.l.b16 %v1450
        %v1638 = vunpack.c.h.b16 %v1450
        %v1639 = vunpack.c.l.b16 %v1451
        %v1640 = vunpack.c.h.b16 %v1451
        %v1641 = vunpack.c.l.b16 %v1452
        %v1642 = vunpack.c.h.b16 %v1452
        %v1643 = vunpack.c.l.b16 %v1453
        %v1644 = vunpack.c.h.b16 %v1453
        %v1645 = vunpack.c.l.b16 %v1454
        %v1646 = vunpack.c.h.b16 %v1454
        %v1647 = vunpack.c.l.b16 %v1455
        %v1648 = vunpack.c.h.b16 %v1455
        %v1649 = vunpack.c.l.b16 %v1456
        %v1650 = vunpack.c.h.b16 %v1456
        %v1651 = vunpack.c.l.b16 %v1457
        %v1652 = vunpack.c.h.b16 %v1457
        %v1653 = vunpack.c.l.b16 %v1458
        %v1654 = vunpack.c.h.b16 %v1458
        %v1655 = vunpack.c.l.b16 %v1459
        %v1656 = vunpack.c.h.b16 %v1459
        %v1657 = vunpack.c.l.b16 %v1460
        %v1658 = vunpack.c.h.b16 %v1460
        %v1659 = vunpack.c.l.b16 %v1461
        %v1660 = vunpack.c.h.b16 %v1461
        %v1661 = vunpack.c.l.b16 %v1462
        %v1662 = vunpack.c.h.b16 %v1462
        %v1663 = vunpack.c.l.b16 %v1463
        %v1664 = vunpack.c.h.b16 %v1463
        %v1665 = vunpack.c.l.b16 %v1464
        %v1666 = vunpack.c.h.b16 %v1464
        %v1667 = vunpack.c.l.b16 %v1465
        %v1668 = vunpack.c.h.b16 %v1465
        %v1669 = vunpack.c.l.b16 %v1466
        %v1670 = vunpack.c.h.b16 %v1466
        %v1671 = vunpack.c.l.b16 %v1467
        %v1672 = vunpack.c.h.b16 %v1467
        %v1673 = vunpack.c.l.b16 %v1468
        %v1674 = vunpack.c.h.b16 %v1468
        %v1675 = vunpack.c.l.b16 %v1469
        %v1676 = vunpack.c.h.b16 %v1469
        %v1677 = vunpack.c.l.b16 %v1470
        %v1678 = vunpack.c.h.b16 %v1470
        %v1679 = vunpack.c.l.b16 %v1471
        %v1680 = vunpack.c.h.b16 %v1471
        %v1681 = vunpack.c.l.b16 %v1472
        %v1682 = vunpack.c.h.b16 %v1472
        %v1683 = vunpack.c.l.b16 %v1473
        %v1684 = vunpack.c.h.b16 %v1473
        %v1685 = vunpack.c.l.b16 %v1474
        %v1686 = vunpack.c.h.b16 %v1474
        %v1687 = vunpack.c.l.b16 %v1475
        %v1688 = vunpack.c.h.b16 %v1475
        %v1689 = vunpack.c.l.b16 %v1476
        %v1690 = vunpack.c.h.b16 %v1476
        %v1691 = vpack.c.b16 %v1567, %v1563
        %v1692 = vpack.c.b16 %v1568, %v1564
        %v1693 = vpack.c.b16 %v1569, %v1565
        %v1694 = vpack.c.b16 %v1570, %v1566
        %v1695 = vpack.c.b16 %v1575, %v1571
        %v1696 = vpack.c.b16 %v1576, %v1572
        %v1697 = vpack.c.b16 %v1577, %v1573
        %v1698 = vpack.c.b16 %v1578, %v1574
        %v1699 = vpack.c.b16 %v1583, %v1579
        %v1700 = vpack.c.b16 %v1584, %v1580
        %v1701 = vpack.c.b16 %v1585, %v1581
        %v1702 = vpack.c.b16 %v1586, %v1582
        %v1703 = vpack.c.b16 %v1591, %v1587
        %v1704 = vpack.c.b16 %v1592, %v1588
        %v1705 = vpack.c.b16 %v1593, %v1589
        %v1706 = vpack.c.b16 %v1594, %v1590
        %v1707 = vpack.c.b16 %v1599, %v1595
        %v1708 = vpack.c.b16 %v1600, %v1596
        %v1709 = vpack.c.b16 %v1601, %v1597
        %v1710 = vpack.c.b16 %v1602, %v1598
        %v1711 = vpack.c.b16 %v1607, %v1603
        %v1712 = vpack.c.b16 %v1608, %v1604
        %v1713 = vpack.c.b16 %v1609, %v1605
        %v1714 = vpack.c.b16 %v1610, %v1606
        %v1715 = vpack.c.b16 %v1615, %v1611
        %v1716 = vpack.c.b16 %v1616, %v1612
        %v1717 = vpack.c.b16 %v1617, %v1613
        %v1718 = vpack.c.b16 %v1618, %v1614
        %v1719 = vpack.c.b16 %v1623, %v1619
        %v1720 = vpack.c.b16 %v1624, %v1620
        %v1721 = vpack.c.b16 %v1625, %v1621
        %v1722 = vpack.c.b16 %v1626, %v1622
        %v1723 = vpack.c.b16 %v1631, %v1627
        %v1724 = vpack.c.b16 %v1632, %v1628
        %v1725 = vpack.c.b16 %v1633, %v1629
        %v1726 = vpack.c.b16 %v1634, %v1630
        %v1727 = vpack.c.b16 %v1639, %v1635
        %v1728 = vpack.c.b16 %v1640, %v1636
        %v1729 = vpack.c.b16 %v1641, %v1637
        %v1730 = vpack.c.b16 %v1642, %v1638
        %v1731 = vpack.c.b16 %v1647, %v1643
        %v1732 = vpack.c.b16 %v1648, %v1644
        %v1733 = vpack.c.b16 %v1649, %v1645
        %v1734 = vpack.c.b16 %v1650, %v1646
        %v1735 = vpack.c.b16 %v1655, %v1651
        %v1736 = vpack.c.b16 %v1656, %v1652
        %v1737 = vpack.c.b16 %v1657, %v1653
        %v1738 = vpack.c.b16 %v1658, %v1654
        %v1739 = vpack.c.b16 %v1663, %v1659
        %v1740 = vpack.c.b16 %v1664, %v1660
        %v1741 = vpack.c.b16 %v1665, %v1661
        %v1742 = vpack.c.b16 %v1666, %v1662
        %v1743 = vpack.c.b16 %v1671, %v1667
        %v1744 = vpack.c.b16 %v1672, %v1668
        %v1745 = vpack.c.b16 %v1673, %v1669
        %v1746 = vpack.c.b16 %v1674, %v1670
        %v1747 = vpack.c.b16 %v1679, %v1675
        %v1748 = vpack.c.b16 %v1680, %v1676
        %v1749 = vpack.c.b16 %v1681, %v1677
        %v1750 = vpack.c.b16 %v1682, %v1678
        %v1751 = vpack.c.b16 %v1687, %v1683
        %v1752 = vpack.c.b16 %v1688, %v1684
        %v1753 = vpack.c.b16 %v1689, %v1685
        %v1754 = vpack.c.b16 %v1690, %v1686
        %1819 = vmatprep.subr.bf16.mxu0 %v1692
        %1820 = vmatpush1.bf16.msra.mxu0 %v1691
        %1821 = vmatprep.subr.bf16.mxu0 %v1696
        %1822 = vmatpush1.bf16.msra.mxu0 %v1695
        %1823 = vmatprep.subr.bf16.mxu0 %v1700
        %1824 = vmatpush1.bf16.msra.mxu0 %v1699
        %1825 = vmatprep.subr.bf16.mxu0 %v1704
        %1826 = vmatpush1.bf16.msra.mxu0 %v1703
        %1827 = vmatprep.subr.bf16.mxu0 %v1708
        %1828 = vmatpush1.bf16.msra.mxu0 %v1707
        %1829 = vmatprep.subr.bf16.mxu0 %v1712
        %1830 = vmatpush1.bf16.msra.mxu0 %v1711
        %1831 = vmatprep.subr.bf16.mxu0 %v1716
        %1832 = vmatpush1.bf16.msra.mxu0 %v1715
        %1833 = vmatprep.subr.bf16.mxu0 %v1720
        %1834 = vmatpush1.bf16.msra.mxu0 %v1719
        %1835 = vmatprep.subr.bf16.mxu0 %v1724
        %1836 = vmatpush1.bf16.msra.mxu0 %v1723
        %1837 = vmatprep.subr.bf16.mxu0 %v1728
        %1838 = vmatpush1.bf16.msra.mxu0 %v1727
        %1839 = vmatprep.subr.bf16.mxu0 %v1732
        %1840 = vmatpush1.bf16.msra.mxu0 %v1731
        %1841 = vmatprep.subr.bf16.mxu0 %v1736
        %1842 = vmatpush1.bf16.msra.mxu0 %v1735
        %1843 = vmatprep.subr.bf16.mxu0 %v1740
        %1844 = vmatpush1.bf16.msra.mxu0 %v1739
        %1845 = vmatprep.subr.bf16.mxu0 %v1744
        %1846 = vmatpush1.bf16.msra.mxu0 %v1743
        %1847 = vmatprep.subr.bf16.mxu0 %v1748
        %1848 = vmatpush1.bf16.msra.mxu0 %v1747
        %1849 = vmatprep.subr.bf16.mxu0 %v1752
        %1850 = vmatpush1.bf16.msra.mxu0 %v1751
        %1851 = vmatprep.mubr.bf16.mxu0 %v1398
        %1852 = vmatmul.mubr.bf16.gmra.mrb[0].mxu0 %v1397
        %v1853 = vpop.f32.mrb[0].mxu0
        %v1854 = vadd.f32 %v1482, %v1853
        %v1855 = vpop.f32.mrb[0].mxu0
        %v1856 = vadd.f32 %v1486, %v1855
        %v1857 = vpop.f32.mrb[0].mxu0
        %v1858 = vadd.f32 %v1482, %v1857
        %v1859 = vpop.f32.mrb[0].mxu0
        %v1860 = vadd.f32 %v1486, %v1859
        %1861 = vmatprep.mubr.bf16.mxu0 %v1400
        %1862 = vmatmul.mubr.bf16.gmra.mrb[0].mxu0 %v1399
        %v1863 = vpop.f32.mrb[0].mxu0
        %v1864 = vadd.f32 %v1482, %v1863
        %v1865 = vpop.f32.mrb[0].mxu0
        %v1866 = vadd.f32 %v1486, %v1865
        %v1867 = vpop.f32.mrb[0].mxu0
        %v1868 = vadd.f32 %v1482, %v1867
        %v1869 = vpop.f32.mrb[0].mxu0
        %v1870 = vadd.f32 %v1486, %v1869
        %1871 = vmatprep.mubr.bf16.mxu0 %v1402
        %1872 = vmatmul.mubr.bf16.gmra.mrb[0].mxu0 %v1401
        %v1873 = vpop.f32.mrb[0].mxu0
        %v1874 = vadd.f32 %v1482, %v1873
        %v1875 = vpop.f32.mrb[0].mxu0
        %v1876 = vadd.f32 %v1486, %v1875
        %v1877 = vpop.f32.mrb[0].mxu0
        %v1878 = vadd.f32 %v1482, %v1877
        %v1879 = vpop.f32.mrb[0].mxu0
        %v1880 = vadd.f32 %v1486, %v1879
        %1881 = vmatprep.mubr.bf16.mxu0 %v1404
        %1882 = vmatmul.mubr.bf16.gmra.mrb[0].mxu0 %v1403
        %v1883 = vpop.f32.mrb[0].mxu0
        %v1884 = vadd.f32 %v1482, %v1883
        %v1885 = vpop.f32.mrb[0].mxu0
        %v1886 = vadd.f32 %v1486, %v1885
        %v1887 = vpop.f32.mrb[0].mxu0
        %v1888 = vadd.f32 %v1482, %v1887
        %v1889 = vpop.f32.mrb[0].mxu0
        %v1890 = vadd.f32 %v1486, %v1889
        %1891 = vmatprep.mubr.bf16.mxu0 %v1406
        %1892 = vmatmul.mubr.bf16.gmra.mrb[0].mxu0 %v1405
        %v1893 = vpop.f32.mrb[0].mxu0
        %v1894 = vadd.f32 %v1482, %v1893
        %v1895 = vpop.f32.mrb[0].mxu0
        %v1896 = vadd.f32 %v1486, %v1895
        %v1897 = vpop.f32.mrb[0].mxu0
        %v1898 = vadd.f32 %v1482, %v1897
        %v1899 = vpop.f32.mrb[0].mxu0
        %v1900 = vadd.f32 %v1486, %v1899
        %1901 = vmatprep.mubr.bf16.mxu0 %v1408
        %1902 = vmatmul.mubr.bf16.gmra.mrb[0].mxu0 %v1407
        %v1903 = vpop.f32.mrb[0].mxu0
        %v1904 = vadd.f32 %v1482, %v1903
        %v1905 = vpop.f32.mrb[0].mxu0
        %v1906 = vadd.f32 %v1486, %v1905
        %v1907 = vpop.f32.mrb[0].mxu0
        %v1908 = vadd.f32 %v1482, %v1907
        %v1909 = vpop.f32.mrb[0].mxu0
        %v1910 = vadd.f32 %v1486, %v1909
        %1911 = vmatprep.mubr.bf16.mxu0 %v1410
        %1912 = vmatmul.mubr.bf16.gmra.mrb[0].mxu0 %v1409
        %v1913 = vpop.f32.mrb[0].mxu0
        %v1914 = vadd.f32 %v1482, %v1913
        %v1915 = vpop.f32.mrb[0].mxu0
        %v1916 = vadd.f32 %v1486, %v1915
        %v1917 = vpop.f32.mrb[0].mxu0
        %v1918 = vadd.f32 %v1482, %v1917
        %v1919 = vpop.f32.mrb[0].mxu0
        %v1920 = vadd.f32 %v1486, %v1919
        %1921 = vmatprep.mubr.bf16.mxu0 %v1412
        %1922 = vmatmul.mubr.bf16.gmra.mrb[0].mxu0 %v1411
        %v1923 = vpop.f32.mrb[0].mxu0
        %v1924 = vadd.f32 %v1482, %v1923
        %v1925 = vpop.f32.mrb[0].mxu0
        %v1926 = vadd.f32 %v1486, %v1925
        %v1927 = vpop.f32.mrb[0].mxu0
        %v1928 = vadd.f32 %v1482, %v1927
        %v1929 = vpop.f32.mrb[0].mxu0
        %v1930 = vadd.f32 %v1486, %v1929
        %1931 = vdwg.mxu0
        %1932 = vmatprep.subr.bf16.mxu0 %v1694
        %1933 = vmatpush1.bf16.msra.mxu0 %v1693
        %1934 = vmatprep.subr.bf16.mxu0 %v1698
        %1935 = vmatpush1.bf16.msra.mxu0 %v1697
        %1936 = vmatprep.subr.bf16.mxu0 %v1702
        %1937 = vmatpush1.bf16.msra.mxu0 %v1701
        %1938 = vmatprep.subr.bf16.mxu0 %v1706
        %1939 = vmatpush1.bf16.msra.mxu0 %v1705
        %1940 = vmatprep.subr.bf16.mxu0 %v1710
        %1941 = vmatpush1.bf16.msra.mxu0 %v1709
        %1942 = vmatprep.subr.bf16.mxu0 %v1714
        %1943 = vmatpush1.bf16.msra.mxu0 %v1713
        %1944 = vmatprep.subr.bf16.mxu0 %v1718
        %1945 = vmatpush1.bf16.msra.mxu0 %v1717
        %1946 = vmatprep.subr.bf16.mxu0 %v1722
        %1947 = vmatpush1.bf16.msra.mxu0 %v1721
        %1948 = vmatprep.subr.bf16.mxu0 %v1726
        %1949 = vmatpush1.bf16.msra.mxu0 %v1725
        %1950 = vmatprep.subr.bf16.mxu0 %v1730
        %1951 = vmatpush1.bf16.msra.mxu0 %v1729
        %1952 = vmatprep.subr.bf16.mxu0 %v1734
        %1953 = vmatpush1.bf16.msra.mxu0 %v1733
        %1954 = vmatprep.subr.bf16.mxu0 %v1738
        %1955 = vmatpush1.bf16.msra.mxu0 %v1737
        %1956 = vmatprep.subr.bf16.mxu0 %v1742
        %1957 = vmatpush1.bf16.msra.mxu0 %v1741
        %1958 = vmatprep.subr.bf16.mxu0 %v1746
        %1959 = vmatpush1.bf16.msra.mxu0 %v1745
        %1960 = vmatprep.subr.bf16.mxu0 %v1750
        %1961 = vmatpush1.bf16.msra.mxu0 %v1749
        %1962 = vmatprep.subr.bf16.mxu0 %v1754
        %1963 = vmatpush1.bf16.msra.mxu0 %v1753
        %1964 = vmatprep.mubr.bf16.mxu0 %v1398
        %1965 = vmatmul.mubr.bf16.gmra.mrb[0].mxu0 %v1397
        %v1966 = vpop.f32.mrb[0].mxu0
        %v1967 = vadd.f32 %v1490, %v1966
        %v1968 = vpop.f32.mrb[0].mxu0
        %v1969 = vadd.f32 %v1494, %v1968
        %v1970 = vpop.f32.mrb[0].mxu0
        %v1971 = vadd.f32 %v1490, %v1970
        %v1972 = vpop.f32.mrb[0].mxu0
        %v1973 = vadd.f32 %v1494, %v1972
        %1974 = vmatprep.mubr.bf16.mxu0 %v1400
        %1975 = vmatmul.mubr.bf16.gmra.mrb[0].mxu0 %v1399
        %v1976 = vpop.f32.mrb[0].mxu0
        %v1977 = vadd.f32 %v1490, %v1976
        %v1978 = vpop.f32.mrb[0].mxu0
        %v1979 = vadd.f32 %v1494, %v1978
        %v1980 = vpop.f32.mrb[0].mxu0
        %v1981 = vadd.f32 %v1490, %v1980
        %v1982 = vpop.f32.mrb[0].mxu0
        %v1983 = vadd.f32 %v1494, %v1982
        %1984 = vmatprep.mubr.bf16.mxu0 %v1402
        %1985 = vmatmul.mubr.bf16.gmra.mrb[0].mxu0 %v1401
        %v1986 = vpop.f32.mrb[0].mxu0
        %v1987 = vadd.f32 %v1490, %v1986
        %v1988 = vpop.f32.mrb[0].mxu0
        %v1989 = vadd.f32 %v1494, %v1988
        %v1990 = vpop.f32.mrb[0].mxu0
        %v1991 = vadd.f32 %v1490, %v1990
        %v1992 = vpop.f32.mrb[0].mxu0
        %v1993 = vadd.f32 %v1494, %v1992
        %1994 = vmatprep.mubr.bf16.mxu0 %v1404
        %1995 = vmatmul.mubr.bf16.gmra.mrb[0].mxu0 %v1403
        %v1996 = vpop.f32.mrb[0].mxu0
        %v1997 = vadd.f32 %v1490, %v1996
        %v1998 = vpop.f32.mrb[0].mxu0
        %v1999 = vadd.f32 %v1494, %v1998
        %v2000 = vpop.f32.mrb[0].mxu0
        %v2001 = vadd.f32 %v1490, %v2000
        %v2002 = vpop.f32.mrb[0].mxu0
        %v2003 = vadd.f32 %v1494, %v2002
        %2004 = vmatprep.mubr.bf16.mxu0 %v1406
        %2005 = vmatmul.mubr.bf16.gmra.mrb[0].mxu0 %v1405
        %v2006 = vpop.f32.mrb[0].mxu0
        %v2007 = vadd.f32 %v1490, %v2006
        %v2008 = vpop.f32.mrb[0].mxu0
        %v2009 = vadd.f32 %v1494, %v2008
        %v2010 = vpop.f32.mrb[0].mxu0
        %v2011 = vadd.f32 %v1490, %v2010
        %v2012 = vpop.f32.mrb[0].mxu0
        %v2013 = vadd.f32 %v1494, %v2012
        %2014 = vmatprep.mubr.bf16.mxu0 %v1408
        %2015 = vmatmul.mubr.bf16.gmra.mrb[0].mxu0 %v1407
        %v2016 = vpop.f32.mrb[0].mxu0
        %v2017 = vadd.f32 %v1490, %v2016
        %v2018 = vpop.f32.mrb[0].mxu0
        %v2019 = vadd.f32 %v1494, %v2018
        %v2020 = vpop.f32.mrb[0].mxu0
        %v2021 = vadd.f32 %v1490, %v2020
        %v2022 = vpop.f32.mrb[0].mxu0
        %v2023 = vadd.f32 %v1494, %v2022
        %2024 = vmatprep.mubr.bf16.mxu0 %v1410
        %2025 = vmatmul.mubr.bf16.gmra.mrb[0].mxu0 %v1409
        %v2026 = vpop.f32.mrb[0].mxu0
        %v2027 = vadd.f32 %v1490, %v2026
        %v2028 = vpop.f32.mrb[0].mxu0
        %v2029 = vadd.f32 %v1494, %v2028
        %v2030 = vpop.f32.mrb[0].mxu0
        %v2031 = vadd.f32 %v1490, %v2030
        %v2032 = vpop.f32.mrb[0].mxu0
        %v2033 = vadd.f32 %v1494, %v2032
        %2034 = vmatprep.mubr.bf16.mxu0 %v1412
        %2035 = vmatmul.mubr.bf16.gmra.mrb[0].mxu0 %v1411
        %v2036 = vpop.f32.mrb[0].mxu0
        %v2037 = vadd.f32 %v1490, %v2036
        %v2038 = vpop.f32.mrb[0].mxu0
        %v2039 = vadd.f32 %v1494, %v2038
        %v2040 = vpop.f32.mrb[0].mxu0
        %v2041 = vadd.f32 %v1490, %v2040
        %v2042 = vpop.f32.mrb[0].mxu0
        %v2043 = vadd.f32 %v1494, %v2042
        %2044 = vdwg.mxu0
        %vm2045 = vcmp.ge.f32.partialorder %v1854, 0.0
        %vm2046 = vcmp.ge.f32.partialorder %v1856, 0.0
        %vm2047 = vcmp.ge.f32.partialorder %v1967, 0.0
        %vm2048 = vcmp.ge.f32.partialorder %v1969, 0.0
        %vm2049 = vcmp.ge.f32.partialorder %v1858, 0.0
        %vm2050 = vcmp.ge.f32.partialorder %v1860, 0.0
        %vm2051 = vcmp.ge.f32.partialorder %v1971, 0.0
        %vm2052 = vcmp.ge.f32.partialorder %v1973, 0.0
        %vm2053 = vcmp.ge.f32.partialorder %v1864, 0.0
        %vm2054 = vcmp.ge.f32.partialorder %v1866, 0.0
        %vm2055 = vcmp.ge.f32.partialorder %v1977, 0.0
        %vm2056 = vcmp.ge.f32.partialorder %v1979, 0.0
        %vm2057 = vcmp.ge.f32.partialorder %v1868, 0.0
        %vm2058 = vcmp.ge.f32.partialorder %v1870, 0.0
        %vm2059 = vcmp.ge.f32.partialorder %v1981, 0.0
        %vm2060 = vcmp.ge.f32.partialorder %v1983, 0.0
        %vm2061 = vcmp.ge.f32.partialorder %v1874, 0.0
        %vm2062 = vcmp.ge.f32.partialorder %v1876, 0.0
        %vm2063 = vcmp.ge.f32.partialorder %v1987, 0.0
        %vm2064 = vcmp.ge.f32.partialorder %v1989, 0.0
        %vm2065 = vcmp.ge.f32.partialorder %v1878, 0.0
        %vm2066 = vcmp.ge.f32.partialorder %v1880, 0.0
        %vm2067 = vcmp.ge.f32.partialorder %v1991, 0.0
        %vm2068 = vcmp.ge.f32.partialorder %v1993, 0.0
        %vm2069 = vcmp.ge.f32.partialorder %v1884, 0.0
        %vm2070 = vcmp.ge.f32.partialorder %v1886, 0.0
        %vm2071 = vcmp.ge.f32.partialorder %v1997, 0.0
        %vm2072 = vcmp.ge.f32.partialorder %v1999, 0.0
        %vm2073 = vcmp.ge.f32.partialorder %v1888, 0.0
        %vm2074 = vcmp.ge.f32.partialorder %v1890, 0.0
        %vm2075 = vcmp.ge.f32.partialorder %v2001, 0.0
        %vm2076 = vcmp.ge.f32.partialorder %v2003, 0.0
        %vm2077 = vcmp.ge.f32.partialorder %v1894, 0.0
        %vm2078 = vcmp.ge.f32.partialorder %v1896, 0.0
        %vm2079 = vcmp.ge.f32.partialorder %v2007, 0.0
        %vm2080 = vcmp.ge.f32.partialorder %v2009, 0.0
        %vm2081 = vcmp.ge.f32.partialorder %v1898, 0.0
        %vm2082 = vcmp.ge.f32.partialorder %v1900, 0.0
        %vm2083 = vcmp.ge.f32.partialorder %v2011, 0.0
        %vm2084 = vcmp.ge.f32.partialorder %v2013, 0.0
        %vm2085 = vcmp.ge.f32.partialorder %v1904, 0.0
        %vm2086 = vcmp.ge.f32.partialorder %v1906, 0.0
        %vm2087 = vcmp.ge.f32.partialorder %v2017, 0.0
        %vm2088 = vcmp.ge.f32.partialorder %v2019, 0.0
        %vm2089 = vcmp.ge.f32.partialorder %v1908, 0.0
        %vm2090 = vcmp.ge.f32.partialorder %v1910, 0.0
        %vm2091 = vcmp.ge.f32.partialorder %v2021, 0.0
        %vm2092 = vcmp.ge.f32.partialorder %v2023, 0.0
        %vm2093 = vcmp.ge.f32.partialorder %v1914, 0.0
        %vm2094 = vcmp.ge.f32.partialorder %v1916, 0.0
        %vm2095 = vcmp.ge.f32.partialorder %v2027, 0.0
        %vm2096 = vcmp.ge.f32.partialorder %v2029, 0.0
        %vm2097 = vcmp.ge.f32.partialorder %v1918, 0.0
        %vm2098 = vcmp.ge.f32.partialorder %v1920, 0.0
        %vm2099 = vcmp.ge.f32.partialorder %v2031, 0.0
        %vm2100 = vcmp.ge.f32.partialorder %v2033, 0.0
        %vm2101 = vcmp.ge.f32.partialorder %v1924, 0.0
        %vm2102 = vcmp.ge.f32.partialorder %v1926, 0.0
        %vm2103 = vcmp.ge.f32.partialorder %v2037, 0.0
        %vm2104 = vcmp.ge.f32.partialorder %v2039, 0.0
        %vm2105 = vcmp.ge.f32.partialorder %v1928, 0.0
        %vm2106 = vcmp.ge.f32.partialorder %v1930, 0.0
        %vm2107 = vcmp.ge.f32.partialorder %v2041, 0.0
        %vm2108 = vcmp.ge.f32.partialorder %v2043, 0.0
        %v2109 = vmul.f32 %v1854, 0.01
        %v2110 = vmul.f32 %v1856, 0.01
        %v2111 = vmul.f32 %v1967, 0.01
        %v2112 = vmul.f32 %v1969, 0.01
        %v2113 = vmul.f32 %v1858, 0.01
        %v2114 = vmul.f32 %v1860, 0.01
        %v2115 = vmul.f32 %v1971, 0.01
        %v2116 = vmul.f32 %v1973, 0.01
        %v2117 = vmul.f32 %v1864, 0.01
        %v2118 = vmul.f32 %v1866, 0.01
        %v2119 = vmul.f32 %v1977, 0.01
        %v2120 = vmul.f32 %v1979, 0.01
        %v2121 = vmul.f32 %v1868, 0.01
        %v2122 = vmul.f32 %v1870, 0.01
        %v2123 = vmul.f32 %v1981, 0.01
        %v2124 = vmul.f32 %v1983, 0.01
        %v2125 = vmul.f32 %v1874, 0.01
        %v2126 = vmul.f32 %v1876, 0.01
        %v2127 = vmul.f32 %v1987, 0.01
        %v2128 = vmul.f32 %v1989, 0.01
        %v2129 = vmul.f32 %v1878, 0.01
        %v2130 = vmul.f32 %v1880, 0.01
        %v2131 = vmul.f32 %v1991, 0.01
        %v2132 = vmul.f32 %v1993, 0.01
        %v2133 = vmul.f32 %v1884, 0.01
        %v2134 = vmul.f32 %v1886, 0.01
        %v2135 = vmul.f32 %v1997, 0.01
        %v2136 = vmul.f32 %v1999, 0.01
        %v2137 = vmul.f32 %v1888, 0.01
        %v2138 = vmul.f32 %v1890, 0.01
        %v2139 = vmul.f32 %v2001, 0.01
        %v2140 = vmul.f32 %v2003, 0.01
        %v2141 = vmul.f32 %v1894, 0.01
        %v2142 = vmul.f32 %v1896, 0.01
        %v2143 = vmul.f32 %v2007, 0.01
        %v2144 = vmul.f32 %v2009, 0.01
        %v2145 = vmul.f32 %v1898, 0.01
        %v2146 = vmul.f32 %v1900, 0.01
        %v2147 = vmul.f32 %v2011, 0.01
        %v2148 = vmul.f32 %v2013, 0.01
        %v2149 = vmul.f32 %v1904, 0.01
        %v2150 = vmul.f32 %v1906, 0.01
        %v2151 = vmul.f32 %v2017, 0.01
        %v2152 = vmul.f32 %v2019, 0.01
        %v2153 = vmul.f32 %v1908, 0.01
        %v2154 = vmul.f32 %v1910, 0.01
        %v2155 = vmul.f32 %v2021, 0.01
        %v2156 = vmul.f32 %v2023, 0.01
        %v2157 = vmul.f32 %v1914, 0.01
        %v2158 = vmul.f32 %v1916, 0.01
        %v2159 = vmul.f32 %v2027, 0.01
        %v2160 = vmul.f32 %v2029, 0.01
        %v2161 = vmul.f32 %v1918, 0.01
        %v2162 = vmul.f32 %v1920, 0.01
        %v2163 = vmul.f32 %v2031, 0.01
        %v2164 = vmul.f32 %v2033, 0.01
        %v2165 = vmul.f32 %v1924, 0.01
        %v2166 = vmul.f32 %v1926, 0.01
        %v2167 = vmul.f32 %v2037, 0.01
        %v2168 = vmul.f32 %v2039, 0.01
        %v2169 = vmul.f32 %v1928, 0.01
        %v2170 = vmul.f32 %v1930, 0.01
        %v2171 = vmul.f32 %v2041, 0.01
        %v2172 = vmul.f32 %v2043, 0.01
        %v2173 = vsel %vm2045, %v1854, %v2109
        %v2174 = vsel %vm2046, %v1856, %v2110
        %v2175 = vsel %vm2047, %v1967, %v2111
        %v2176 = vsel %vm2048, %v1969, %v2112
        %v2177 = vsel %vm2049, %v1858, %v2113
        %v2178 = vsel %vm2050, %v1860, %v2114
        %v2179 = vsel %vm2051, %v1971, %v2115
        %v2180 = vsel %vm2052, %v1973, %v2116
        %v2181 = vsel %vm2053, %v1864, %v2117
        %v2182 = vsel %vm2054, %v1866, %v2118
        %v2183 = vsel %vm2055, %v1977, %v2119
        %v2184 = vsel %vm2056, %v1979, %v2120
        %v2185 = vsel %vm2057, %v1868, %v2121
        %v2186 = vsel %vm2058, %v1870, %v2122
        %v2187 = vsel %vm2059, %v1981, %v2123
        %v2188 = vsel %vm2060, %v1983, %v2124
        %v2189 = vsel %vm2061, %v1874, %v2125
        %v2190 = vsel %vm2062, %v1876, %v2126
        %v2191 = vsel %vm2063, %v1987, %v2127
        %v2192 = vsel %vm2064, %v1989, %v2128
        %v2193 = vsel %vm2065, %v1878, %v2129
        %v2194 = vsel %vm2066, %v1880, %v2130
        %v2195 = vsel %vm2067, %v1991, %v2131
        %v2196 = vsel %vm2068, %v1993, %v2132
        %v2197 = vsel %vm2069, %v1884, %v2133
        %v2198 = vsel %vm2070, %v1886, %v2134
        %v2199 = vsel %vm2071, %v1997, %v2135
        %v2200 = vsel %vm2072, %v1999, %v2136
        %v2201 = vsel %vm2073, %v1888, %v2137
        %v2202 = vsel %vm2074, %v1890, %v2138
        %v2203 = vsel %vm2075, %v2001, %v2139
        %v2204 = vsel %vm2076, %v2003, %v2140
        %v2205 = vsel %vm2077, %v1894, %v2141
        %v2206 = vsel %vm2078, %v1896, %v2142
        %v2207 = vsel %vm2079, %v2007, %v2143
        %v2208 = vsel %vm2080, %v2009, %v2144
        %v2209 = vsel %vm2081, %v1898, %v2145
        %v2210 = vsel %vm2082, %v1900, %v2146
        %v2211 = vsel %vm2083, %v2011, %v2147
        %v2212 = vsel %vm2084, %v2013, %v2148
        %v2213 = vsel %vm2085, %v1904, %v2149
        %v2214 = vsel %vm2086, %v1906, %v2150
        %v2215 = vsel %vm2087, %v2017, %v2151
        %v2216 = vsel %vm2088, %v2019, %v2152
        %v2217 = vsel %vm2089, %v1908, %v2153
        %v2218 = vsel %vm2090, %v1910, %v2154
        %v2219 = vsel %vm2091, %v2021, %v2155
        %v2220 = vsel %vm2092, %v2023, %v2156
        %v2221 = vsel %vm2093, %v1914, %v2157
        %v2222 = vsel %vm2094, %v1916, %v2158
        %v2223 = vsel %vm2095, %v2027, %v2159
        %v2224 = vsel %vm2096, %v2029, %v2160
        %v2225 = vsel %vm2097, %v1918, %v2161
        %v2226 = vsel %vm2098, %v1920, %v2162
        %v2227 = vsel %vm2099, %v2031, %v2163
        %v2228 = vsel %vm2100, %v2033, %v2164
        %v2229 = vsel %vm2101, %v1924, %v2165
        %v2230 = vsel %vm2102, %v1926, %v2166
        %v2231 = vsel %vm2103, %v2037, %v2167
        %v2232 = vsel %vm2104, %v2039, %v2168
        %v2233 = vsel %vm2105, %v1928, %v2169
        %v2234 = vsel %vm2106, %v1930, %v2170
        %v2235 = vsel %vm2107, %v2041, %v2171
        %v2236 = vsel %vm2108, %v2043, %v2172
        %v2237 = vpack.c.bf16 %v2177, %v2173
        %v2238 = vpack.c.bf16 %v2178, %v2174
        %v2239 = vpack.c.bf16 %v2179, %v2175
        %v2240 = vpack.c.bf16 %v2180, %v2176
        %v2241 = vpack.c.bf16 %v2185, %v2181
        %v2242 = vpack.c.bf16 %v2186, %v2182
        %v2243 = vpack.c.bf16 %v2187, %v2183
        %v2244 = vpack.c.bf16 %v2188, %v2184
        %v2245 = vpack.c.bf16 %v2193, %v2189
        %v2246 = vpack.c.bf16 %v2194, %v2190
        %v2247 = vpack.c.bf16 %v2195, %v2191
        %v2248 = vpack.c.bf16 %v2196, %v2192
        %v2249 = vpack.c.bf16 %v2201, %v2197
        %v2250 = vpack.c.bf16 %v2202, %v2198
        %v2251 = vpack.c.bf16 %v2203, %v2199
        %v2252 = vpack.c.bf16 %v2204, %v2200
        %v2253 = vpack.c.bf16 %v2209, %v2205
        %v2254 = vpack.c.bf16 %v2210, %v2206
        %v2255 = vpack.c.bf16 %v2211, %v2207
        %v2256 = vpack.c.bf16 %v2212, %v2208
        %v2257 = vpack.c.bf16 %v2217, %v2213
        %v2258 = vpack.c.bf16 %v2218, %v2214
        %v2259 = vpack.c.bf16 %v2219, %v2215
        %v2260 = vpack.c.bf16 %v2220, %v2216
        %v2261 = vpack.c.bf16 %v2225, %v2221
        %v2262 = vpack.c.bf16 %v2226, %v2222
        %v2263 = vpack.c.bf16 %v2227, %v2223
        %v2264 = vpack.c.bf16 %v2228, %v2224
        %v2265 = vpack.c.bf16 %v2233, %v2229
        %v2266 = vpack.c.bf16 %v2234, %v2230
        %v2267 = vpack.c.bf16 %v2235, %v2231
        %v2268 = vpack.c.bf16 %v2236, %v2232
        %v2269 = vmax.bf16 %v2237, %v2241
        %v2270 = vmax.bf16 %v2269, %v2245
        %v2271 = vmax.bf16 %v2270, %v2249
        %v2272 = vmax.bf16 %v2271, %v2253
        %v2273 = vmax.bf16 %v2272, %v2257
        %v2274 = vmax.bf16 %v2273, %v2261
        %v2275 = vmax.bf16 %v2274, %v2265
        %v2276 = vunpack.i.l.bf16 %v2275
        %v2277 = vunpack.i.h.bf16 %v2275
        %v2278 = vmax.f32 %v2276, %v2277
        %v2279 = vrot.slane %v2278, 4
        %v2280 = vmax.f32 %v2278, %v2279
        %v2281 = vrot.slane %v2280, 2
        %v2282 = vmax.f32 %v2280, %v2281
        %v2283 = vrot.slane %v2282, 1
        %v2284 = vmax.f32 %v2282, %v2283
        %v2285 = vpack.i.bf16 %v2284, %v2284
        %v2286 = vmax.bf16 %v2238, %v2242
        %v2287 = vmax.bf16 %v2286, %v2246
        %v2288 = vmax.bf16 %v2287, %v2250
        %v2289 = vmax.bf16 %v2288, %v2254
        %v2290 = vmax.bf16 %v2289, %v2258
        %v2291 = vmax.bf16 %v2290, %v2262
        %v2292 = vmax.bf16 %v2291, %v2266
        %v2293 = vunpack.i.l.bf16 %v2292
        %v2294 = vunpack.i.h.bf16 %v2292
        %v2295 = vmax.f32 %v2293, %v2294
        %v2296 = vrot.slane %v2295, 4
        %v2297 = vmax.f32 %v2295, %v2296
        %v2298 = vrot.slane %v2297, 2
        %v2299 = vmax.f32 %v2297, %v2298
        %v2300 = vrot.slane %v2299, 1
        %v2301 = vmax.f32 %v2299, %v2300
        %v2302 = vpack.i.bf16 %v2301, %v2301
        %v2303 = vmax.bf16 %v2239, %v2243
        %v2304 = vmax.bf16 %v2303, %v2247
        %v2305 = vmax.bf16 %v2304, %v2251
        %v2306 = vmax.bf16 %v2305, %v2255
        %v2307 = vmax.bf16 %v2306, %v2259
        %v2308 = vmax.bf16 %v2307, %v2263
        %v2309 = vmax.bf16 %v2308, %v2267
        %v2310 = vunpack.i.l.bf16 %v2309
        %v2311 = vunpack.i.h.bf16 %v2309
        %v2312 = vmax.f32 %v2310, %v2311
        %v2313 = vrot.slane %v2312, 4
        %v2314 = vmax.f32 %v2312, %v2313
        %v2315 = vrot.slane %v2314, 2
        %v2316 = vmax.f32 %v2314, %v2315
        %v2317 = vrot.slane %v2316, 1
        %v2318 = vmax.f32 %v2316, %v2317
        %v2319 = vpack.i.bf16 %v2318, %v2318
        %v2320 = vmax.bf16 %v2240, %v2244
        %v2321 = vmax.bf16 %v2320, %v2248
        %v2322 = vmax.bf16 %v2321, %v2252
        %v2323 = vmax.bf16 %v2322, %v2256
        %v2324 = vmax.bf16 %v2323, %v2260
        %v2325 = vmax.bf16 %v2324, %v2264
        %v2326 = vmax.bf16 %v2325, %v2268
        %v2327 = vunpack.i.l.bf16 %v2326
        %v2328 = vunpack.i.h.bf16 %v2326
        %v2329 = vmax.f32 %v2327, %v2328
        %v2330 = vrot.slane %v2329, 4
        %v2331 = vmax.f32 %v2329, %v2330
        %v2332 = vrot.slane %v2331, 2
        %v2333 = vmax.f32 %v2331, %v2332
        %v2334 = vrot.slane %v2333, 1
        %v2335 = vmax.f32 %v2333, %v2334
        %v2336 = vpack.i.bf16 %v2335, %v2335
        %v2337 = vunpack.c.l.bf16 %v2285
        %v2338 = vunpack.c.l.bf16 %v2302
        %v2339 = vunpack.c.l.bf16 %v2319
        %v2340 = vunpack.c.l.bf16 %v2336
        %p2341 = scmp.eq.s32.totalorder %s36, 0
        // Predicated region
        $region101: #{point_discriminator_2.1} parent=79 // pred_check
          %p2342 = pneg %p2341
        $region102: #{point_discriminator_2.1} parent=79 // pred_check_branch
          %2344 = sbr.rel (%p2342) target = $region104
        $region103: #{point_discriminator_2.1} parent=79 // pred_region
          %v2349 = vcombine.low %v2337, %v2338
          %v2350 = vcombine.low %v2339, %v2340
          %v2352 = vunpack.c.l.s4 1966171168
          %v2353 = vunpack.c.0.s8 %v2352
          %v2354 = vlaneseq
          %v2355 = vshrl.u32 %v2354, 7
          %v2356 = vsub.s32 %v2353, %v2355
          %v2357 = vrot.slane %v2349, %v2356
          %v2359 = vunpack.c.l.s4 1966171168
          %v2360 = vunpack.c.0.s8 %v2359
          %v2361 = vlaneseq
          %v2362 = vshrl.u32 %v2361, 7
          %v2363 = vsub.s32 %v2360, %v2362
          %v2364 = vrot.slane %v2350, %v2363
          %v2365 = vcombine.low %v2357, %v2364
          %v2367 = vunpack.c.l.s4 1966171168
          %v2368 = vunpack.c.0.s8 %v2367
          %v2369 = vlaneseq
          %v2370 = vshrl.u32 %v2369, 7
          %v2371 = vsub.s32 %v2368, %v2370
          %v2372 = vrot.slane %v2365, %v2371
          %v2374 = vlaneseq
          %vm2375 = vcmp.ge.s32.totalorder %v2374, 0
          %vm2376 = vcmp.lt.s32.totalorder %v2374, 512
          %vm2377 = vmand %vm2375, %vm2376
          %2378 = vst.msk [vmem:[#allocation2] sm:$0xf] %vm2377, %v2372
        $region104: #{point_discriminator_2.1} parent=79 // pred_fallthru
          _
        %p2379 = scmp.ne.s32.totalorder %s36, 0
        // Predicated region
        $region105: #{point_discriminator_2.1} parent=79 // pred_check
          %p2380 = pneg %p2379
        $region106: #{point_discriminator_2.1} parent=79 // pred_check_branch
          %2382 = sbr.rel (%p2380) target = $region108
        $region107: #{point_discriminator_2.1} parent=79 // pred_region
          %v2383 = vld [vmem:[#allocation2] sm:$0xf]
          %v2388 = vcombine.low %v2337, %v2338
          %v2389 = vcombine.low %v2339, %v2340
          %v2391 = vunpack.c.l.s4 1966171168
          %v2392 = vunpack.c.0.s8 %v2391
          %v2393 = vlaneseq
          %v2394 = vshrl.u32 %v2393, 7
          %v2395 = vsub.s32 %v2392, %v2394
          %v2396 = vrot.slane %v2388, %v2395
          %v2398 = vunpack.c.l.s4 1966171168
          %v2399 = vunpack.c.0.s8 %v2398
          %v2400 = vlaneseq
          %v2401 = vshrl.u32 %v2400, 7
          %v2402 = vsub.s32 %v2399, %v2401
          %v2403 = vrot.slane %v2389, %v2402
          %v2404 = vcombine.low %v2396, %v2403
          %v2406 = vunpack.c.l.s4 1966171168
          %v2407 = vunpack.c.0.s8 %v2406
          %v2408 = vlaneseq
          %v2409 = vshrl.u32 %v2408, 7
          %v2410 = vsub.s32 %v2407, %v2409
          %v2411 = vrot.slane %v2404, %v2410
          %v2413 = vmax.f32 %v2383, %v2411
          %v2414 = vlaneseq
          %vm2415 = vcmp.ge.s32.totalorder %v2414, 0
          %vm2416 = vcmp.lt.s32.totalorder %v2414, 512
          %vm2417 = vmand %vm2415, %vm2416
          %2418 = vst.msk [vmem:[#allocation2] sm:$0xf] %vm2417, %v2413
        $region108: #{point_discriminator_2.1} parent=79 // pred_fallthru
          _
        // Predicated region
        $region109: #{point_discriminator_2.1} parent=79 // pred_check
          %p2419 = pneg %p2341
        $region110: #{point_discriminator_2.1} parent=79 // pred_check_branch
          %2421 = sbr.rel (%p2419) target = $region112
        $region111: #{point_discriminator_2.1} parent=79 // pred_region
          %v2422 = vld [vmem:[#allocation2] sm:$0xf]
          %v2424 = vlaneseq
          %v2425 = vshrl.u32 %v2424, 7
          %v2426 = vsub.s32 0, %v2425
          %v2427 = vrot.slane %v2422, %v2426
          %v2428 = vlaneseq
          %v2429 = vshrl.u32 %v2428, 7
          %v2430 = vsub.s32 1, %v2429
          %v2431 = vrot.slane %v2422, %v2430
          %v2432 = vlaneseq
          %v2433 = vshrl.u32 %v2432, 7
          %v2434 = vsub.s32 2, %v2433
          %v2435 = vrot.slane %v2422, %v2434
          %v2436 = vlaneseq
          %v2437 = vshrl.u32 %v2436, 7
          %v2438 = vsub.s32 3, %v2437
          %v2439 = vrot.slane %v2422, %v2438
          %v2444 = vpack.c.bf16 %v2427, %v2427
          %v2445 = vpack.c.bf16 %v2431, %v2431
          %v2446 = vpack.c.bf16 %v2435, %v2435
          %v2447 = vpack.c.bf16 %v2439, %v2439
          %v2448 = vld [vmem:[#allocation9] sm:$0xff]
          %v2449 = vld [vmem:[#allocation9 + $0x8] sm:$0xff]
          %v2450 = vld [vmem:[#allocation9 + $0x10] sm:$0xff]
          %v2451 = vld [vmem:[#allocation9 + $0x18] sm:$0xff]
          %v2452 = vld [vmem:[#allocation9 + $0x20] sm:$0xff]
          %v2453 = vld [vmem:[#allocation9 + $0x28] sm:$0xff]
          %v2454 = vld [vmem:[#allocation9 + $0x30] sm:$0xff]
          %v2455 = vld [vmem:[#allocation9 + $0x38] sm:$0xff]
          %v2456 = vld [vmem:[#allocation9 + $0x40] sm:$0xff]
          %v2457 = vld [vmem:[#allocation9 + $0x48] sm:$0xff]
          %v2458 = vld [vmem:[#allocation9 + $0x50] sm:$0xff]
          %v2459 = vld [vmem:[#allocation9 + $0x58] sm:$0xff]
          %v2460 = vld [vmem:[#allocation9 + $0x60] sm:$0xff]
          %v2461 = vld [vmem:[#allocation9 + $0x68] sm:$0xff]
          %v2462 = vld [vmem:[#allocation9 + $0x70] sm:$0xff]
          %v2463 = vld [vmem:[#allocation9 + $0x78] sm:$0xff]
          %v2464 = vld [vmem:[#allocation9 + $0x80] sm:$0xff]
          %v2465 = vld [vmem:[#allocation9 + $0x88] sm:$0xff]
          %v2466 = vld [vmem:[#allocation9 + $0x90] sm:$0xff]
          %v2467 = vld [vmem:[#allocation9 + $0x98] sm:$0xff]
          %v2468 = vld [vmem:[#allocation9 + $0xa0] sm:$0xff]
          %v2469 = vld [vmem:[#allocation9 + $0xa8] sm:$0xff]
          %v2470 = vld [vmem:[#allocation9 + $0xb0] sm:$0xff]
          %v2471 = vld [vmem:[#allocation9 + $0xb8] sm:$0xff]
          %v2472 = vld [vmem:[#allocation9 + $0xc0] sm:$0xff]
          %v2473 = vld [vmem:[#allocation9 + $0xc8] sm:$0xff]
          %v2474 = vld [vmem:[#allocation9 + $0xd0] sm:$0xff]
          %v2475 = vld [vmem:[#allocation9 + $0xd8] sm:$0xff]
          %v2476 = vld [vmem:[#allocation9 + $0xe0] sm:$0xff]
          %v2477 = vld [vmem:[#allocation9 + $0xe8] sm:$0xff]
          %v2478 = vld [vmem:[#allocation9 + $0xf0] sm:$0xff]
          %v2479 = vld [vmem:[#allocation9 + $0xf8] sm:$0xff]
          %v2480 = vld [vmem:[#allocation9 + $0x100] sm:$0xff]
          %v2481 = vld [vmem:[#allocation9 + $0x108] sm:$0xff]
          %v2482 = vld [vmem:[#allocation9 + $0x110] sm:$0xff]
          %v2483 = vld [vmem:[#allocation9 + $0x118] sm:$0xff]
          %v2484 = vld [vmem:[#allocation9 + $0x120] sm:$0xff]
          %v2485 = vld [vmem:[#allocation9 + $0x128] sm:$0xff]
          %v2486 = vld [vmem:[#allocation9 + $0x130] sm:$0xff]
          %v2487 = vld [vmem:[#allocation9 + $0x138] sm:$0xff]
          %v2488 = vld [vmem:[#allocation9 + $0x140] sm:$0xff]
          %v2489 = vld [vmem:[#allocation9 + $0x148] sm:$0xff]
          %v2490 = vld [vmem:[#allocation9 + $0x150] sm:$0xff]
          %v2491 = vld [vmem:[#allocation9 + $0x158] sm:$0xff]
          %v2492 = vld [vmem:[#allocation9 + $0x160] sm:$0xff]
          %v2493 = vld [vmem:[#allocation9 + $0x168] sm:$0xff]
          %v2494 = vld [vmem:[#allocation9 + $0x170] sm:$0xff]
          %v2495 = vld [vmem:[#allocation9 + $0x178] sm:$0xff]
          %v2496 = vld [vmem:[#allocation9 + $0x180] sm:$0xff]
          %v2497 = vld [vmem:[#allocation9 + $0x188] sm:$0xff]
          %v2498 = vld [vmem:[#allocation9 + $0x190] sm:$0xff]
          %v2499 = vld [vmem:[#allocation9 + $0x198] sm:$0xff]
          %v2500 = vld [vmem:[#allocation9 + $0x1a0] sm:$0xff]
          %v2501 = vld [vmem:[#allocation9 + $0x1a8] sm:$0xff]
          %v2502 = vld [vmem:[#allocation9 + $0x1b0] sm:$0xff]
          %v2503 = vld [vmem:[#allocation9 + $0x1b8] sm:$0xff]
          %v2504 = vld [vmem:[#allocation9 + $0x1c0] sm:$0xff]
          %v2505 = vld [vmem:[#allocation9 + $0x1c8] sm:$0xff]
          %v2506 = vld [vmem:[#allocation9 + $0x1d0] sm:$0xff]
          %v2507 = vld [vmem:[#allocation9 + $0x1d8] sm:$0xff]
          %v2508 = vld [vmem:[#allocation9 + $0x1e0] sm:$0xff]
          %v2509 = vld [vmem:[#allocation9 + $0x1e8] sm:$0xff]
          %v2510 = vld [vmem:[#allocation9 + $0x1f0] sm:$0xff]
          %v2511 = vld [vmem:[#allocation9 + $0x1f8] sm:$0xff]
          %v2512 = vld [vmem:[#allocation11] sm:$0x3]
          %v2577 = vunpack.c.l.b16 %v2448
          %v2578 = vunpack.c.h.b16 %v2448
          %v2579 = vunpack.c.l.b16 %v2449
          %v2580 = vunpack.c.h.b16 %v2449
          %v2581 = vunpack.c.l.b16 %v2450
          %v2582 = vunpack.c.h.b16 %v2450
          %v2583 = vunpack.c.l.b16 %v2451
          %v2584 = vunpack.c.h.b16 %v2451
          %v2585 = vunpack.c.l.b16 %v2452
          %v2586 = vunpack.c.h.b16 %v2452
          %v2587 = vunpack.c.l.b16 %v2453
          %v2588 = vunpack.c.h.b16 %v2453
          %v2589 = vunpack.c.l.b16 %v2454
          %v2590 = vunpack.c.h.b16 %v2454
          %v2591 = vunpack.c.l.b16 %v2455
          %v2592 = vunpack.c.h.b16 %v2455
          %v2593 = vunpack.c.l.b16 %v2456
          %v2594 = vunpack.c.h.b16 %v2456
          %v2595 = vunpack.c.l.b16 %v2457
          %v2596 = vunpack.c.h.b16 %v2457
          %v2597 = vunpack.c.l.b16 %v2458
          %v2598 = vunpack.c.h.b16 %v2458
          %v2599 = vunpack.c.l.b16 %v2459
          %v2600 = vunpack.c.h.b16 %v2459
          %v2601 = vunpack.c.l.b16 %v2460
          %v2602 = vunpack.c.h.b16 %v2460
          %v2603 = vunpack.c.l.b16 %v2461
          %v2604 = vunpack.c.h.b16 %v2461
          %v2605 = vunpack.c.l.b16 %v2462
          %v2606 = vunpack.c.h.b16 %v2462
          %v2607 = vunpack.c.l.b16 %v2463
          %v2608 = vunpack.c.h.b16 %v2463
          %v2609 = vunpack.c.l.b16 %v2464
          %v2610 = vunpack.c.h.b16 %v2464
          %v2611 = vunpack.c.l.b16 %v2465
          %v2612 = vunpack.c.h.b16 %v2465
          %v2613 = vunpack.c.l.b16 %v2466
          %v2614 = vunpack.c.h.b16 %v2466
          %v2615 = vunpack.c.l.b16 %v2467
          %v2616 = vunpack.c.h.b16 %v2467
          %v2617 = vunpack.c.l.b16 %v2468
          %v2618 = vunpack.c.h.b16 %v2468
          %v2619 = vunpack.c.l.b16 %v2469
          %v2620 = vunpack.c.h.b16 %v2469
          %v2621 = vunpack.c.l.b16 %v2470
          %v2622 = vunpack.c.h.b16 %v2470
          %v2623 = vunpack.c.l.b16 %v2471
          %v2624 = vunpack.c.h.b16 %v2471
          %v2625 = vunpack.c.l.b16 %v2472
          %v2626 = vunpack.c.h.b16 %v2472
          %v2627 = vunpack.c.l.b16 %v2473
          %v2628 = vunpack.c.h.b16 %v2473
          %v2629 = vunpack.c.l.b16 %v2474
          %v2630 = vunpack.c.h.b16 %v2474
          %v2631 = vunpack.c.l.b16 %v2475
          %v2632 = vunpack.c.h.b16 %v2475
          %v2633 = vunpack.c.l.b16 %v2476
          %v2634 = vunpack.c.h.b16 %v2476
          %v2635 = vunpack.c.l.b16 %v2477
          %v2636 = vunpack.c.h.b16 %v2477
          %v2637 = vunpack.c.l.b16 %v2478
          %v2638 = vunpack.c.h.b16 %v2478
          %v2639 = vunpack.c.l.b16 %v2479
          %v2640 = vunpack.c.h.b16 %v2479
          %v2641 = vunpack.c.l.b16 %v2480
          %v2642 = vunpack.c.h.b16 %v2480
          %v2643 = vunpack.c.l.b16 %v2481
          %v2644 = vunpack.c.h.b16 %v2481
          %v2645 = vunpack.c.l.b16 %v2482
          %v2646 = vunpack.c.h.b16 %v2482
          %v2647 = vunpack.c.l.b16 %v2483
          %v2648 = vunpack.c.h.b16 %v2483
          %v2649 = vunpack.c.l.b16 %v2484
          %v2650 = vunpack.c.h.b16 %v2484
          %v2651 = vunpack.c.l.b16 %v2485
          %v2652 = vunpack.c.h.b16 %v2485
          %v2653 = vunpack.c.l.b16 %v2486
          %v2654 = vunpack.c.h.b16 %v2486
          %v2655 = vunpack.c.l.b16 %v2487
          %v2656 = vunpack.c.h.b16 %v2487
          %v2657 = vunpack.c.l.b16 %v2488
          %v2658 = vunpack.c.h.b16 %v2488
          %v2659 = vunpack.c.l.b16 %v2489
          %v2660 = vunpack.c.h.b16 %v2489
          %v2661 = vunpack.c.l.b16 %v2490
          %v2662 = vunpack.c.h.b16 %v2490
          %v2663 = vunpack.c.l.b16 %v2491
          %v2664 = vunpack.c.h.b16 %v2491
          %v2665 = vunpack.c.l.b16 %v2492
          %v2666 = vunpack.c.h.b16 %v2492
          %v2667 = vunpack.c.l.b16 %v2493
          %v2668 = vunpack.c.h.b16 %v2493
          %v2669 = vunpack.c.l.b16 %v2494
          %v2670 = vunpack.c.h.b16 %v2494
          %v2671 = vunpack.c.l.b16 %v2495
          %v2672 = vunpack.c.h.b16 %v2495
          %v2673 = vunpack.c.l.b16 %v2496
          %v2674 = vunpack.c.h.b16 %v2496
          %v2675 = vunpack.c.l.b16 %v2497
          %v2676 = vunpack.c.h.b16 %v2497
          %v2677 = vunpack.c.l.b16 %v2498
          %v2678 = vunpack.c.h.b16 %v2498
          %v2679 = vunpack.c.l.b16 %v2499
          %v2680 = vunpack.c.h.b16 %v2499
          %v2681 = vunpack.c.l.b16 %v2500
          %v2682 = vunpack.c.h.b16 %v2500
          %v2683 = vunpack.c.l.b16 %v2501
          %v2684 = vunpack.c.h.b16 %v2501
          %v2685 = vunpack.c.l.b16 %v2502
          %v2686 = vunpack.c.h.b16 %v2502
          %v2687 = vunpack.c.l.b16 %v2503
          %v2688 = vunpack.c.h.b16 %v2503
          %v2689 = vunpack.c.l.b16 %v2504
          %v2690 = vunpack.c.h.b16 %v2504
          %v2691 = vunpack.c.l.b16 %v2505
          %v2692 = vunpack.c.h.b16 %v2505
          %v2693 = vunpack.c.l.b16 %v2506
          %v2694 = vunpack.c.h.b16 %v2506
          %v2695 = vunpack.c.l.b16 %v2507
          %v2696 = vunpack.c.h.b16 %v2507
          %v2697 = vunpack.c.l.b16 %v2508
          %v2698 = vunpack.c.h.b16 %v2508
          %v2699 = vunpack.c.l.b16 %v2509
          %v2700 = vunpack.c.h.b16 %v2509
          %v2701 = vunpack.c.l.b16 %v2510
          %v2702 = vunpack.c.h.b16 %v2510
          %v2703 = vunpack.c.l.b16 %v2511
          %v2704 = vunpack.c.h.b16 %v2511
          %v2705 = vpack.c.b16 %v2579, %v2577
          %v2706 = vpack.c.b16 %v2580, %v2578
          %v2707 = vpack.c.b16 %v2583, %v2581
          %v2708 = vpack.c.b16 %v2584, %v2582
          %v2709 = vpack.c.b16 %v2587, %v2585
          %v2710 = vpack.c.b16 %v2588, %v2586
          %v2711 = vpack.c.b16 %v2591, %v2589
          %v2712 = vpack.c.b16 %v2592, %v2590
          %v2713 = vpack.c.b16 %v2595, %v2593
          %v2714 = vpack.c.b16 %v2596, %v2594
          %v2715 = vpack.c.b16 %v2599, %v2597
          %v2716 = vpack.c.b16 %v2600, %v2598
          %v2717 = vpack.c.b16 %v2603, %v2601
          %v2718 = vpack.c.b16 %v2604, %v2602
          %v2719 = vpack.c.b16 %v2607, %v2605
          %v2720 = vpack.c.b16 %v2608, %v2606
          %v2721 = vpack.c.b16 %v2611, %v2609
          %v2722 = vpack.c.b16 %v2612, %v2610
          %v2723 = vpack.c.b16 %v2615, %v2613
          %v2724 = vpack.c.b16 %v2616, %v2614
          %v2725 = vpack.c.b16 %v2619, %v2617
          %v2726 = vpack.c.b16 %v2620, %v2618
          %v2727 = vpack.c.b16 %v2623, %v2621
          %v2728 = vpack.c.b16 %v2624, %v2622
          %v2729 = vpack.c.b16 %v2627, %v2625
          %v2730 = vpack.c.b16 %v2628, %v2626
          %v2731 = vpack.c.b16 %v2631, %v2629
          %v2732 = vpack.c.b16 %v2632, %v2630
          %v2733 = vpack.c.b16 %v2635, %v2633
          %v2734 = vpack.c.b16 %v2636, %v2634
          %v2735 = vpack.c.b16 %v2639, %v2637
          %v2736 = vpack.c.b16 %v2640, %v2638
          %v2737 = vpack.c.b16 %v2643, %v2641
          %v2738 = vpack.c.b16 %v2644, %v2642
          %v2739 = vpack.c.b16 %v2647, %v2645
          %v2740 = vpack.c.b16 %v2648, %v2646
          %v2741 = vpack.c.b16 %v2651, %v2649
          %v2742 = vpack.c.b16 %v2652, %v2650
          %v2743 = vpack.c.b16 %v2655, %v2653
          %v2744 = vpack.c.b16 %v2656, %v2654
          %v2745 = vpack.c.b16 %v2659, %v2657
          %v2746 = vpack.c.b16 %v2660, %v2658
          %v2747 = vpack.c.b16 %v2663, %v2661
          %v2748 = vpack.c.b16 %v2664, %v2662
          %v2749 = vpack.c.b16 %v2667, %v2665
          %v2750 = vpack.c.b16 %v2668, %v2666
          %v2751 = vpack.c.b16 %v2671, %v2669
          %v2752 = vpack.c.b16 %v2672, %v2670
          %v2753 = vpack.c.b16 %v2675, %v2673
          %v2754 = vpack.c.b16 %v2676, %v2674
          %v2755 = vpack.c.b16 %v2679, %v2677
          %v2756 = vpack.c.b16 %v2680, %v2678
          %v2757 = vpack.c.b16 %v2683, %v2681
          %v2758 = vpack.c.b16 %v2684, %v2682
          %v2759 = vpack.c.b16 %v2687, %v2685
          %v2760 = vpack.c.b16 %v2688, %v2686
          %v2761 = vpack.c.b16 %v2691, %v2689
          %v2762 = vpack.c.b16 %v2692, %v2690
          %v2763 = vpack.c.b16 %v2695, %v2693
          %v2764 = vpack.c.b16 %v2696, %v2694
          %v2765 = vpack.c.b16 %v2699, %v2697
          %v2766 = vpack.c.b16 %v2700, %v2698
          %v2767 = vpack.c.b16 %v2703, %v2701
          %v2768 = vpack.c.b16 %v2704, %v2702
          %v2834 = vlaneseq
          %v2835 = vshrl.u32 %v2834, 7
          %v2836 = vsub.s32 0, %v2835
          %v2837 = vrot.slane %v2512, %v2836
          %v2838 = vlaneseq
          %v2839 = vshrl.u32 %v2838, 7
          %v2840 = vsub.s32 1, %v2839
          %v2841 = vrot.slane %v2512, %v2840
          %2844 = vmatprep.subr.bf16.mxu0 %v2706
          %2845 = vmatpush1.bf16.msra.mxu0 %v2705
          %2846 = vmatprep.subr.bf16.mxu0 %v2708
          %2847 = vmatpush1.bf16.msra.mxu0 %v2707
          %2848 = vmatprep.subr.bf16.mxu0 %v2710
          %2849 = vmatpush1.bf16.msra.mxu0 %v2709
          %2850 = vmatprep.subr.bf16.mxu0 %v2712
          %2851 = vmatpush1.bf16.msra.mxu0 %v2711
          %2852 = vmatprep.subr.bf16.mxu0 %v2714
          %2853 = vmatpush1.bf16.msra.mxu0 %v2713
          %2854 = vmatprep.subr.bf16.mxu0 %v2716
          %2855 = vmatpush1.bf16.msra.mxu0 %v2715
          %2856 = vmatprep.subr.bf16.mxu0 %v2718
          %2857 = vmatpush1.bf16.msra.mxu0 %v2717
          %2858 = vmatprep.subr.bf16.mxu0 %v2720
          %2859 = vmatpush1.bf16.msra.mxu0 %v2719
          %2860 = vmatprep.subr.bf16.mxu0 %v2722
          %2861 = vmatpush1.bf16.msra.mxu0 %v2721
          %2862 = vmatprep.subr.bf16.mxu0 %v2724
          %2863 = vmatpush1.bf16.msra.mxu0 %v2723
          %2864 = vmatprep.subr.bf16.mxu0 %v2726
          %2865 = vmatpush1.bf16.msra.mxu0 %v2725
          %2866 = vmatprep.subr.bf16.mxu0 %v2728
          %2867 = vmatpush1.bf16.msra.mxu0 %v2727
          %2868 = vmatprep.subr.bf16.mxu0 %v2730
          %2869 = vmatpush1.bf16.msra.mxu0 %v2729
          %2870 = vmatprep.subr.bf16.mxu0 %v2732
          %2871 = vmatpush1.bf16.msra.mxu0 %v2731
          %2872 = vmatprep.subr.bf16.mxu0 %v2734
          %2873 = vmatpush1.bf16.msra.mxu0 %v2733
          %2874 = vmatprep.subr.bf16.mxu0 %v2736
          %2875 = vmatpush1.bf16.msra.mxu0 %v2735
          %2876 = vmatprep.mubr.bf16.mxu0 %v2445
          %2877 = vmatmul.mubr.bf16.gmra.mrb[0].mxu0 %v2444
          %v2878 = vpop.f32.mrb[0].mxu0
          %v2879 = vadd.f32 %v2837, %v2878
          %v2880 = vpop.f32.mrb[0].mxu0
          %v2881 = vadd.f32 %v2841, %v2880
          %v2882 = vpop.f32.mrb[0].mxu0
          %v2883 = vpop.f32.mrb[0].mxu0
          %2884 = vdwg.mxu0
          %2885 = vmatprep.subr.bf16.mxu0 %v2738
          %2886 = vmatpush1.bf16.msra.mxu0 %v2737
          %2887 = vmatprep.subr.bf16.mxu0 %v2740
          %2888 = vmatpush1.bf16.msra.mxu0 %v2739
          %2889 = vmatprep.subr.bf16.mxu0 %v2742
          %2890 = vmatpush1.bf16.msra.mxu0 %v2741
          %2891 = vmatprep.subr.bf16.mxu0 %v2744
          %2892 = vmatpush1.bf16.msra.mxu0 %v2743
          %2893 = vmatprep.subr.bf16.mxu0 %v2746
          %2894 = vmatpush1.bf16.msra.mxu0 %v2745
          %2895 = vmatprep.subr.bf16.mxu0 %v2748
          %2896 = vmatpush1.bf16.msra.mxu0 %v2747
          %2897 = vmatprep.subr.bf16.mxu0 %v2750
          %2898 = vmatpush1.bf16.msra.mxu0 %v2749
          %2899 = vmatprep.subr.bf16.mxu0 %v2752
          %2900 = vmatpush1.bf16.msra.mxu0 %v2751
          %2901 = vmatprep.subr.bf16.mxu0 %v2754
          %2902 = vmatpush1.bf16.msra.mxu0 %v2753
          %2903 = vmatprep.subr.bf16.mxu0 %v2756
          %2904 = vmatpush1.bf16.msra.mxu0 %v2755
          %2905 = vmatprep.subr.bf16.mxu0 %v2758
          %2906 = vmatpush1.bf16.msra.mxu0 %v2757
          %2907 = vmatprep.subr.bf16.mxu0 %v2760
          %2908 = vmatpush1.bf16.msra.mxu0 %v2759
          %2909 = vmatprep.subr.bf16.mxu0 %v2762
          %2910 = vmatpush1.bf16.msra.mxu0 %v2761
          %2911 = vmatprep.subr.bf16.mxu0 %v2764
          %2912 = vmatpush1.bf16.msra.mxu0 %v2763
          %2913 = vmatprep.subr.bf16.mxu0 %v2766
          %2914 = vmatpush1.bf16.msra.mxu0 %v2765
          %2915 = vmatprep.subr.bf16.mxu0 %v2768
          %2916 = vmatpush1.bf16.msra.mxu0 %v2767
          %2917 = vmatprep.mubr.bf16.mxu0 %v2447
          %2918 = vmatmul.mubr.bf16.gmra.mrb[0].mxu0 %v2446
          %v2919 = vpop.f32.mrb[0].mxu0
          %v2920 = vadd.f32 %v2879, %v2919
          %v2921 = vpop.f32.mrb[0].mxu0
          %v2922 = vadd.f32 %v2881, %v2921
          %v2923 = vpop.f32.mrb[0].mxu0
          %v2924 = vpop.f32.mrb[0].mxu0
          %2925 = vdwg.mxu0
          %vm2926 = vcmp.ge.f32.partialorder %v2920, 0.0
          %vm2927 = vcmp.ge.f32.partialorder %v2922, 0.0
          %v2928 = vmul.f32 %v2920, 0.01
          %v2929 = vmul.f32 %v2922, 0.01
          %v2930 = vsel %vm2926, %v2920, %v2928
          %v2931 = vsel %vm2927, %v2922, %v2929
          %v2932 = vpack.c.bf16 %v2930, %v2930
          %v2933 = vpack.c.bf16 %v2931, %v2931
          %v2934 = vld [vmem:[%s11] sm:$0xf]
          %v2935 = vld [vmem:[%s11 + $0x4] sm:$0xf]
          %v2936 = vld [vmem:[%s11 + $0x8] sm:$0xf]
          %v2937 = vld [vmem:[%s11 + $0xc] sm:$0xf]
          %v2938 = vld [vmem:[%s11 + $0x10] sm:$0xf]
          %v2939 = vld [vmem:[%s11 + $0x14] sm:$0xf]
          %v2940 = vld [vmem:[%s11 + $0x18] sm:$0xf]
          %v2941 = vld [vmem:[%s11 + $0x1c] sm:$0xf]
          %v2942 = vld [vmem:[%s11 + $0x20] sm:$0xf]
          %v2943 = vld [vmem:[%s11 + $0x24] sm:$0xf]
          %v2944 = vld [vmem:[%s11 + $0x28] sm:$0xf]
          %v2945 = vld [vmem:[%s11 + $0x2c] sm:$0xf]
          %v2946 = vld [vmem:[%s11 + $0x30] sm:$0xf]
          %v2947 = vld [vmem:[%s11 + $0x34] sm:$0xf]
          %v2948 = vld [vmem:[%s11 + $0x38] sm:$0xf]
          %v2949 = vld [vmem:[%s11 + $0x3c] sm:$0xf]
          %v2950 = vld [vmem:[%s11 + $0x40] sm:$0xf]
          %v2951 = vld [vmem:[%s11 + $0x44] sm:$0xf]
          %v2952 = vld [vmem:[%s11 + $0x48] sm:$0xf]
          %v2953 = vld [vmem:[%s11 + $0x4c] sm:$0xf]
          %v2954 = vld [vmem:[%s11 + $0x50] sm:$0xf]
          %v2955 = vld [vmem:[%s11 + $0x54] sm:$0xf]
          %v2956 = vld [vmem:[%s11 + $0x58] sm:$0xf]
          %v2957 = vld [vmem:[%s11 + $0x5c] sm:$0xf]
          %v2958 = vld [vmem:[%s11 + $0x60] sm:$0xf]
          %v2959 = vld [vmem:[%s11 + $0x64] sm:$0xf]
          %v2960 = vld [vmem:[%s11 + $0x68] sm:$0xf]
          %v2961 = vld [vmem:[%s11 + $0x6c] sm:$0xf]
          %v2962 = vld [vmem:[%s11 + $0x70] sm:$0xf]
          %v2963 = vld [vmem:[%s11 + $0x74] sm:$0xf]
          %v2964 = vld [vmem:[%s11 + $0x78] sm:$0xf]
          %v2965 = vld [vmem:[%s11 + $0x7c] sm:$0xf]
          %v2966 = vld [vmem:[%s12] sm:$0x1]
          %v2999 = vunpack.c.l.b16 %v2934
          %v3000 = vunpack.c.l.b16 %v2935
          %v3001 = vunpack.c.l.b16 %v2936
          %v3002 = vunpack.c.l.b16 %v2937
          %v3003 = vunpack.c.l.b16 %v2938
          %v3004 = vunpack.c.l.b16 %v2939
          %v3005 = vunpack.c.l.b16 %v2940
          %v3006 = vunpack.c.l.b16 %v2941
          %v3007 = vunpack.c.l.b16 %v2942
          %v3008 = vunpack.c.l.b16 %v2943
          %v3009 = vunpack.c.l.b16 %v2944
          %v3010 = vunpack.c.l.b16 %v2945
          %v3011 = vunpack.c.l.b16 %v2946
          %v3012 = vunpack.c.l.b16 %v2947
          %v3013 = vunpack.c.l.b16 %v2948
          %v3014 = vunpack.c.l.b16 %v2949
          %v3015 = vunpack.c.l.b16 %v2950
          %v3016 = vunpack.c.l.b16 %v2951
          %v3017 = vunpack.c.l.b16 %v2952
          %v3018 = vunpack.c.l.b16 %v2953
          %v3019 = vunpack.c.l.b16 %v2954
          %v3020 = vunpack.c.l.b16 %v2955
          %v3021 = vunpack.c.l.b16 %v2956
          %v3022 = vunpack.c.l.b16 %v2957
          %v3023 = vunpack.c.l.b16 %v2958
          %v3024 = vunpack.c.l.b16 %v2959
          %v3025 = vunpack.c.l.b16 %v2960
          %v3026 = vunpack.c.l.b16 %v2961
          %v3027 = vunpack.c.l.b16 %v2962
          %v3028 = vunpack.c.l.b16 %v2963
          %v3029 = vunpack.c.l.b16 %v2964
          %v3030 = vunpack.c.l.b16 %v2965
          %v3031 = vpack.c.b16 %v3000, %v2999
          %v3032 = vpack.c.b16 %v3002, %v3001
          %v3033 = vpack.c.b16 %v3004, %v3003
          %v3034 = vpack.c.b16 %v3006, %v3005
          %v3035 = vpack.c.b16 %v3008, %v3007
          %v3036 = vpack.c.b16 %v3010, %v3009
          %v3037 = vpack.c.b16 %v3012, %v3011
          %v3038 = vpack.c.b16 %v3014, %v3013
          %v3039 = vpack.c.b16 %v3016, %v3015
          %v3040 = vpack.c.b16 %v3018, %v3017
          %v3041 = vpack.c.b16 %v3020, %v3019
          %v3042 = vpack.c.b16 %v3022, %v3021
          %v3043 = vpack.c.b16 %v3024, %v3023
          %v3044 = vpack.c.b16 %v3026, %v3025
          %v3045 = vpack.c.b16 %v3028, %v3027
          %v3046 = vpack.c.b16 %v3030, %v3029
          %3063 = vmatprep.subr.bf16.mxu0 0
          %3064 = vmatpush1.bf16.msra.mxu0 %v3031
          %3065 = vmatprep.subr.bf16.mxu0 0
          %3066 = vmatpush1.bf16.msra.mxu0 %v3032
          %3067 = vmatprep.subr.bf16.mxu0 0
          %3068 = vmatpush1.bf16.msra.mxu0 %v3033
          %3069 = vmatprep.subr.bf16.mxu0 0
          %3070 = vmatpush1.bf16.msra.mxu0 %v3034
          %3071 = vmatprep.subr.bf16.mxu0 0
          %3072 = vmatpush1.bf16.msra.mxu0 %v3035
          %3073 = vmatprep.subr.bf16.mxu0 0
          %3074 = vmatpush1.bf16.msra.mxu0 %v3036
          %3075 = vmatprep.subr.bf16.mxu0 0
          %3076 = vmatpush1.bf16.msra.mxu0 %v3037
          %3077 = vmatprep.subr.bf16.mxu0 0
          %3078 = vmatpush1.bf16.msra.mxu0 %v3038
          %3079 = vmatprep.subr.bf16.mxu0 0
          %3080 = vmatpush1.bf16.msra.mxu0 %v3039
          %3081 = vmatprep.subr.bf16.mxu0 0
          %3082 = vmatpush1.bf16.msra.mxu0 %v3040
          %3083 = vmatprep.subr.bf16.mxu0 0
          %3084 = vmatpush1.bf16.msra.mxu0 %v3041
          %3085 = vmatprep.subr.bf16.mxu0 0
          %3086 = vmatpush1.bf16.msra.mxu0 %v3042
          %3087 = vmatprep.subr.bf16.mxu0 0
          %3088 = vmatpush1.bf16.msra.mxu0 %v3043
          %3089 = vmatprep.subr.bf16.mxu0 0
          %3090 = vmatpush1.bf16.msra.mxu0 %v3044
          %3091 = vmatprep.subr.bf16.mxu0 0
          %3092 = vmatpush1.bf16.msra.mxu0 %v3045
          %3093 = vmatprep.subr.bf16.mxu0 0
          %3094 = vmatpush1.bf16.msra.mxu0 %v3046
          %3095 = vmatprep.mubr.bf16.mxu0 %v2933
          %3096 = vmatmul.mubr.bf16.gmra.mrb[0].mxu0 %v2932
          %v3097 = vpop.f32.mrb[0].mxu0
          %v3098 = vadd.f32 %v2966, %v3097
          %v3099 = vpop.f32.mrb[0].mxu0
          %v3100 = vpop.f32.mrb[0].mxu0
          %v3101 = vpop.f32.mrb[0].mxu0
          %3102 = vdwg.mxu0
          %vm3103 = vcmp.ge.f32.partialorder %v3098, 0.0
          %v3104 = vmul.f32 %v3098, 0.01
          %v3105 = vsel %vm3103, %v3098, %v3104
          %v3106 = vld [vmem:[%s13] sm:$0xff]
          %v3107 = vld [vmem:[%s13 + $0x8] sm:$0xff]
          %v3108 = vld [vmem:[%s13 + $0x10] sm:$0xff]
          %v3109 = vld [vmem:[%s13 + $0x18] sm:$0xff]
          %v3110 = vld [vmem:[%s13 + $0x20] sm:$0xff]
          %v3111 = vld [vmem:[%s13 + $0x28] sm:$0xff]
          %v3112 = vld [vmem:[%s13 + $0x30] sm:$0xff]
          %v3113 = vld [vmem:[%s13 + $0x38] sm:$0xff]
          %v3114 = vld [vmem:[#allocation3] sm:$0x1]
          %v3116 = vsel %vm902, %v3105, 0
          %3118 = vmatprep.subr.mxu0 0.0
          %3119 = vmatpush1.msra.mxu0 %v3106
          %3120 = vmatprep.subr.mxu0 0.0
          %3121 = vmatpush1.msra.mxu0 %v3107
          %3122 = vmatprep.subr.mxu0 0.0
          %3123 = vmatpush1.msra.mxu0 %v3108
          %3124 = vmatprep.subr.mxu0 0.0
          %3125 = vmatpush1.msra.mxu0 %v3109
          %3126 = vmatprep.subr.mxu0 0.0
          %3127 = vmatpush1.msra.mxu0 %v3110
          %3128 = vmatprep.subr.mxu0 0.0
          %3129 = vmatpush1.msra.mxu0 %v3111
          %3130 = vmatprep.subr.mxu0 0.0
          %3131 = vmatpush1.msra.mxu0 %v3112
          %3132 = vmatprep.subr.mxu0 0.0
          %3133 = vmatpush1.msra.mxu0 %v3113
          %3134 = vmatprep.subr.mxu0 0.0
          %3135 = vmatpush1.msra.mxu0 0.0
          %3136 = vmatprep.subr.mxu0 0.0
          %3137 = vmatpush1.msra.mxu0 0.0
          %3138 = vmatprep.subr.mxu0 0.0
          %3139 = vmatpush1.msra.mxu0 0.0
          %3140 = vmatprep.subr.mxu0 0.0
          %3141 = vmatpush1.msra.mxu0 0.0
          %3142 = vmatprep.subr.mxu0 0.0
          %3143 = vmatpush1.msra.mxu0 0.0
          %3144 = vmatprep.subr.mxu0 0.0
          %3145 = vmatpush1.msra.mxu0 0.0
          %3146 = vmatprep.subr.mxu0 0.0
          %3147 = vmatpush1.msra.mxu0 0.0
          %3148 = vmatprep.subr.mxu0 0.0
          %3149 = vmatpush1.msra.mxu0 0.0
          %3150 = vmatprep.subr.mxu0 0.0
          %3151 = vmatpush1.msra.mxu0 0.0
          %3152 = vmatprep.subr.mxu0 0.0
          %3153 = vmatpush1.msra.mxu0 0.0
          %3154 = vmatprep.subr.mxu0 0.0
          %3155 = vmatpush1.msra.mxu0 0.0
          %3156 = vmatprep.subr.mxu0 0.0
          %3157 = vmatpush1.msra.mxu0 0.0
          %3158 = vmatprep.subr.mxu0 0.0
          %3159 = vmatpush1.msra.mxu0 0.0
          %3160 = vmatprep.subr.mxu0 0.0
          %3161 = vmatpush1.msra.mxu0 0.0
          %3162 = vmatprep.subr.mxu0 0.0
          %3163 = vmatpush1.msra.mxu0 0.0
          %3164 = vmatprep.subr.mxu0 0.0
          %3165 = vmatpush1.msra.mxu0 0.0
          %3166 = vmatprep.subr.mxu0 0.0
          %3167 = vmatpush1.msra.mxu0 0.0
          %3168 = vmatprep.subr.mxu0 0.0
          %3169 = vmatpush1.msra.mxu0 0.0
          %3170 = vmatprep.subr.mxu0 0.0
          %3171 = vmatpush1.msra.mxu0 0.0
          %3172 = vmatprep.subr.mxu0 0.0
          %3173 = vmatpush1.msra.mxu0 0.0
          %3174 = vmatprep.subr.mxu0 0.0
          %3175 = vmatpush1.msra.mxu0 0.0
          %3176 = vmatprep.subr.mxu0 0.0
          %3177 = vmatpush1.msra.mxu0 0.0
          %3178 = vmatprep.subr.mxu0 0.0
          %3179 = vmatpush1.msra.mxu0 0.0
          %3180 = vmatprep.subr.mxu0 0.0
          %3181 = vmatpush1.msra.mxu0 0.0
          %3182 = vmatprep.mubr.f32.mxu0 0.0
          %3183 = vmatmul.mubr.f32.gmra.mrb[0].mxu0 %v3116
          %v3184 = vpop.f32.mrb[0].mxu0
          %v3185 = vadd.f32 %v3114, %v3184
          %v3186 = vpop.f32.mrb[0].mxu0
          %3187 = vdwg.mxu0
          %vm3188 = vcmask 0
          %3189 = vst.msk [vmem:[%s587] sm:$0x1] %vm3188, %v3185
        $region112: #{point_discriminator_2.1} parent=79 // pred_fallthru
          _
        %p3190 = scmp.lt.s32.totalorder %s35, 1
        %s3191 = scalar_select %p3190, %s35, 1
        %s3192 = scalar_lea.vmem %s15, %s3191
        // Predicated region
        $region113: #{point_discriminator_2.1} parent=79 // pred_check
          %p3193 = pneg %p383
        $region114: #{point_discriminator_2.1} parent=79 // pred_check_branch
          %3195 = sbr.rel (%p3193) target = $region116
        $region115: #{point_discriminator_2.1} parent=79 // pred_region
          _
        $region116: #{point_discriminator_2.1} parent=79 // pred_fallthru
          _
      $region80: #{point_discriminator_2.1} parent=5 // pred_fallthru
        _
      %p3196 = scmp.le.s32.totalorder 2, %s26
      // Predicated region
      $region117: #{point_discriminator_2.1} parent=5 // pred_check
        %p3197 = pneg %p3196
      $region118: #{point_discriminator_2.1} parent=5 // pred_check_branch
        %3199 = sbr.rel (%p3197) target = $region120
      $region119: #{point_discriminator_2.1} parent=5 // pred_region
        %s3200 = ssub.s32 %s26, 2
        // Predicated region
        $region121: #{point_discriminator_2.1} parent=119 // pred_check
          %p3201 = pneg %p389
        $region122: #{point_discriminator_2.1} parent=119 // pred_check_branch
          %3203 = sbr.rel (%p3201) target = $region124
        $region123: #{point_discriminator_2.1} parent=119 // pred_region
          %p3204 = scmp.lt.s32.totalorder %s37, 1
          %s3205 = scalar_select %p3204, %s37, 1
          %s3206 = scalar_lea.vmem %s15, %s3205
        $region124: #{point_discriminator_2.1} parent=119 // pred_fallthru
          _
      $region120: #{point_discriminator_2.1} parent=5 // pred_fallthru
        _
    $region6: #{point_discriminator_2.1} parent=1 // loop_footer
      %s30 = sadd.s32 1, %s26
    $region7: #{point_discriminator_2.1} parent=1 // loop_footer_branch
      %25 = sbr.rel target = $region3
    $region8: #{point_discriminator_2.1} parent=1 // loop_exit
      _
    %3207 = vsyncpa [#allocation5], 1
    %s3208 = scalar_lea.sflag [#allocation5], 1
    %3209 = vsyncpa %s3208, 1
    %3210 = vsyncpa [#allocation7], 1
    %3211 = vsyncpa [#allocation10], 1

</llo_original>
